<compile_context>
chip_gen: v6e
topology: v6e:2x2x1
jax: 0.10.0
libtpu: 0.0.40
codegen_flags: <defaults>
</compile_context>

<pallas_src>
import jax
import jax.numpy as jnp
from jax import lax
from jax.experimental import pallas as pl
from jax.experimental.pallas import tpu as pltpu

MEL_CHANNELS = 40   # config.MEL_CHANNELS
HIDDEN = 256
NUM_LAYERS = 3
_NORM_EPS = 1e-12


# ----------------------------------------------------------------------------
# Fused kernel: 3 LSTM layers (PyTorch gate order i,f,g,o) + Linear/ReLU/L2norm head
# ----------------------------------------------------------------------------
def _voice_encoder_kernel(
    x_ref,                                # [T, Bb, F]   bf16  time-major mel block
    wih0_ref, whh0_ref, b0_ref,           # [F, 4H] bf16, [H, 4H] bf16, [1, 4H] f32
    wih1_ref, whh1_ref, b1_ref,           # [H, 4H] bf16, [H, 4H] bf16, [1, 4H] f32
    wih2_ref, whh2_ref, b2_ref,
    wlin_ref, blin_ref,                   # [H, H] bf16, [1, H] f32
    o_ref,                                # [Bb, H] f32  output embedding block
    g_sc,                                 # [T, Bb, 4H] bf16  inter-layer gate buffer
    h_sc, c_sc,                           # [Bb, H] f32  recurrent state
):
    T = x_ref.shape[0]
    H = h_sc.shape[1]

    def sigmoid(v):
        # tanh form: one EUP transcendental per element instead of exp + divide.
        return 0.5 * jnp.tanh(0.5 * v) + 0.5

    def recurrence(in_gates, whh_ref, wih_next_ref, b_next_ref):
        """One LSTM layer.  in_gates(t) -> [Bb,4H] f32 input projection for step t.
        If wih_next_ref is given, the NEXT layer's input projection for step t is computed
        here (otherwise-idle MXU slot) and written into g_sc[t] (read-then-overwrite)."""
        h_sc[...] = jnp.zeros_like(h_sc)
        c_sc[...] = jnp.zeros_like(c_sc)

        def step(t, carry):
            # Only the true serial dependency stays on the critical path: h_{t-1} @ W_hh.
            gates = in_gates(t) + jnp.dot(h_sc[...].astype(jnp.bfloat16), whh_ref[...],
                                          preferred_element_type=jnp.float32)
            # PyTorch gate order (i, f, g, o); incremental cell update keeps fewer
            # [Bb,H] f32 tiles simultaneously live (less vreg pressure / spills).
            c = sigmoid(gates[:, 1 * H:2 * H]) * c_sc[...]
            c = c + sigmoid(gates[:, 0 * H:1 * H]) * jnp.tanh(gates[:, 2 * H:3 * H])
            h = sigmoid(gates[:, 3 * H:4 * H]) * jnp.tanh(c)
            c_sc[...] = c
            h_sc[...] = h
            if wih_next_ref is not None:
                # Fused next-layer input projection (bias folded in), stored as bf16.
                g_next = jnp.dot(h.astype(jnp.bfloat16), wih_next_ref[...],
                                 preferred_element_type=jnp.float32) + b_next_ref[...]
                g_sc[t] = g_next.astype(jnp.bfloat16)
            return carry

        lax.fori_loop(0, T, step, 0)

    def layer0_gates(t):
        # Layer-0 input projection computed per step: no full-T f32 temp in VMEM.
        return jnp.dot(x_ref[t], wih0_ref[...],
                       preferred_element_type=jnp.float32) + b0_ref[...]

    def buffered_gates(t):
        return g_sc[t].astype(jnp.float32)

    recurrence(layer0_gates, whh0_ref, wih1_ref, b1_ref)     # layer 0 (writes layer-1 gates)
    recurrence(buffered_gates, whh1_ref, wih2_ref, b2_ref)   # layer 1 (writes layer-2 gates)
    recurrence(buffered_gates, whh2_ref, None, None)         # layer 2 (final hidden only)

    # Head: Linear -> ReLU -> row-wise L2 normalize (rsqrt on EUP, eps guards zero rows).
    z = jnp.dot(h_sc[...].astype(jnp.bfloat16), wlin_ref[...],
                preferred_element_type=jnp.float32) + blin_ref[...]
    z = jnp.maximum(z, 0.0)
    inv_norm = lax.rsqrt(jnp.sum(z * z, axis=1, keepdims=True) + _NORM_EPS)
    o_ref[...] = (z * inv_norm).astype(o_ref.dtype)


# ----------------------------------------------------------------------------
# Wrapper helpers
# ----------------------------------------------------------------------------
def _round_up(x, m):
    return ((x + m - 1) // m) * m


def _vmem_capacity_bytes():
    try:
        return int(pltpu.get_tpu_info().vmem_capacity_bytes)
    except Exception:
        return 64 << 20   # conservative fallback (v7x per-TensorCore VMEM)


def _pick_batch_block(batch, seq_len, vmem_cap):
    """Batch rows per grid block (multiple of 8 sublanes), generation aware."""
    # bf16 inter-layer gate scratch is seq_len * Bb * 4H * 2 bytes; keep under ~40% of VMEM.
    bytes_per_row = seq_len * 4 * HIDDEN * 2
    rows_budget = max(8, int(0.4 * vmem_cap) // bytes_per_row)
    small_vmem = vmem_cap <= (64 << 20)            # v7x-class (64 MiB per TensorCore)
    cap = 64 if small_vmem else 128                # larger Bb fills MXU rows on v5e/v6e
    if small_vmem and batch > 32:
        # v7x has 2 TensorCores; prefer >= 2 independent batch blocks so neither idles.
        cap = min(cap, _round_up(-(-batch // 2), 8))
    bb = min(_round_up(batch, 8), cap, (rows_budget // 8) * 8)
    return max(8, bb)


# ----------------------------------------------------------------------------
# VoiceEncoder forward
# ----------------------------------------------------------------------------
def voice_encoder_forward(mels, params):
    """mels: [B, T, MEL_CHANNELS] (batch_first, like nn.LSTM(batch_first=True))."""
    B0, T, F = mels.shape
    H = HIDDEN

    vmem_cap = _vmem_capacity_bytes()
    Bb = _pick_batch_block(B0, T, vmem_cap)
    B = _round_up(B0, Bb)

    x = mels.astype(jnp.bfloat16)                       # MXU consumes bf16 anyway
    if B != B0:
        x = jnp.pad(x, ((0, B - B0), (0, 0), (0, 0)))
    x_tm = jnp.transpose(x, (1, 0, 2))                  # [T, B, F] one-time, small relayout

    # Weight prep: (in, 4H) layout, bf16 for the MXU; biases pre-summed (b_ih + b_hh), f32.
    flat_in = []
    for layer in range(NUM_LAYERS):
        p = params["lstm"][layer]
        flat_in.append(jnp.transpose(p["w_ih"]).astype(jnp.bfloat16))   # [Fin, 4H]
        flat_in.append(jnp.transpose(p["w_hh"]).astype(jnp.bfloat16))   # [H, 4H]
        flat_in.append((p["b_ih"] + p["b_hh"]).reshape(1, 4 * H).astype(jnp.float32))
    wlin = jnp.transpose(params["linear"]["w"]).astype(jnp.bfloat16)    # [H, H]
    blin = params["linear"]["b"].reshape(1, H).astype(jnp.float32)
    weights = flat_in + [wlin, blin]

    n_blocks = B // Bb

    def _const_spec(a):   # all weights/biases are 2-D; same block every grid step
        return pl.BlockSpec(tuple(a.shape), lambda i: (0, 0))

    in_specs = ([pl.BlockSpec((T, Bb, F), lambda i: (0, i, 0))]
                + [_const_spec(a) for a in weights])
    out_specs = pl.BlockSpec((Bb, H), lambda i: (i, 0))

    # VMEM budget: double-buffered weights + x/out blocks, plus gate & state scratch.
    bytes_weights = sum(int(a.size) * a.dtype.itemsize for a in weights)
    resident = (2 * bytes_weights
                + 2 * T * Bb * F * 2          # bf16 input block (double buffered)
                + T * Bb * 4 * H * 2          # bf16 inter-layer gate scratch
                + 2 * Bb * H * 4              # h, c state
                + 2 * Bb * H * 4)             # output block (double buffered)
    vmem_limit = int(min(max(resident + (8 << 20), 32 << 20), vmem_cap - (8 << 20)))

    out = pl.pallas_call(
        _voice_encoder_kernel,
        out_shape=jax.ShapeDtypeStruct((B, H), jnp.float32),
        grid=(n_blocks,),
        in_specs=in_specs,
        out_specs=out_specs,
        scratch_shapes=[
            pltpu.VMEM((T, Bb, 4 * H), jnp.bfloat16),   # inter-layer gate buffer
            pltpu.VMEM((Bb, H), jnp.float32),           # h
            pltpu.VMEM((Bb, H), jnp.float32),           # c
        ],
        compiler_params=pltpu.CompilerParams(
            dimension_semantics=("parallel",),           # batch blocks are independent
            vmem_limit_bytes=vmem_limit,
        ),
    )(x_tm, *weights)
    return out[:B0]


# ----------------------------------------------------------------------------
# Pure-JAX f32 reference (matches PyTorch VoiceEncoder.forward semantics)
# ----------------------------------------------------------------------------
def voice_encoder_reference(mels, params):
    x = mels.astype(jnp.float32)
    Bsz, T, _ = x.shape
    seq = x
    for layer in range(NUM_LAYERS):
        p = params["lstm"][layer]
        w_ih = p["w_ih"].astype(jnp.float32)
        w_hh = p["w_hh"].astype(jnp.float32)
        b = (p["b_ih"] + p["b_hh"]).astype(jnp.float32)
        h = jnp.zeros((Bsz, HIDDEN), jnp.float32)
        c = jnp.zeros((Bsz, HIDDEN), jnp.float32)
        outs = []
        for t in range(T):
            gates = seq[:, t, :] @ w_ih.T + h @ w_hh.T + b
            i_g = jax.nn.sigmoid(gates[:, 0 * HIDDEN:1 * HIDDEN])
            f_g = jax.nn.sigmoid(gates[:, 1 * HIDDEN:2 * HIDDEN])
            g_g = jnp.tanh(gates[:, 2 * HIDDEN:3 * HIDDEN])
            o_g = jax.nn.sigmoid(gates[:, 3 * HIDDEN:4 * HIDDEN])
            c = f_g * c + i_g * g_g
            h = o_g * jnp.tanh(c)
            outs.append(h)
        seq = jnp.stack(outs, axis=1)
    z = seq[:, -1, :] @ params["linear"]["w"].astype(jnp.float32).T + params["linear"]["b"]
    z = jnp.maximum(z, 0.0)
    return z / jnp.linalg.norm(z, axis=1, keepdims=True)


# ----------------------------------------------------------------------------
# Deterministic synthetic parameter init (shapes match nn.LSTM(40, 256, 3) + Linear(256, 256))
# ----------------------------------------------------------------------------
def init_params(key):
    params = {"lstm": [], "linear": {}}
    scale = 1.0 / jnp.sqrt(jnp.float32(HIDDEN))
    for layer in range(NUM_LAYERS):
        fin = MEL_CHANNELS if layer == 0 else HIDDEN
        key, k1, k2, k3, k4 = jax.random.split(key, 5)
        params["lstm"].append({
            "w_ih": jax.random.uniform(k1, (4 * HIDDEN, fin), jnp.float32, -scale, scale),
            "w_hh": jax.random.uniform(k2, (4 * HIDDEN, HIDDEN), jnp.float32, -scale, scale),
            "b_ih": jax.random.uniform(k3, (4 * HIDDEN,), jnp.float32, -scale, scale),
            "b_hh": jax.random.uniform(k4, (4 * HIDDEN,), jnp.float32, -scale, scale),
        })
    key, k1, k2 = jax.random.split(key, 3)
    params["linear"]["w"] = jax.random.uniform(k1, (HIDDEN, HIDDEN), jnp.float32, -scale, scale)
    params["linear"]["b"] = jax.random.uniform(k2, (HIDDEN,), jnp.float32, -scale, scale)
    return params


if __name__ == "__main__":
    key = jax.random.PRNGKey(0)
    key, pkey, xkey = jax.random.split(key, 3)
    params = init_params(pkey)

    B, T, F = 2, 8, MEL_CHANNELS
    mels = jax.random.normal(xkey, (B, T, F), jnp.float32)

    embeds = jax.block_until_ready(voice_encoder_forward(mels, params))
    assert embeds.shape == (B, HIDDEN)

    # Rows must be (approximately) unit-norm after the in-kernel normalization.
    row_norms = jnp.linalg.norm(embeds, axis=1)
    assert bool(jnp.all(jnp.abs(row_norms - 1.0) < 1e-3)), row_norms

    # Agreement with the pure-f32 reference (bf16 MXU operands => loose cosine tolerance).
    ref = voice_encoder_reference(mels, params)
    cos = jnp.sum(embeds * ref, axis=1)
    assert bool(jnp.all(cos > 0.99)), cos

    print("KERNEL_OK")
</pallas_src>

<mosaic_0001>
module attributes {stable_mosaic.version = 11 : i64} {
  func.func @_voice_encoder_kernel(%arg0: i32, %arg1: memref<8x8x40xbf16, #tpu.memory_space<vmem>>, %arg2: memref<40x1024xbf16, #tpu.memory_space<vmem>>, %arg3: memref<256x1024xbf16, #tpu.memory_space<vmem>>, %arg4: memref<1x1024xf32, #tpu.memory_space<vmem>>, %arg5: memref<256x1024xbf16, #tpu.memory_space<vmem>>, %arg6: memref<256x1024xbf16, #tpu.memory_space<vmem>>, %arg7: memref<1x1024xf32, #tpu.memory_space<vmem>>, %arg8: memref<256x1024xbf16, #tpu.memory_space<vmem>>, %arg9: memref<256x1024xbf16, #tpu.memory_space<vmem>>, %arg10: memref<1x1024xf32, #tpu.memory_space<vmem>>, %arg11: memref<256x256xbf16, #tpu.memory_space<vmem>>, %arg12: memref<1x256xf32, #tpu.memory_space<vmem>>, %arg13: memref<8x256xf32, #tpu.memory_space<vmem>>, %arg14: memref<8x8x1024xbf16, #tpu.memory_space<vmem>>, %arg15: memref<8x256xf32, #tpu.memory_space<vmem>>, %arg16: memref<8x256xf32, #tpu.memory_space<vmem>>) attributes {dimension_semantics = [#tpu.dimension_semantics<parallel>], iteration_bounds = array<i64: 1>, scalar_prefetch = 0 : i64, scratch_operands = 3 : i64, tpu.core_type = #tpu.core_type<tc>, window_params = [{transform_indices = @transform_0, window_bounds = array<i64: 8, 8, 40>}, {pipeline_mode = #tpu.pipeline_mode<synchronous>, transform_indices = @transform_1, window_bounds = array<i64: 40, 1024>}, {pipeline_mode = #tpu.pipeline_mode<synchronous>, transform_indices = @transform_2, window_bounds = array<i64: 256, 1024>}, {pipeline_mode = #tpu.pipeline_mode<synchronous>, transform_indices = @transform_3, window_bounds = array<i64: 1, 1024>}, {pipeline_mode = #tpu.pipeline_mode<synchronous>, transform_indices = @transform_4, window_bounds = array<i64: 256, 1024>}, {pipeline_mode = #tpu.pipeline_mode<synchronous>, transform_indices = @transform_5, window_bounds = array<i64: 256, 1024>}, {pipeline_mode = #tpu.pipeline_mode<synchronous>, transform_indices = @transform_6, window_bounds = array<i64: 1, 1024>}, {pipeline_mode = #tpu.pipeline_mode<synchronous>, transform_indices = @transform_7, window_bounds = array<i64: 256, 1024>}, {pipeline_mode = #tpu.pipeline_mode<synchronous>, transform_indices = @transform_8, window_bounds = array<i64: 256, 1024>}, {pipeline_mode = #tpu.pipeline_mode<synchronous>, transform_indices = @transform_9, window_bounds = array<i64: 1, 1024>}, {pipeline_mode = #tpu.pipeline_mode<synchronous>, transform_indices = @transform_10, window_bounds = array<i64: 256, 256>}, {pipeline_mode = #tpu.pipeline_mode<synchronous>, transform_indices = @transform_11, window_bounds = array<i64: 1, 256>}, {transform_indices = @transform_12, window_bounds = array<i64: 8, 256>}]} {
    %cst = arith.constant 0.000000e+00 : f32
    %0 = vector.broadcast %cst : f32 to vector<8x256xf32>
    %c0 = arith.constant 0 : index
    %c0_0 = arith.constant 0 : index
    %1 = vector.load %arg15[%c0, %c0_0] : memref<8x256xf32, #tpu.memory_space<vmem>>, vector<8x256xf32>
    tpu.vector_store %arg15[%c0, %c0_0], %0 {strides = array<i32>} : memref<8x256xf32, #tpu.memory_space<vmem>>, vector<8x256xf32>,
    %cst_1 = arith.constant 0.000000e+00 : f32
    %2 = vector.broadcast %cst_1 : f32 to vector<8x256xf32>
    %c0_2 = arith.constant 0 : index
    %c0_3 = arith.constant 0 : index
    %3 = vector.load %arg16[%c0_2, %c0_3] : memref<8x256xf32, #tpu.memory_space<vmem>>, vector<8x256xf32>
    tpu.vector_store %arg16[%c0_2, %c0_3], %2 {strides = array<i32>} : memref<8x256xf32, #tpu.memory_space<vmem>>, vector<8x256xf32>,
    %c0_i32 = arith.constant 0 : i32
    %c8_i32 = arith.constant 8 : i32
    %4 = arith.addi %c0_i32, %c8_i32 : i32
    %c1_i32 = arith.constant 1 : i32
    scf.for %arg17 = %c0_i32 to %4 step %c1_i32  : i32 {
      %33 = arith.index_cast %arg17 : i32 to index
      %c0_37 = arith.constant 0 : index
      %c0_38 = arith.constant 0 : index
      %34 = vector.load %arg1[%33, %c0_37, %c0_38] : memref<8x8x40xbf16, #tpu.memory_space<vmem>>, vector<1x8x40xbf16>
      %35 = vector.shape_cast %34 : vector<1x8x40xbf16> to vector<8x40xbf16>
      %c0_39 = arith.constant 0 : index
      %c0_40 = arith.constant 0 : index
      %36 = vector.load %arg2[%c0_39, %c0_40] : memref<40x1024xbf16, #tpu.memory_space<vmem>>, vector<40x1024xbf16>
      %cst_41 = arith.constant dense<0.000000e+00> : vector<8x1024xf32>
      %37 = tpu.matmul %35, %36, %cst_41 {dimension_numbers = #tpu.dot_dimension_numbers<[1], [0], [0], [1], [0, 0, 1, 1], [], []>} : vector<8x40xbf16>, vector<40x1024xbf16>, vector<8x1024xf32> -> vector<8x1024xf32>
      %c0_42 = arith.constant 0 : index
      %c0_43 = arith.constant 0 : index
      %38 = vector.load %arg4[%c0_42, %c0_43] : memref<1x1024xf32, #tpu.memory_space<vmem>>, vector<1x1024xf32>
      %39 = vector.broadcast %38 : vector<1x1024xf32> to vector<8x1024xf32>
      %40 = arith.addf %37, %39 : vector<8x1024xf32>
      %c0_44 = arith.constant 0 : index
      %c0_45 = arith.constant 0 : index
      %41 = vector.load %arg15[%c0_44, %c0_45] : memref<8x256xf32, #tpu.memory_space<vmem>>, vector<8x256xf32>
      %42 = arith.truncf %41 : vector<8x256xf32> to vector<8x256xbf16>
      %c0_46 = arith.constant 0 : index
      %c0_47 = arith.constant 0 : index
      %43 = vector.load %arg3[%c0_46, %c0_47] : memref<256x1024xbf16, #tpu.memory_space<vmem>>, vector<256x1024xbf16>
      %cst_48 = arith.constant dense<0.000000e+00> : vector<8x1024xf32>
      %44 = tpu.matmul %42, %43, %cst_48 {dimension_numbers = #tpu.dot_dimension_numbers<[1], [0], [0], [1], [0, 0, 1, 1], [], []>} : vector<8x256xbf16>, vector<256x1024xbf16>, vector<8x1024xf32> -> vector<8x1024xf32>
      %45 = arith.addf %40, %44 : vector<8x1024xf32>
      %46 = vector.extract_strided_slice %45 {offsets = [0, 256], sizes = [8, 256], strides = [1, 1]} : vector<8x1024xf32> to vector<8x256xf32>
      %cst_49 = arith.constant 5.000000e-01 : f32
      %47 = vector.broadcast %cst_49 : f32 to vector<8x256xf32>
      %48 = arith.mulf %47, %46 : vector<8x256xf32>
      %49 = math.tanh %48 : vector<8x256xf32>
      %cst_50 = arith.constant 5.000000e-01 : f32
      %50 = vector.broadcast %cst_50 : f32 to vector<8x256xf32>
      %51 = arith.mulf %50, %49 : vector<8x256xf32>
      %cst_51 = arith.constant 5.000000e-01 : f32
      %52 = vector.broadcast %cst_51 : f32 to vector<8x256xf32>
      %53 = arith.addf %51, %52 : vector<8x256xf32>
      %c0_52 = arith.constant 0 : index
      %c0_53 = arith.constant 0 : index
      %54 = vector.load %arg16[%c0_52, %c0_53] : memref<8x256xf32, #tpu.memory_space<vmem>>, vector<8x256xf32>
      %55 = arith.mulf %53, %54 : vector<8x256xf32>
      %56 = vector.extract_strided_slice %45 {offsets = [0, 0], sizes = [8, 256], strides = [1, 1]} : vector<8x1024xf32> to vector<8x256xf32>
      %cst_54 = arith.constant 5.000000e-01 : f32
      %57 = vector.broadcast %cst_54 : f32 to vector<8x256xf32>
      %58 = arith.mulf %57, %56 : vector<8x256xf32>
      %59 = math.tanh %58 : vector<8x256xf32>
      %cst_55 = arith.constant 5.000000e-01 : f32
      %60 = vector.broadcast %cst_55 : f32 to vector<8x256xf32>
      %61 = arith.mulf %60, %59 : vector<8x256xf32>
      %cst_56 = arith.constant 5.000000e-01 : f32
      %62 = vector.broadcast %cst_56 : f32 to vector<8x256xf32>
      %63 = arith.addf %61, %62 : vector<8x256xf32>
      %64 = vector.extract_strided_slice %45 {offsets = [0, 512], sizes = [8, 256], strides = [1, 1]} : vector<8x1024xf32> to vector<8x256xf32>
      %65 = math.tanh %64 : vector<8x256xf32>
      %66 = arith.mulf %63, %65 : vector<8x256xf32>
      %67 = arith.addf %55, %66 : vector<8x256xf32>
      %68 = vector.extract_strided_slice %45 {offsets = [0, 768], sizes = [8, 256], strides = [1, 1]} : vector<8x1024xf32> to vector<8x256xf32>
      %cst_57 = arith.constant 5.000000e-01 : f32
      %69 = vector.broadcast %cst_57 : f32 to vector<8x256xf32>
      %70 = arith.mulf %69, %68 : vector<8x256xf32>
      %71 = math.tanh %70 : vector<8x256xf32>
      %cst_58 = arith.constant 5.000000e-01 : f32
      %72 = vector.broadcast %cst_58 : f32 to vector<8x256xf32>
      %73 = arith.mulf %72, %71 : vector<8x256xf32>
      %cst_59 = arith.constant 5.000000e-01 : f32
      %74 = vector.broadcast %cst_59 : f32 to vector<8x256xf32>
      %75 = arith.addf %73, %74 : vector<8x256xf32>
      %76 = math.tanh %67 : vector<8x256xf32>
      %77 = arith.mulf %75, %76 : vector<8x256xf32>
      %c0_60 = arith.constant 0 : index
      %c0_61 = arith.constant 0 : index
      %78 = vector.load %arg16[%c0_60, %c0_61] : memref<8x256xf32, #tpu.memory_space<vmem>>, vector<8x256xf32>
      tpu.vector_store %arg16[%c0_60, %c0_61], %67 {strides = array<i32>} : memref<8x256xf32, #tpu.memory_space<vmem>>, vector<8x256xf32>,
      %c0_62 = arith.constant 0 : index
      %c0_63 = arith.constant 0 : index
      %79 = vector.load %arg15[%c0_62, %c0_63] : memref<8x256xf32, #tpu.memory_space<vmem>>, vector<8x256xf32>
      tpu.vector_store %arg15[%c0_62, %c0_63], %77 {strides = array<i32>} : memref<8x256xf32, #tpu.memory_space<vmem>>, vector<8x256xf32>,
      %80 = arith.truncf %77 : vector<8x256xf32> to vector<8x256xbf16>
      %c0_64 = arith.constant 0 : index
      %c0_65 = arith.constant 0 : index
      %81 = vector.load %arg5[%c0_64, %c0_65] : memref<256x1024xbf16, #tpu.memory_space<vmem>>, vector<256x1024xbf16>
      %cst_66 = arith.constant dense<0.000000e+00> : vector<8x1024xf32>
      %82 = tpu.matmul %80, %81, %cst_66 {dimension_numbers = #tpu.dot_dimension_numbers<[1], [0], [0], [1], [0, 0, 1, 1], [], []>} : vector<8x256xbf16>, vector<256x1024xbf16>, vector<8x1024xf32> -> vector<8x1024xf32>
      %c0_67 = arith.constant 0 : index
      %c0_68 = arith.constant 0 : index
      %83 = vector.load %arg7[%c0_67, %c0_68] : memref<1x1024xf32, #tpu.memory_space<vmem>>, vector<1x1024xf32>
      %84 = vector.broadcast %83 : vector<1x1024xf32> to vector<8x1024xf32>
      %85 = arith.addf %82, %84 : vector<8x1024xf32>
      %86 = arith.truncf %85 : vector<8x1024xf32> to vector<8x1024xbf16>
      %87 = arith.index_cast %arg17 : i32 to index
      %c0_69 = arith.constant 0 : index
      %c0_70 = arith.constant 0 : index
      %88 = vector.load %arg14[%87, %c0_69, %c0_70] : memref<8x8x1024xbf16, #tpu.memory_space<vmem>>, vector<1x8x1024xbf16>
      %89 = vector.shape_cast %88 : vector<1x8x1024xbf16> to vector<8x1024xbf16>
      %90 = vector.shape_cast %86 : vector<8x1024xbf16> to vector<1x8x1024xbf16>
      tpu.vector_store %arg14[%87, %c0_69, %c0_70], %90 {strides = array<i32>} : memref<8x8x1024xbf16, #tpu.memory_space<vmem>>, vector<1x8x1024xbf16>,
    }
    %c8_i32_4 = arith.constant 8 : i32
    %cst_5 = arith.constant 0.000000e+00 : f32
    %5 = vector.broadcast %cst_5 : f32 to vector<8x256xf32>
    %c0_6 = arith.constant 0 : index
    %c0_7 = arith.constant 0 : index
    %6 = vector.load %arg15[%c0_6, %c0_7] : memref<8x256xf32, #tpu.memory_space<vmem>>, vector<8x256xf32>
    tpu.vector_store %arg15[%c0_6, %c0_7], %5 {strides = array<i32>} : memref<8x256xf32, #tpu.memory_space<vmem>>, vector<8x256xf32>,
    %cst_8 = arith.constant 0.000000e+00 : f32
    %7 = vector.broadcast %cst_8 : f32 to vector<8x256xf32>
    %c0_9 = arith.constant 0 : index
    %c0_10 = arith.constant 0 : index
    %8 = vector.load %arg16[%c0_9, %c0_10] : memref<8x256xf32, #tpu.memory_space<vmem>>, vector<8x256xf32>
    tpu.vector_store %arg16[%c0_9, %c0_10], %7 {strides = array<i32>} : memref<8x256xf32, #tpu.memory_space<vmem>>, vector<8x256xf32>,
    %c0_i32_11 = arith.constant 0 : i32
    %c8_i32_12 = arith.constant 8 : i32
    %9 = arith.addi %c0_i32_11, %c8_i32_12 : i32
    %c1_i32_13 = arith.constant 1 : i32
    scf.for %arg17 = %c0_i32_11 to %9 step %c1_i32_13  : i32 {
      %33 = arith.index_cast %arg17 : i32 to index
      %c0_37 = arith.constant 0 : index
      %c0_38 = arith.constant 0 : index
      %34 = vector.load %arg14[%33, %c0_37, %c0_38] : memref<8x8x1024xbf16, #tpu.memory_space<vmem>>, vector<1x8x1024xbf16>
      %35 = vector.shape_cast %34 : vector<1x8x1024xbf16> to vector<8x1024xbf16>
      %36 = arith.extf %35 : vector<8x1024xbf16> to vector<8x1024xf32>
      %c0_39 = arith.constant 0 : index
      %c0_40 = arith.constant 0 : index
      %37 = vector.load %arg15[%c0_39, %c0_40] : memref<8x256xf32, #tpu.memory_space<vmem>>, vector<8x256xf32>
      %38 = arith.truncf %37 : vector<8x256xf32> to vector<8x256xbf16>
      %c0_41 = arith.constant 0 : index
      %c0_42 = arith.constant 0 : index
      %39 = vector.load %arg6[%c0_41, %c0_42] : memref<256x1024xbf16, #tpu.memory_space<vmem>>, vector<256x1024xbf16>
      %cst_43 = arith.constant dense<0.000000e+00> : vector<8x1024xf32>
      %40 = tpu.matmul %38, %39, %cst_43 {dimension_numbers = #tpu.dot_dimension_numbers<[1], [0], [0], [1], [0, 0, 1, 1], [], []>} : vector<8x256xbf16>, vector<256x1024xbf16>, vector<8x1024xf32> -> vector<8x1024xf32>
      %41 = arith.addf %36, %40 : vector<8x1024xf32>
      %42 = vector.extract_strided_slice %41 {offsets = [0, 256], sizes = [8, 256], strides = [1, 1]} : vector<8x1024xf32> to vector<8x256xf32>
      %cst_44 = arith.constant 5.000000e-01 : f32
      %43 = vector.broadcast %cst_44 : f32 to vector<8x256xf32>
      %44 = arith.mulf %43, %42 : vector<8x256xf32>
      %45 = math.tanh %44 : vector<8x256xf32>
      %cst_45 = arith.constant 5.000000e-01 : f32
      %46 = vector.broadcast %cst_45 : f32 to vector<8x256xf32>
      %47 = arith.mulf %46, %45 : vector<8x256xf32>
      %cst_46 = arith.constant 5.000000e-01 : f32
      %48 = vector.broadcast %cst_46 : f32 to vector<8x256xf32>
      %49 = arith.addf %47, %48 : vector<8x256xf32>
      %c0_47 = arith.constant 0 : index
      %c0_48 = arith.constant 0 : index
      %50 = vector.load %arg16[%c0_47, %c0_48] : memref<8x256xf32, #tpu.memory_space<vmem>>, vector<8x256xf32>
      %51 = arith.mulf %49, %50 : vector<8x256xf32>
      %52 = vector.extract_strided_slice %41 {offsets = [0, 0], sizes = [8, 256], strides = [1, 1]} : vector<8x1024xf32> to vector<8x256xf32>
      %cst_49 = arith.constant 5.000000e-01 : f32
      %53 = vector.broadcast %cst_49 : f32 to vector<8x256xf32>
      %54 = arith.mulf %53, %52 : vector<8x256xf32>
      %55 = math.tanh %54 : vector<8x256xf32>
      %cst_50 = arith.constant 5.000000e-01 : f32
      %56 = vector.broadcast %cst_50 : f32 to vector<8x256xf32>
      %57 = arith.mulf %56, %55 : vector<8x256xf32>
      %cst_51 = arith.constant 5.000000e-01 : f32
      %58 = vector.broadcast %cst_51 : f32 to vector<8x256xf32>
      %59 = arith.addf %57, %58 : vector<8x256xf32>
      %60 = vector.extract_strided_slice %41 {offsets = [0, 512], sizes = [8, 256], strides = [1, 1]} : vector<8x1024xf32> to vector<8x256xf32>
      %61 = math.tanh %60 : vector<8x256xf32>
      %62 = arith.mulf %59, %61 : vector<8x256xf32>
      %63 = arith.addf %51, %62 : vector<8x256xf32>
      %64 = vector.extract_strided_slice %41 {offsets = [0, 768], sizes = [8, 256], strides = [1, 1]} : vector<8x1024xf32> to vector<8x256xf32>
      %cst_52 = arith.constant 5.000000e-01 : f32
      %65 = vector.broadcast %cst_52 : f32 to vector<8x256xf32>
      %66 = arith.mulf %65, %64 : vector<8x256xf32>
      %67 = math.tanh %66 : vector<8x256xf32>
      %cst_53 = arith.constant 5.000000e-01 : f32
      %68 = vector.broadcast %cst_53 : f32 to vector<8x256xf32>
      %69 = arith.mulf %68, %67 : vector<8x256xf32>
      %cst_54 = arith.constant 5.000000e-01 : f32
      %70 = vector.broadcast %cst_54 : f32 to vector<8x256xf32>
      %71 = arith.addf %69, %70 : vector<8x256xf32>
      %72 = math.tanh %63 : vector<8x256xf32>
      %73 = arith.mulf %71, %72 : vector<8x256xf32>
      %c0_55 = arith.constant 0 : index
      %c0_56 = arith.constant 0 : index
      %74 = vector.load %arg16[%c0_55, %c0_56] : memref<8x256xf32, #tpu.memory_space<vmem>>, vector<8x256xf32>
      tpu.vector_store %arg16[%c0_55, %c0_56], %63 {strides = array<i32>} : memref<8x256xf32, #tpu.memory_space<vmem>>, vector<8x256xf32>,
      %c0_57 = arith.constant 0 : index
      %c0_58 = arith.constant 0 : index
      %75 = vector.load %arg15[%c0_57, %c0_58] : memref<8x256xf32, #tpu.memory_space<vmem>>, vector<8x256xf32>
      tpu.vector_store %arg15[%c0_57, %c0_58], %73 {strides = array<i32>} : memref<8x256xf32, #tpu.memory_space<vmem>>, vector<8x256xf32>,
      %76 = arith.truncf %73 : vector<8x256xf32> to vector<8x256xbf16>
      %c0_59 = arith.constant 0 : index
      %c0_60 = arith.constant 0 : index
      %77 = vector.load %arg8[%c0_59, %c0_60] : memref<256x1024xbf16, #tpu.memory_space<vmem>>, vector<256x1024xbf16>
      %cst_61 = arith.constant dense<0.000000e+00> : vector<8x1024xf32>
      %78 = tpu.matmul %76, %77, %cst_61 {dimension_numbers = #tpu.dot_dimension_numbers<[1], [0], [0], [1], [0, 0, 1, 1], [], []>} : vector<8x256xbf16>, vector<256x1024xbf16>, vector<8x1024xf32> -> vector<8x1024xf32>
      %c0_62 = arith.constant 0 : index
      %c0_63 = arith.constant 0 : index
      %79 = vector.load %arg10[%c0_62, %c0_63] : memref<1x1024xf32, #tpu.memory_space<vmem>>, vector<1x1024xf32>
      %80 = vector.broadcast %79 : vector<1x1024xf32> to vector<8x1024xf32>
      %81 = arith.addf %78, %80 : vector<8x1024xf32>
      %82 = arith.truncf %81 : vector<8x1024xf32> to vector<8x1024xbf16>
      %83 = arith.index_cast %arg17 : i32 to index
      %c0_64 = arith.constant 0 : index
      %c0_65 = arith.constant 0 : index
      %84 = vector.load %arg14[%83, %c0_64, %c0_65] : memref<8x8x1024xbf16, #tpu.memory_space<vmem>>, vector<1x8x1024xbf16>
      %85 = vector.shape_cast %84 : vector<1x8x1024xbf16> to vector<8x1024xbf16>
      %86 = vector.shape_cast %82 : vector<8x1024xbf16> to vector<1x8x1024xbf16>
      tpu.vector_store %arg14[%83, %c0_64, %c0_65], %86 {strides = array<i32>} : memref<8x8x1024xbf16, #tpu.memory_space<vmem>>, vector<1x8x1024xbf16>,
    }
    %c8_i32_14 = arith.constant 8 : i32
    %cst_15 = arith.constant 0.000000e+00 : f32
    %10 = vector.broadcast %cst_15 : f32 to vector<8x256xf32>
    %c0_16 = arith.constant 0 : index
    %c0_17 = arith.constant 0 : index
    %11 = vector.load %arg15[%c0_16, %c0_17] : memref<8x256xf32, #tpu.memory_space<vmem>>, vector<8x256xf32>
    tpu.vector_store %arg15[%c0_16, %c0_17], %10 {strides = array<i32>} : memref<8x256xf32, #tpu.memory_space<vmem>>, vector<8x256xf32>,
    %cst_18 = arith.constant 0.000000e+00 : f32
    %12 = vector.broadcast %cst_18 : f32 to vector<8x256xf32>
    %c0_19 = arith.constant 0 : index
    %c0_20 = arith.constant 0 : index
    %13 = vector.load %arg16[%c0_19, %c0_20] : memref<8x256xf32, #tpu.memory_space<vmem>>, vector<8x256xf32>
    tpu.vector_store %arg16[%c0_19, %c0_20], %12 {strides = array<i32>} : memref<8x256xf32, #tpu.memory_space<vmem>>, vector<8x256xf32>,
    %c0_i32_21 = arith.constant 0 : i32
    %c8_i32_22 = arith.constant 8 : i32
    %14 = arith.addi %c0_i32_21, %c8_i32_22 : i32
    %c1_i32_23 = arith.constant 1 : i32
    scf.for %arg17 = %c0_i32_21 to %14 step %c1_i32_23  : i32 {
      %33 = arith.index_cast %arg17 : i32 to index
      %c0_37 = arith.constant 0 : index
      %c0_38 = arith.constant 0 : index
      %34 = vector.load %arg14[%33, %c0_37, %c0_38] : memref<8x8x1024xbf16, #tpu.memory_space<vmem>>, vector<1x8x1024xbf16>
      %35 = vector.shape_cast %34 : vector<1x8x1024xbf16> to vector<8x1024xbf16>
      %36 = arith.extf %35 : vector<8x1024xbf16> to vector<8x1024xf32>
      %c0_39 = arith.constant 0 : index
      %c0_40 = arith.constant 0 : index
      %37 = vector.load %arg15[%c0_39, %c0_40] : memref<8x256xf32, #tpu.memory_space<vmem>>, vector<8x256xf32>
      %38 = arith.truncf %37 : vector<8x256xf32> to vector<8x256xbf16>
      %c0_41 = arith.constant 0 : index
      %c0_42 = arith.constant 0 : index
      %39 = vector.load %arg9[%c0_41, %c0_42] : memref<256x1024xbf16, #tpu.memory_space<vmem>>, vector<256x1024xbf16>
      %cst_43 = arith.constant dense<0.000000e+00> : vector<8x1024xf32>
      %40 = tpu.matmul %38, %39, %cst_43 {dimension_numbers = #tpu.dot_dimension_numbers<[1], [0], [0], [1], [0, 0, 1, 1], [], []>} : vector<8x256xbf16>, vector<256x1024xbf16>, vector<8x1024xf32> -> vector<8x1024xf32>
      %41 = arith.addf %36, %40 : vector<8x1024xf32>
      %42 = vector.extract_strided_slice %41 {offsets = [0, 256], sizes = [8, 256], strides = [1, 1]} : vector<8x1024xf32> to vector<8x256xf32>
      %cst_44 = arith.constant 5.000000e-01 : f32
      %43 = vector.broadcast %cst_44 : f32 to vector<8x256xf32>
      %44 = arith.mulf %43, %42 : vector<8x256xf32>
      %45 = math.tanh %44 : vector<8x256xf32>
      %cst_45 = arith.constant 5.000000e-01 : f32
      %46 = vector.broadcast %cst_45 : f32 to vector<8x256xf32>
      %47 = arith.mulf %46, %45 : vector<8x256xf32>
      %cst_46 = arith.constant 5.000000e-01 : f32
      %48 = vector.broadcast %cst_46 : f32 to vector<8x256xf32>
      %49 = arith.addf %47, %48 : vector<8x256xf32>
      %c0_47 = arith.constant 0 : index
      %c0_48 = arith.constant 0 : index
      %50 = vector.load %arg16[%c0_47, %c0_48] : memref<8x256xf32, #tpu.memory_space<vmem>>, vector<8x256xf32>
      %51 = arith.mulf %49, %50 : vector<8x256xf32>
      %52 = vector.extract_strided_slice %41 {offsets = [0, 0], sizes = [8, 256], strides = [1, 1]} : vector<8x1024xf32> to vector<8x256xf32>
      %cst_49 = arith.constant 5.000000e-01 : f32
      %53 = vector.broadcast %cst_49 : f32 to vector<8x256xf32>
      %54 = arith.mulf %53, %52 : vector<8x256xf32>
      %55 = math.tanh %54 : vector<8x256xf32>
      %cst_50 = arith.constant 5.000000e-01 : f32
      %56 = vector.broadcast %cst_50 : f32 to vector<8x256xf32>
      %57 = arith.mulf %56, %55 : vector<8x256xf32>
      %cst_51 = arith.constant 5.000000e-01 : f32
      %58 = vector.broadcast %cst_51 : f32 to vector<8x256xf32>
      %59 = arith.addf %57, %58 : vector<8x256xf32>
      %60 = vector.extract_strided_slice %41 {offsets = [0, 512], sizes = [8, 256], strides = [1, 1]} : vector<8x1024xf32> to vector<8x256xf32>
      %61 = math.tanh %60 : vector<8x256xf32>
      %62 = arith.mulf %59, %61 : vector<8x256xf32>
      %63 = arith.addf %51, %62 : vector<8x256xf32>
      %64 = vector.extract_strided_slice %41 {offsets = [0, 768], sizes = [8, 256], strides = [1, 1]} : vector<8x1024xf32> to vector<8x256xf32>
      %cst_52 = arith.constant 5.000000e-01 : f32
      %65 = vector.broadcast %cst_52 : f32 to vector<8x256xf32>
      %66 = arith.mulf %65, %64 : vector<8x256xf32>
      %67 = math.tanh %66 : vector<8x256xf32>
      %cst_53 = arith.constant 5.000000e-01 : f32
      %68 = vector.broadcast %cst_53 : f32 to vector<8x256xf32>
      %69 = arith.mulf %68, %67 : vector<8x256xf32>
      %cst_54 = arith.constant 5.000000e-01 : f32
      %70 = vector.broadcast %cst_54 : f32 to vector<8x256xf32>
      %71 = arith.addf %69, %70 : vector<8x256xf32>
      %72 = math.tanh %63 : vector<8x256xf32>
      %73 = arith.mulf %71, %72 : vector<8x256xf32>
      %c0_55 = arith.constant 0 : index
      %c0_56 = arith.constant 0 : index
      %74 = vector.load %arg16[%c0_55, %c0_56] : memref<8x256xf32, #tpu.memory_space<vmem>>, vector<8x256xf32>
      tpu.vector_store %arg16[%c0_55, %c0_56], %63 {strides = array<i32>} : memref<8x256xf32, #tpu.memory_space<vmem>>, vector<8x256xf32>,
      %c0_57 = arith.constant 0 : index
      %c0_58 = arith.constant 0 : index
      %75 = vector.load %arg15[%c0_57, %c0_58] : memref<8x256xf32, #tpu.memory_space<vmem>>, vector<8x256xf32>
      tpu.vector_store %arg15[%c0_57, %c0_58], %73 {strides = array<i32>} : memref<8x256xf32, #tpu.memory_space<vmem>>, vector<8x256xf32>,
    }
    %c8_i32_24 = arith.constant 8 : i32
    %c0_25 = arith.constant 0 : index
    %c0_26 = arith.constant 0 : index
    %15 = vector.load %arg15[%c0_25, %c0_26] : memref<8x256xf32, #tpu.memory_space<vmem>>, vector<8x256xf32>
    %16 = arith.truncf %15 : vector<8x256xf32> to vector<8x256xbf16>
    %c0_27 = arith.constant 0 : index
    %c0_28 = arith.constant 0 : index
    %17 = vector.load %arg11[%c0_27, %c0_28] : memref<256x256xbf16, #tpu.memory_space<vmem>>, vector<256x256xbf16>
    %cst_29 = arith.constant dense<0.000000e+00> : vector<8x256xf32>
    %18 = tpu.matmul %16, %17, %cst_29 {dimension_numbers = #tpu.dot_dimension_numbers<[1], [0], [0], [1], [0, 0, 1, 1], [], []>} : vector<8x256xbf16>, vector<256x256xbf16>, vector<8x256xf32> -> vector<8x256xf32>
    %c0_30 = arith.constant 0 : index
    %c0_31 = arith.constant 0 : index
    %19 = vector.load %arg12[%c0_30, %c0_31] : memref<1x256xf32, #tpu.memory_space<vmem>>, vector<1x256xf32>
    %20 = vector.broadcast %19 : vector<1x256xf32> to vector<8x256xf32>
    %21 = arith.addf %18, %20 : vector<8x256xf32>
    %cst_32 = arith.constant 0.000000e+00 : f32
    %22 = vector.broadcast %cst_32 : f32 to vector<8x256xf32>
    %23 = arith.maximumf %21, %22 : vector<8x256xf32>
    %24 = arith.mulf %23, %23 : vector<8x256xf32>
    %cst_33 = arith.constant dense<0.000000e+00> : vector<8xf32>
    %25 = vector.multi_reduction <add>, %24, %cst_33 [1] : vector<8x256xf32> to vector<8xf32>
    %26 = vector.shape_cast %25 : vector<8xf32> to vector<8x1xf32>
    %cst_34 = arith.constant 9.99999996E-13 : f32
    %27 = vector.broadcast %cst_34 : f32 to vector<8x1xf32>
    %28 = arith.addf %26, %27 : vector<8x1xf32>
    %29 = math.rsqrt %28 : vector<8x1xf32>
    %30 = vector.broadcast %29 : vector<8x1xf32> to vector<8x256xf32>
    %31 = arith.mulf %23, %30 : vector<8x256xf32>
    %c0_35 = arith.constant 0 : index
    %c0_36 = arith.constant 0 : index
    %32 = vector.load %arg13[%c0_35, %c0_36] : memref<8x256xf32, #tpu.memory_space<vmem>>, vector<8x256xf32>
    tpu.vector_store %arg13[%c0_35, %c0_36], %31 {strides = array<i32>} : memref<8x256xf32, #tpu.memory_space<vmem>>, vector<8x256xf32>,
    return
  }
  func.func @transform_0(%arg0: i32) -> (i32, i32, i32) {
    %c0_i32 = arith.constant 0 : i32
    %c0_i32_0 = arith.constant 0 : i32
    %c0_i32_1 = arith.constant 0 : i32
    return %c0_i32, %arg0, %c0_i32_0 : i32, i32, i32
  }
  func.func @transform_1(%arg0: i32) -> (i32, i32) {
    %c0_i32 = arith.constant 0 : i32
    %c0_i32_0 = arith.constant 0 : i32
    %c0_i32_1 = arith.constant 0 : i32
    return %c0_i32, %c0_i32_0 : i32, i32
  }
  func.func @transform_2(%arg0: i32) -> (i32, i32) {
    %c0_i32 = arith.constant 0 : i32
    %c0_i32_0 = arith.constant 0 : i32
    %c0_i32_1 = arith.constant 0 : i32
    return %c0_i32, %c0_i32_0 : i32, i32
  }
  func.func @transform_3(%arg0: i32) -> (i32, i32) {
    %c0_i32 = arith.constant 0 : i32
    %c0_i32_0 = arith.constant 0 : i32
    %c0_i32_1 = arith.constant 0 : i32
    return %c0_i32, %c0_i32_0 : i32, i32
  }
  func.func @transform_4(%arg0: i32) -> (i32, i32) {
    %c0_i32 = arith.constant 0 : i32
    %c0_i32_0 = arith.constant 0 : i32
    %c0_i32_1 = arith.constant 0 : i32
    return %c0_i32, %c0_i32_0 : i32, i32
  }
  func.func @transform_5(%arg0: i32) -> (i32, i32) {
    %c0_i32 = arith.constant 0 : i32
    %c0_i32_0 = arith.constant 0 : i32
    %c0_i32_1 = arith.constant 0 : i32
    return %c0_i32, %c0_i32_0 : i32, i32
  }
  func.func @transform_6(%arg0: i32) -> (i32, i32) {
    %c0_i32 = arith.constant 0 : i32
    %c0_i32_0 = arith.constant 0 : i32
    %c0_i32_1 = arith.constant 0 : i32
    return %c0_i32, %c0_i32_0 : i32, i32
  }
  func.func @transform_7(%arg0: i32) -> (i32, i32) {
    %c0_i32 = arith.constant 0 : i32
    %c0_i32_0 = arith.constant 0 : i32
    %c0_i32_1 = arith.constant 0 : i32
    return %c0_i32, %c0_i32_0 : i32, i32
  }
  func.func @transform_8(%arg0: i32) -> (i32, i32) {
    %c0_i32 = arith.constant 0 : i32
    %c0_i32_0 = arith.constant 0 : i32
    %c0_i32_1 = arith.constant 0 : i32
    return %c0_i32, %c0_i32_0 : i32, i32
  }
  func.func @transform_9(%arg0: i32) -> (i32, i32) {
    %c0_i32 = arith.constant 0 : i32
    %c0_i32_0 = arith.constant 0 : i32
    %c0_i32_1 = arith.constant 0 : i32
    return %c0_i32, %c0_i32_0 : i32, i32
  }
  func.func @transform_10(%arg0: i32) -> (i32, i32) {
    %c0_i32 = arith.constant 0 : i32
    %c0_i32_0 = arith.constant 0 : i32
    %c0_i32_1 = arith.constant 0 : i32
    return %c0_i32, %c0_i32_0 : i32, i32
  }
  func.func @transform_11(%arg0: i32) -> (i32, i32) {
    %c0_i32 = arith.constant 0 : i32
    %c0_i32_0 = arith.constant 0 : i32
    %c0_i32_1 = arith.constant 0 : i32
    return %c0_i32, %c0_i32_0 : i32, i32
  }
  func.func @transform_12(%arg0: i32) -> (i32, i32) {
    %c0_i32 = arith.constant 0 : i32
    %c0_i32_0 = arith.constant 0 : i32
    return %arg0, %c0_i32 : i32, i32
  }
}

</mosaic_0001>

<llo_original>
// kernel: tpu_custom_call.1
$region0: #{tpu_custom_call.1}
  #allocation0 [shape = 'u32[]', space=smem, size = 0x4, offset = 0x4, fixed_abs, tag = 'smem constant byte address 0x4 - core index']
  #allocation1 [shape = 'u32[144,128]{1,0:T(1,128)}', space=vmem, size = 0x12000, scoped, tag = 'internal scratch']
  #allocation2 [shape = 'bf16[8,8,1024]{2,1,0:T(8,128)(2,1)}', space=vmem, size = 0x20000, scoped, tag = 'scratch operand']
  #allocation3 [shape = 'f32[8,256]{1,0:T(8,128)}', space=vmem, size = 0x2000, scoped, tag = 'scratch operand']
  #allocation4 [shape = 'f32[8,256]{1,0:T(8,128)}', space=vmem, size = 0x2000, scoped, tag = 'scratch operand']
  %s0 = inlined_call_operand.hbm [shape: bf16[8,8,40], index: 0, kind: input, shape index: {}]
  %s1 = inlined_call_operand.hbm [shape: bf16[40,1024], index: 1, kind: input, shape index: {}]
  %s2 = inlined_call_operand.hbm [shape: bf16[256,1024], index: 2, kind: input, shape index: {}]
  %s3 = inlined_call_operand.hbm [shape: f32[1,1024], index: 3, kind: input, shape index: {}]
  %s4 = inlined_call_operand.hbm [shape: bf16[256,1024], index: 4, kind: input, shape index: {}]
  %s5 = inlined_call_operand.hbm [shape: bf16[256,1024], index: 5, kind: input, shape index: {}]
  %s6 = inlined_call_operand.vmem [shape: f32[1,1024], index: 6, kind: input, shape index: {}]
  %s7 = inlined_call_operand.hbm [shape: bf16[256,1024], index: 7, kind: input, shape index: {}]
  %s8 = inlined_call_operand.hbm [shape: bf16[256,1024], index: 8, kind: input, shape index: {}]
  %s9 = inlined_call_operand.vmem [shape: f32[1,1024], index: 9, kind: input, shape index: {}]
  %s10 = inlined_call_operand.hbm [shape: bf16[256,256], index: 10, kind: input, shape index: {}]
  %s11 = inlined_call_operand.vmem [shape: f32[1,256], index: 11, kind: input, shape index: {}]
  %s12 = inlined_call_operand.hbm [shape: f32[8,256], index: 12, kind: output, shape index: {}]
  %s13 = sld [smem:[#allocation0]]
  $region115: #{tpu_custom_call.1} parent=0
    _
  %s15 = ssub.s32 1, %s13
  %s16 = scalar_select 0, %s15, %s13
  $region1: #{tpu_custom_call.1} parent=0
    #allocation5 [shape = 'u8[16384]{0}', space=vmem, size = 0x4000, scoped, tag = 'input window, operand 0, single buffered']
    #allocation6 [shape = 's32[1]{0}', space=sflag, size = 0x4, scoped, tag = 'scoped memory for tpu_custom_call.1']
    #allocation7 [shape = 's32[1]{0}', space=sflag, size = 0x4, scoped, tag = 'scoped memory for tpu_custom_call.1']
    #allocation8 [shape = 'u8[81920]{0}', space=vmem, size = 0x14000, scoped, tag = 'input window, operand 1, single buffered']
    #allocation9 [shape = 's32[1]{0}', space=sflag, size = 0x4, scoped, tag = 'scoped memory for tpu_custom_call.1']
    #allocation10 [shape = 'u8[524288]{0}', space=vmem, size = 0x80000, scoped, tag = 'input window, operand 2, single buffered']
    #allocation11 [shape = 'u8[4096]{0}', space=vmem, size = 0x1000, scoped, tag = 'input window, operand 3, single buffered']
    #allocation12 [shape = 's32[1]{0}', space=sflag, size = 0x4, scoped, tag = 'scoped memory for tpu_custom_call.1']
    #allocation13 [shape = 'u8[524288]{0}', space=vmem, size = 0x80000, scoped, tag = 'input window, operand 4, single buffered']
    #allocation14 [shape = 'u8[524288]{0}', space=vmem, size = 0x80000, scoped, tag = 'input window, operand 5, single buffered']
    #allocation15 [shape = 's32[1]{0}', space=sflag, size = 0x4, scoped, tag = 'scoped memory for tpu_custom_call.1']
    #allocation16 [shape = 'u8[524288]{0}', space=vmem, size = 0x80000, scoped, tag = 'input window, operand 7, single buffered']
    #allocation17 [shape = 'u8[524288]{0}', space=vmem, size = 0x80000, scoped, tag = 'input window, operand 8, single buffered']
    #allocation18 [shape = 's32[1]{0}', space=sflag, size = 0x4, scoped, tag = 'scoped memory for tpu_custom_call.1']
    #allocation19 [shape = 'u8[131072]{0}', space=vmem, size = 0x20000, scoped, tag = 'input window, operand 10, single buffered']
    #allocation20 [shape = 'u8[8192]{0}', space=vmem, size = 0x2000, scoped, tag = 'output window, operand 0, single buffered']
    %17 = vsyncpa [#allocation6], 0
    %18 = vsyncpa [#allocation9], 0
    %19 = vsyncpa [#allocation12], 0
    %20 = vsyncpa [#allocation15], 0
    %21 = vsyncpa [#allocation18], 0
    %22 = vsyncpa [#allocation7], 0
    // Predicated region
    $region2: #{tpu_custom_call.1} parent=1 // pred_check
      _
    $region3: #{tpu_custom_call.1} parent=1 // pred_check_branch
      %24 = sbr.rel (0) target = $region5
    $region4: #{tpu_custom_call.1} parent=1 // pred_region
      %s26 = ssub.s32 512, 512
      %27 = vsyncadd [#allocation6], %s26
      %s28 = sshll.u32 [#allocation5], 4
      %s29 = int_to_ptr.vmem [resolvable:$true] %s28
      %34 = dma.hbm_to_vmem [thread:$0]  %s0, 512, %s29, [#allocation6], 64, 64, 4
    $region5: #{tpu_custom_call.1} parent=1 // pred_fallthru
      _
    // Predicated region
    $region6: #{tpu_custom_call.1} parent=1 // pred_check
      _
    $region7: #{tpu_custom_call.1} parent=1 // pred_check_branch
      %36 = sbr.rel (0) target = $region9
    $region8: #{tpu_custom_call.1} parent=1 // pred_region
      %s38 = ssub.s32 2560, 2560
      %39 = vsyncadd [#allocation9], %s38
      %s40 = sshll.u32 [#allocation8], 4
      %s41 = int_to_ptr.vmem [resolvable:$true] %s40
      %46 = dma.hbm_to_vmem [thread:$0]  %s1, 2560, %s41, [#allocation9], 512, 512, 32
    $region9: #{tpu_custom_call.1} parent=1 // pred_fallthru
      _
    // Predicated region
    $region10: #{tpu_custom_call.1} parent=1 // pred_check
      _
    $region11: #{tpu_custom_call.1} parent=1 // pred_check_branch
      %48 = sbr.rel (0) target = $region13
    $region12: #{tpu_custom_call.1} parent=1 // pred_region
      %s50 = ssub.s32 16384, 16384
      %51 = vsyncadd [#allocation9], %s50
      %s52 = sshll.u32 [#allocation10], 4
      %s53 = int_to_ptr.vmem [resolvable:$true] %s52
      %58 = dma.hbm_to_vmem [thread:$0]  %s2, 16384, %s53, [#allocation9], 512, 512, 32
    $region13: #{tpu_custom_call.1} parent=1 // pred_fallthru
      _
    // Predicated region
    $region14: #{tpu_custom_call.1} parent=1 // pred_check
      _
    $region15: #{tpu_custom_call.1} parent=1 // pred_check_branch
      %60 = sbr.rel (0) target = $region17
    $region16: #{tpu_custom_call.1} parent=1 // pred_region
      %s62 = ssub.s32 128, 128
      %63 = vsyncadd [#allocation12], %s62
      %s65 = sshll.u32 [#allocation11], 4
      %s66 = int_to_ptr.vmem [resolvable:$true] %s65
      %68 = dma.hbm_to_vmem [thread:$0]  %s3, 128, %s66, [#allocation12]
    $region17: #{tpu_custom_call.1} parent=1 // pred_fallthru
      _
    // Predicated region
    $region18: #{tpu_custom_call.1} parent=1 // pred_check
      _
    $region19: #{tpu_custom_call.1} parent=1 // pred_check_branch
      %70 = sbr.rel (0) target = $region21
    $region20: #{tpu_custom_call.1} parent=1 // pred_region
      %s72 = ssub.s32 16384, 16384
      %73 = vsyncadd [#allocation12], %s72
      %s74 = sshll.u32 [#allocation13], 4
      %s75 = int_to_ptr.vmem [resolvable:$true] %s74
      %80 = dma.hbm_to_vmem [thread:$0]  %s4, 16384, %s75, [#allocation12], 512, 512, 32
    $region21: #{tpu_custom_call.1} parent=1 // pred_fallthru
      _
    // Predicated region
    $region22: #{tpu_custom_call.1} parent=1 // pred_check
      _
    $region23: #{tpu_custom_call.1} parent=1 // pred_check_branch
      %82 = sbr.rel (0) target = $region25
    $region24: #{tpu_custom_call.1} parent=1 // pred_region
      %s84 = ssub.s32 16384, 16384
      %85 = vsyncadd [#allocation15], %s84
      %s86 = sshll.u32 [#allocation14], 4
      %s87 = int_to_ptr.vmem [resolvable:$true] %s86
      %92 = dma.hbm_to_vmem [thread:$0]  %s5, 16384, %s87, [#allocation15], 512, 512, 32
    $region25: #{tpu_custom_call.1} parent=1 // pred_fallthru
      _
    // Predicated region
    $region26: #{tpu_custom_call.1} parent=1 // pred_check
      _
    $region27: #{tpu_custom_call.1} parent=1 // pred_check_branch
      %94 = sbr.rel (0) target = $region29
    $region28: #{tpu_custom_call.1} parent=1 // pred_region
      _
    $region29: #{tpu_custom_call.1} parent=1 // pred_fallthru
      _
    // Predicated region
    $region30: #{tpu_custom_call.1} parent=1 // pred_check
      _
    $region31: #{tpu_custom_call.1} parent=1 // pred_check_branch
      %96 = sbr.rel (0) target = $region33
    $region32: #{tpu_custom_call.1} parent=1 // pred_region
      %s98 = ssub.s32 16384, 16384
      %99 = vsyncadd [#allocation15], %s98
      %s100 = sshll.u32 [#allocation16], 4
      %s101 = int_to_ptr.vmem [resolvable:$true] %s100
      %106 = dma.hbm_to_vmem [thread:$0]  %s7, 16384, %s101, [#allocation15], 512, 512, 32
    $region33: #{tpu_custom_call.1} parent=1 // pred_fallthru
      _
    // Predicated region
    $region34: #{tpu_custom_call.1} parent=1 // pred_check
      _
    $region35: #{tpu_custom_call.1} parent=1 // pred_check_branch
      %108 = sbr.rel (0) target = $region37
    $region36: #{tpu_custom_call.1} parent=1 // pred_region
      %s110 = ssub.s32 16384, 16384
      %111 = vsyncadd [#allocation18], %s110
      %s112 = sshll.u32 [#allocation17], 4
      %s113 = int_to_ptr.vmem [resolvable:$true] %s112
      %118 = dma.hbm_to_vmem [thread:$0]  %s8, 16384, %s113, [#allocation18], 512, 512, 32
    $region37: #{tpu_custom_call.1} parent=1 // pred_fallthru
      _
    // Predicated region
    $region38: #{tpu_custom_call.1} parent=1 // pred_check
      _
    $region39: #{tpu_custom_call.1} parent=1 // pred_check_branch
      %120 = sbr.rel (0) target = $region41
    $region40: #{tpu_custom_call.1} parent=1 // pred_region
      _
    $region41: #{tpu_custom_call.1} parent=1 // pred_fallthru
      _
    // Predicated region
    $region42: #{tpu_custom_call.1} parent=1 // pred_check
      _
    $region43: #{tpu_custom_call.1} parent=1 // pred_check_branch
      %122 = sbr.rel (0) target = $region45
    $region44: #{tpu_custom_call.1} parent=1 // pred_region
      %s124 = ssub.s32 4096, 4096
      %125 = vsyncadd [#allocation18], %s124
      %s126 = sshll.u32 [#allocation19], 4
      %s127 = int_to_ptr.vmem [resolvable:$true] %s126
      %132 = dma.hbm_to_vmem [thread:$0]  %s10, 4096, %s127, [#allocation18], 128, 128, 8
    $region45: #{tpu_custom_call.1} parent=1 // pred_fallthru
      _
    // Predicated region
    $region46: #{tpu_custom_call.1} parent=1 // pred_check
      _
    $region47: #{tpu_custom_call.1} parent=1 // pred_check_branch
      %134 = sbr.rel (0) target = $region49
    $region48: #{tpu_custom_call.1} parent=1 // pred_region
      _
    $region49: #{tpu_custom_call.1} parent=1 // pred_fallthru
      _
    // Predicated region
    $region50: #{tpu_custom_call.1} parent=1 // pred_check
      _
    $region51: #{tpu_custom_call.1} parent=1 // pred_check_branch
      %136 = sbr.rel (0) target = $region53
    $region52: #{tpu_custom_call.1} parent=1 // pred_region
      %137 = dma.done [#allocation6], 512
    $region53: #{tpu_custom_call.1} parent=1 // pred_fallthru
      _
    // Predicated region
    $region54: #{tpu_custom_call.1} parent=1 // pred_check
      _
    $region55: #{tpu_custom_call.1} parent=1 // pred_check_branch
      %139 = sbr.rel (0) target = $region57
    $region56: #{tpu_custom_call.1} parent=1 // pred_region
      %140 = dma.done [#allocation9], 2560
    $region57: #{tpu_custom_call.1} parent=1 // pred_fallthru
      _
    // Predicated region
    $region58: #{tpu_custom_call.1} parent=1 // pred_check
      _
    $region59: #{tpu_custom_call.1} parent=1 // pred_check_branch
      %142 = sbr.rel (0) target = $region61
    $region60: #{tpu_custom_call.1} parent=1 // pred_region
      %143 = dma.done [#allocation9], 16384
    $region61: #{tpu_custom_call.1} parent=1 // pred_fallthru
      _
    // Predicated region
    $region62: #{tpu_custom_call.1} parent=1 // pred_check
      _
    $region63: #{tpu_custom_call.1} parent=1 // pred_check_branch
      %145 = sbr.rel (0) target = $region65
    $region64: #{tpu_custom_call.1} parent=1 // pred_region
      %146 = dma.done [#allocation12], 128
    $region65: #{tpu_custom_call.1} parent=1 // pred_fallthru
      _
    // Predicated region
    $region66: #{tpu_custom_call.1} parent=1 // pred_check
      _
    $region67: #{tpu_custom_call.1} parent=1 // pred_check_branch
      %148 = sbr.rel (0) target = $region69
    $region68: #{tpu_custom_call.1} parent=1 // pred_region
      %149 = dma.done [#allocation12], 16384
    $region69: #{tpu_custom_call.1} parent=1 // pred_fallthru
      _
    // Predicated region
    $region70: #{tpu_custom_call.1} parent=1 // pred_check
      _
    $region71: #{tpu_custom_call.1} parent=1 // pred_check_branch
      %151 = sbr.rel (0) target = $region73
    $region72: #{tpu_custom_call.1} parent=1 // pred_region
      %152 = dma.done [#allocation15], 16384
    $region73: #{tpu_custom_call.1} parent=1 // pred_fallthru
      _
    // Predicated region
    $region74: #{tpu_custom_call.1} parent=1 // pred_check
      _
    $region75: #{tpu_custom_call.1} parent=1 // pred_check_branch
      %154 = sbr.rel (0) target = $region77
    $region76: #{tpu_custom_call.1} parent=1 // pred_region
      %155 = dma.done [#allocation15], 16384
    $region77: #{tpu_custom_call.1} parent=1 // pred_fallthru
      _
    // Predicated region
    $region78: #{tpu_custom_call.1} parent=1 // pred_check
      _
    $region79: #{tpu_custom_call.1} parent=1 // pred_check_branch
      %157 = sbr.rel (0) target = $region81
    $region80: #{tpu_custom_call.1} parent=1 // pred_region
      %158 = dma.done [#allocation18], 16384
    $region81: #{tpu_custom_call.1} parent=1 // pred_fallthru
      _
    // Predicated region
    $region82: #{tpu_custom_call.1} parent=1 // pred_check
      _
    $region83: #{tpu_custom_call.1} parent=1 // pred_check_branch
      %160 = sbr.rel (0) target = $region85
    $region84: #{tpu_custom_call.1} parent=1 // pred_region
      %161 = dma.done [#allocation18], 4096
    $region85: #{tpu_custom_call.1} parent=1 // pred_fallthru
      _
    %163 = vst [vmem:[#allocation3] sm:$0xff] 0.0
    %164 = vst [vmem:[#allocation3 + $0x8] sm:$0xff] 0.0
    %165 = vst [vmem:[#allocation4] sm:$0xff] 0.0
    %166 = vst [vmem:[#allocation4 + $0x8] sm:$0xff] 0.0
    loop: start=0, step=1, limit=8
    $region86: #{tpu_custom_call.1} parent=1 // loop_pre_header
      _
    $region87: #{tpu_custom_call.1} parent=1 // loop_header
      %s168 = sphi 0, %s172
      %p169 = scmp.ge.s32.totalorder %s168, 8
    $region88: #{tpu_custom_call.1} parent=1 // loop_header_branch
      %171 = sbr.rel (%p169) target = $region92
    $region89: #{tpu_custom_call.1} parent=1 // loop_body
      %s173 = smul.addr %s168, 4
      %s174 = scalar_lea.vmem [#allocation5], %s173
      %v175 = vld [vmem:[%s174] sm:$0xf]
      %v176 = vld [vmem:[#allocation8] sm:$0xff]
      %v177 = vld [vmem:[#allocation8 + $0x8] sm:$0xff]
      %v178 = vld [vmem:[#allocation8 + $0x10] sm:$0xff]
      %v179 = vld [vmem:[#allocation8 + $0x18] sm:$0xff]
      %v180 = vld [vmem:[#allocation8 + $0x20] sm:$0xff]
      %v181 = vld [vmem:[#allocation8 + $0x28] sm:$0xff]
      %v182 = vld [vmem:[#allocation8 + $0x30] sm:$0xff]
      %v183 = vld [vmem:[#allocation8 + $0x38] sm:$0xff]
      %v184 = vld [vmem:[#allocation8 + $0x40] sm:$0xff]
      %v185 = vld [vmem:[#allocation8 + $0x48] sm:$0xff]
      %v186 = vld [vmem:[#allocation8 + $0x50] sm:$0xff]
      %v187 = vld [vmem:[#allocation8 + $0x58] sm:$0xff]
      %v188 = vld [vmem:[#allocation8 + $0x60] sm:$0xff]
      %v189 = vld [vmem:[#allocation8 + $0x68] sm:$0xff]
      %v190 = vld [vmem:[#allocation8 + $0x70] sm:$0xff]
      %v191 = vld [vmem:[#allocation8 + $0x78] sm:$0xff]
      %v192 = vld [vmem:[#allocation8 + $0x80] sm:$0xff]
      %v193 = vld [vmem:[#allocation8 + $0x88] sm:$0xff]
      %v194 = vld [vmem:[#allocation8 + $0x90] sm:$0xff]
      %v195 = vld [vmem:[#allocation8 + $0x98] sm:$0xff]
      %v196 = vld [vmem:[#allocation11] sm:$0xff]
      %v198 = vlaneseq
      %v199 = vshrl.u32 %v198, 7
      %v200 = vsub.s32 0, %v199
      %v201 = vrot.slane %v196, %v200
      %v202 = vlaneseq
      %v203 = vshrl.u32 %v202, 7
      %v204 = vsub.s32 1, %v203
      %v205 = vrot.slane %v196, %v204
      %v206 = vlaneseq
      %v207 = vshrl.u32 %v206, 7
      %v208 = vsub.s32 2, %v207
      %v209 = vrot.slane %v196, %v208
      %v210 = vlaneseq
      %v211 = vshrl.u32 %v210, 7
      %v212 = vsub.s32 3, %v211
      %v213 = vrot.slane %v196, %v212
      %v214 = vlaneseq
      %v215 = vshrl.u32 %v214, 7
      %v216 = vsub.s32 4, %v215
      %v217 = vrot.slane %v196, %v216
      %v218 = vlaneseq
      %v219 = vshrl.u32 %v218, 7
      %v220 = vsub.s32 5, %v219
      %v221 = vrot.slane %v196, %v220
      %v222 = vlaneseq
      %v223 = vshrl.u32 %v222, 7
      %v224 = vsub.s32 6, %v223
      %v225 = vrot.slane %v196, %v224
      %v226 = vlaneseq
      %v227 = vshrl.u32 %v226, 7
      %v228 = vsub.s32 7, %v227
      %v229 = vrot.slane %v196, %v228
      %v258 = vunpack.c.l.b16 %v176
      %v259 = vunpack.c.h.b16 %v176
      %v260 = vunpack.c.l.b16 %v177
      %v261 = vunpack.c.h.b16 %v177
      %v262 = vunpack.c.l.b16 %v178
      %v263 = vunpack.c.h.b16 %v178
      %v264 = vunpack.c.l.b16 %v179
      %v265 = vunpack.c.h.b16 %v179
      %v266 = vunpack.c.l.b16 %v180
      %v267 = vunpack.c.h.b16 %v180
      %v268 = vunpack.c.l.b16 %v181
      %v269 = vunpack.c.h.b16 %v181
      %v270 = vunpack.c.l.b16 %v182
      %v271 = vunpack.c.h.b16 %v182
      %v272 = vunpack.c.l.b16 %v183
      %v273 = vunpack.c.h.b16 %v183
      %v274 = vunpack.c.l.b16 %v184
      %v275 = vunpack.c.h.b16 %v184
      %v276 = vunpack.c.l.b16 %v185
      %v277 = vunpack.c.h.b16 %v185
      %v278 = vunpack.c.l.b16 %v186
      %v279 = vunpack.c.h.b16 %v186
      %v280 = vunpack.c.l.b16 %v187
      %v281 = vunpack.c.h.b16 %v187
      %v282 = vunpack.c.l.b16 %v188
      %v283 = vunpack.c.h.b16 %v188
      %v284 = vunpack.c.l.b16 %v189
      %v285 = vunpack.c.h.b16 %v189
      %v286 = vunpack.c.l.b16 %v190
      %v287 = vunpack.c.h.b16 %v190
      %v288 = vunpack.c.l.b16 %v191
      %v289 = vunpack.c.h.b16 %v191
      %v290 = vunpack.c.l.b16 %v192
      %v291 = vunpack.c.h.b16 %v192
      %v292 = vunpack.c.l.b16 %v193
      %v293 = vunpack.c.h.b16 %v193
      %v294 = vunpack.c.l.b16 %v194
      %v295 = vunpack.c.h.b16 %v194
      %v296 = vunpack.c.l.b16 %v195
      %v297 = vunpack.c.h.b16 %v195
      %v298 = vpack.c.b16 %v266, %v258
      %v299 = vpack.c.b16 %v267, %v259
      %v300 = vpack.c.b16 %v268, %v260
      %v301 = vpack.c.b16 %v269, %v261
      %v302 = vpack.c.b16 %v270, %v262
      %v303 = vpack.c.b16 %v271, %v263
      %v304 = vpack.c.b16 %v272, %v264
      %v305 = vpack.c.b16 %v273, %v265
      %v306 = vpack.c.b16 %v282, %v274
      %v307 = vpack.c.b16 %v283, %v275
      %v308 = vpack.c.b16 %v284, %v276
      %v309 = vpack.c.b16 %v285, %v277
      %v310 = vpack.c.b16 %v286, %v278
      %v311 = vpack.c.b16 %v287, %v279
      %v312 = vpack.c.b16 %v288, %v280
      %v313 = vpack.c.b16 %v289, %v281
      %v314 = vpack.c.b16 %v290, %v290
      %v315 = vpack.c.b16 %v291, %v291
      %v316 = vpack.c.b16 %v292, %v292
      %v317 = vpack.c.b16 %v293, %v293
      %v318 = vpack.c.b16 %v294, %v294
      %v319 = vpack.c.b16 %v295, %v295
      %v320 = vpack.c.b16 %v296, %v296
      %v321 = vpack.c.b16 %v297, %v297
      %vm338 = vcmask 326656
      %v340 = vsel %vm338, %v175, 0
      %vm342 = vcmask 1043456
      %v344 = vsel %vm342, %v314, 0
      %v347 = vsel %vm342, %v315, 0
      %v350 = vsel %vm342, %v316, 0
      %v353 = vsel %vm342, %v317, 0
      %v356 = vsel %vm342, %v318, 0
      %v359 = vsel %vm342, %v319, 0
      %v362 = vsel %vm342, %v320, 0
      %v365 = vsel %vm342, %v321, 0
      %367 = vmatprep.subr.bf16.mxu0 0
      %368 = vmatpush1.bf16.msra.mxu0 0
      %369 = vmatprep.subr.bf16.mxu0 0
      %370 = vmatpush1.bf16.msra.mxu0 0
      %371 = vmatprep.subr.bf16.mxu0 0
      %372 = vmatpush1.bf16.msra.mxu0 0
      %373 = vmatprep.subr.bf16.mxu0 0
      %374 = vmatpush1.bf16.msra.mxu0 0
      %375 = vmatprep.subr.bf16.mxu0 0
      %376 = vmatpush1.bf16.msra.mxu0 0
      %377 = vmatprep.subr.bf16.mxu0 %v347
      %378 = vmatpush1.bf16.msra.mxu0 %v344
      %379 = vmatprep.subr.bf16.mxu0 %v307
      %380 = vmatpush1.bf16.msra.mxu0 %v306
      %381 = vmatprep.subr.bf16.mxu0 %v299
      %382 = vmatpush1.bf16.msra.mxu0 %v298
      %383 = vmatprep.subr.bf16.mxu0 0
      %384 = vmatpush2.bf16.msra.mxu0 0
      %385 = vmatprep.subr.bf16.mxu0 0
      %386 = vmatpush2.bf16.msra.mxu0 0
      %387 = vmatprep.subr.bf16.mxu0 0
      %388 = vmatpush2.bf16.msra.mxu0 0
      %389 = vmatprep.subr.bf16.mxu0 0
      %390 = vmatpush2.bf16.msra.mxu0 0
      %391 = vmatprep.subr.bf16.mxu0 0
      %392 = vmatpush2.bf16.msra.mxu0 0
      %393 = vmatprep.subr.bf16.mxu0 0
      %394 = vmatpush2.bf16.msra.mxu0 0
      %395 = vmatprep.subr.bf16.mxu0 0
      %396 = vmatpush2.bf16.msra.mxu0 0
      %397 = vmatprep.subr.bf16.mxu0 0
      %398 = vmatpush2.bf16.msra.mxu0 0
      %399 = vmatprep.mubr.bf16.mxu0 0
      %400 = vmatmul.mubr.bf16.gmra.mxu0 %v340
      %v401 = vpop.f32.mrf.mxu0
      %v402 = vadd.f32 %v201, %v401
      %v403 = vpop.f32.mrf.mxu0
      %v404 = vadd.f32 %v205, %v403
      %v405 = vpop.f32.mrf.mxu0
      %v406 = vpop.f32.mrf.mxu0
      %407 = vdwg.mxu0
      %408 = vmatprep.subr.bf16.mxu0 0
      %409 = vmatpush1.bf16.msra.mxu0 0
      %410 = vmatprep.subr.bf16.mxu0 0
      %411 = vmatpush1.bf16.msra.mxu0 0
      %412 = vmatprep.subr.bf16.mxu0 0
      %413 = vmatpush1.bf16.msra.mxu0 0
      %414 = vmatprep.subr.bf16.mxu0 0
      %415 = vmatpush1.bf16.msra.mxu0 0
      %416 = vmatprep.subr.bf16.mxu0 0
      %417 = vmatpush1.bf16.msra.mxu0 0
      %418 = vmatprep.subr.bf16.mxu0 %v353
      %419 = vmatpush1.bf16.msra.mxu0 %v350
      %420 = vmatprep.subr.bf16.mxu0 %v309
      %421 = vmatpush1.bf16.msra.mxu0 %v308
      %422 = vmatprep.subr.bf16.mxu0 %v301
      %423 = vmatpush1.bf16.msra.mxu0 %v300
      %424 = vmatprep.subr.bf16.mxu0 0
      %425 = vmatpush2.bf16.msra.mxu0 0
      %426 = vmatprep.subr.bf16.mxu0 0
      %427 = vmatpush2.bf16.msra.mxu0 0
      %428 = vmatprep.subr.bf16.mxu0 0
      %429 = vmatpush2.bf16.msra.mxu0 0
      %430 = vmatprep.subr.bf16.mxu0 0
      %431 = vmatpush2.bf16.msra.mxu0 0
      %432 = vmatprep.subr.bf16.mxu0 0
      %433 = vmatpush2.bf16.msra.mxu0 0
      %434 = vmatprep.subr.bf16.mxu0 0
      %435 = vmatpush2.bf16.msra.mxu0 0
      %436 = vmatprep.subr.bf16.mxu0 0
      %437 = vmatpush2.bf16.msra.mxu0 0
      %438 = vmatprep.subr.bf16.mxu0 0
      %439 = vmatpush2.bf16.msra.mxu0 0
      %440 = vmatprep.mubr.bf16.mxu0 0
      %441 = vmatmul.mubr.bf16.gmra.mxu0 %v340
      %v442 = vpop.f32.mrf.mxu0
      %v443 = vadd.f32 %v209, %v442
      %v444 = vpop.f32.mrf.mxu0
      %v445 = vadd.f32 %v213, %v444
      %v446 = vpop.f32.mrf.mxu0
      %v447 = vpop.f32.mrf.mxu0
      %448 = vdwg.mxu0
      %449 = vmatprep.subr.bf16.mxu0 0
      %450 = vmatpush1.bf16.msra.mxu0 0
      %451 = vmatprep.subr.bf16.mxu0 0
      %452 = vmatpush1.bf16.msra.mxu0 0
      %453 = vmatprep.subr.bf16.mxu0 0
      %454 = vmatpush1.bf16.msra.mxu0 0
      %455 = vmatprep.subr.bf16.mxu0 0
      %456 = vmatpush1.bf16.msra.mxu0 0
      %457 = vmatprep.subr.bf16.mxu0 0
      %458 = vmatpush1.bf16.msra.mxu0 0
      %459 = vmatprep.subr.bf16.mxu0 %v359
      %460 = vmatpush1.bf16.msra.mxu0 %v356
      %461 = vmatprep.subr.bf16.mxu0 %v311
      %462 = vmatpush1.bf16.msra.mxu0 %v310
      %463 = vmatprep.subr.bf16.mxu0 %v303
      %464 = vmatpush1.bf16.msra.mxu0 %v302
      %465 = vmatprep.subr.bf16.mxu0 0
      %466 = vmatpush2.bf16.msra.mxu0 0
      %467 = vmatprep.subr.bf16.mxu0 0
      %468 = vmatpush2.bf16.msra.mxu0 0
      %469 = vmatprep.subr.bf16.mxu0 0
      %470 = vmatpush2.bf16.msra.mxu0 0
      %471 = vmatprep.subr.bf16.mxu0 0
      %472 = vmatpush2.bf16.msra.mxu0 0
      %473 = vmatprep.subr.bf16.mxu0 0
      %474 = vmatpush2.bf16.msra.mxu0 0
      %475 = vmatprep.subr.bf16.mxu0 0
      %476 = vmatpush2.bf16.msra.mxu0 0
      %477 = vmatprep.subr.bf16.mxu0 0
      %478 = vmatpush2.bf16.msra.mxu0 0
      %479 = vmatprep.subr.bf16.mxu0 0
      %480 = vmatpush2.bf16.msra.mxu0 0
      %481 = vmatprep.mubr.bf16.mxu0 0
      %482 = vmatmul.mubr.bf16.gmra.mxu0 %v340
      %v483 = vpop.f32.mrf.mxu0
      %v484 = vadd.f32 %v217, %v483
      %v485 = vpop.f32.mrf.mxu0
      %v486 = vadd.f32 %v221, %v485
      %v487 = vpop.f32.mrf.mxu0
      %v488 = vpop.f32.mrf.mxu0
      %489 = vdwg.mxu0
      %490 = vmatprep.subr.bf16.mxu0 0
      %491 = vmatpush1.bf16.msra.mxu0 0
      %492 = vmatprep.subr.bf16.mxu0 0
      %493 = vmatpush1.bf16.msra.mxu0 0
      %494 = vmatprep.subr.bf16.mxu0 0
      %495 = vmatpush1.bf16.msra.mxu0 0
      %496 = vmatprep.subr.bf16.mxu0 0
      %497 = vmatpush1.bf16.msra.mxu0 0
      %498 = vmatprep.subr.bf16.mxu0 0
      %499 = vmatpush1.bf16.msra.mxu0 0
      %500 = vmatprep.subr.bf16.mxu0 %v365
      %501 = vmatpush1.bf16.msra.mxu0 %v362
      %502 = vmatprep.subr.bf16.mxu0 %v313
      %503 = vmatpush1.bf16.msra.mxu0 %v312
      %504 = vmatprep.subr.bf16.mxu0 %v305
      %505 = vmatpush1.bf16.msra.mxu0 %v304
      %506 = vmatprep.subr.bf16.mxu0 0
      %507 = vmatpush2.bf16.msra.mxu0 0
      %508 = vmatprep.subr.bf16.mxu0 0
      %509 = vmatpush2.bf16.msra.mxu0 0
      %510 = vmatprep.subr.bf16.mxu0 0
      %511 = vmatpush2.bf16.msra.mxu0 0
      %512 = vmatprep.subr.bf16.mxu0 0
      %513 = vmatpush2.bf16.msra.mxu0 0
      %514 = vmatprep.subr.bf16.mxu0 0
      %515 = vmatpush2.bf16.msra.mxu0 0
      %516 = vmatprep.subr.bf16.mxu0 0
      %517 = vmatpush2.bf16.msra.mxu0 0
      %518 = vmatprep.subr.bf16.mxu0 0
      %519 = vmatpush2.bf16.msra.mxu0 0
      %520 = vmatprep.subr.bf16.mxu0 0
      %521 = vmatpush2.bf16.msra.mxu0 0
      %522 = vmatprep.mubr.bf16.mxu0 0
      %523 = vmatmul.mubr.bf16.gmra.mxu0 %v340
      %v524 = vpop.f32.mrf.mxu0
      %v525 = vadd.f32 %v225, %v524
      %v526 = vpop.f32.mrf.mxu0
      %v527 = vadd.f32 %v229, %v526
      %v528 = vpop.f32.mrf.mxu0
      %v529 = vpop.f32.mrf.mxu0
      %530 = vdwg.mxu0
      %v531 = vld [vmem:[#allocation3] sm:$0xff]
      %v532 = vld [vmem:[#allocation3 + $0x8] sm:$0xff]
      %v533 = vpack.c.bf16 %v531, %v531
      %v534 = vpack.c.bf16 %v532, %v532
      %v535 = vld [vmem:[#allocation10] sm:$0xff]
      %v536 = vld [vmem:[#allocation10 + $0x8] sm:$0xff]
      %v537 = vld [vmem:[#allocation10 + $0x10] sm:$0xff]
      %v538 = vld [vmem:[#allocation10 + $0x18] sm:$0xff]
      %v539 = vld [vmem:[#allocation10 + $0x20] sm:$0xff]
      %v540 = vld [vmem:[#allocation10 + $0x28] sm:$0xff]
      %v541 = vld [vmem:[#allocation10 + $0x30] sm:$0xff]
      %v542 = vld [vmem:[#allocation10 + $0x38] sm:$0xff]
      %v543 = vld [vmem:[#allocation10 + $0x40] sm:$0xff]
      %v544 = vld [vmem:[#allocation10 + $0x48] sm:$0xff]
      %v545 = vld [vmem:[#allocation10 + $0x50] sm:$0xff]
      %v546 = vld [vmem:[#allocation10 + $0x58] sm:$0xff]
      %v547 = vld [vmem:[#allocation10 + $0x60] sm:$0xff]
      %v548 = vld [vmem:[#allocation10 + $0x68] sm:$0xff]
      %v549 = vld [vmem:[#allocation10 + $0x70] sm:$0xff]
      %v550 = vld [vmem:[#allocation10 + $0x78] sm:$0xff]
      %v551 = vld [vmem:[#allocation10 + $0x80] sm:$0xff]
      %v552 = vld [vmem:[#allocation10 + $0x88] sm:$0xff]
      %v553 = vld [vmem:[#allocation10 + $0x90] sm:$0xff]
      %v554 = vld [vmem:[#allocation10 + $0x98] sm:$0xff]
      %v555 = vld [vmem:[#allocation10 + $0xa0] sm:$0xff]
      %v556 = vld [vmem:[#allocation10 + $0xa8] sm:$0xff]
      %v557 = vld [vmem:[#allocation10 + $0xb0] sm:$0xff]
      %v558 = vld [vmem:[#allocation10 + $0xb8] sm:$0xff]
      %v559 = vld [vmem:[#allocation10 + $0xc0] sm:$0xff]
      %v560 = vld [vmem:[#allocation10 + $0xc8] sm:$0xff]
      %v561 = vld [vmem:[#allocation10 + $0xd0] sm:$0xff]
      %v562 = vld [vmem:[#allocation10 + $0xd8] sm:$0xff]
      %v563 = vld [vmem:[#allocation10 + $0xe0] sm:$0xff]
      %v564 = vld [vmem:[#allocation10 + $0xe8] sm:$0xff]
      %v565 = vld [vmem:[#allocation10 + $0xf0] sm:$0xff]
      %v566 = vld [vmem:[#allocation10 + $0xf8] sm:$0xff]
      %v567 = vld [vmem:[#allocation10 + $0x100] sm:$0xff]
      %v568 = vld [vmem:[#allocation10 + $0x108] sm:$0xff]
      %v569 = vld [vmem:[#allocation10 + $0x110] sm:$0xff]
      %v570 = vld [vmem:[#allocation10 + $0x118] sm:$0xff]
      %v571 = vld [vmem:[#allocation10 + $0x120] sm:$0xff]
      %v572 = vld [vmem:[#allocation10 + $0x128] sm:$0xff]
      %v573 = vld [vmem:[#allocation10 + $0x130] sm:$0xff]
      %v574 = vld [vmem:[#allocation10 + $0x138] sm:$0xff]
      %v575 = vld [vmem:[#allocation10 + $0x140] sm:$0xff]
      %v576 = vld [vmem:[#allocation10 + $0x148] sm:$0xff]
      %v577 = vld [vmem:[#allocation10 + $0x150] sm:$0xff]
      %v578 = vld [vmem:[#allocation10 + $0x158] sm:$0xff]
      %v579 = vld [vmem:[#allocation10 + $0x160] sm:$0xff]
      %v580 = vld [vmem:[#allocation10 + $0x168] sm:$0xff]
      %v581 = vld [vmem:[#allocation10 + $0x170] sm:$0xff]
      %v582 = vld [vmem:[#allocation10 + $0x178] sm:$0xff]
      %v583 = vld [vmem:[#allocation10 + $0x180] sm:$0xff]
      %v584 = vld [vmem:[#allocation10 + $0x188] sm:$0xff]
      %v585 = vld [vmem:[#allocation10 + $0x190] sm:$0xff]
      %v586 = vld [vmem:[#allocation10 + $0x198] sm:$0xff]
      %v587 = vld [vmem:[#allocation10 + $0x1a0] sm:$0xff]
      %v588 = vld [vmem:[#allocation10 + $0x1a8] sm:$0xff]
      %v589 = vld [vmem:[#allocation10 + $0x1b0] sm:$0xff]
      %v590 = vld [vmem:[#allocation10 + $0x1b8] sm:$0xff]
      %v591 = vld [vmem:[#allocation10 + $0x1c0] sm:$0xff]
      %v592 = vld [vmem:[#allocation10 + $0x1c8] sm:$0xff]
      %v593 = vld [vmem:[#allocation10 + $0x1d0] sm:$0xff]
      %v594 = vld [vmem:[#allocation10 + $0x1d8] sm:$0xff]
      %v595 = vld [vmem:[#allocation10 + $0x1e0] sm:$0xff]
      %v596 = vld [vmem:[#allocation10 + $0x1e8] sm:$0xff]
      %v597 = vld [vmem:[#allocation10 + $0x1f0] sm:$0xff]
      %v598 = vld [vmem:[#allocation10 + $0x1f8] sm:$0xff]
      %v599 = vld [vmem:[#allocation10 + $0x200] sm:$0xff]
      %v600 = vld [vmem:[#allocation10 + $0x208] sm:$0xff]
      %v601 = vld [vmem:[#allocation10 + $0x210] sm:$0xff]
      %v602 = vld [vmem:[#allocation10 + $0x218] sm:$0xff]
      %v603 = vld [vmem:[#allocation10 + $0x220] sm:$0xff]
      %v604 = vld [vmem:[#allocation10 + $0x228] sm:$0xff]
      %v605 = vld [vmem:[#allocation10 + $0x230] sm:$0xff]
      %v606 = vld [vmem:[#allocation10 + $0x238] sm:$0xff]
      %v607 = vld [vmem:[#allocation10 + $0x240] sm:$0xff]
      %v608 = vld [vmem:[#allocation10 + $0x248] sm:$0xff]
      %v609 = vld [vmem:[#allocation10 + $0x250] sm:$0xff]
      %v610 = vld [vmem:[#allocation10 + $0x258] sm:$0xff]
      %v611 = vld [vmem:[#allocation10 + $0x260] sm:$0xff]
      %v612 = vld [vmem:[#allocation10 + $0x268] sm:$0xff]
      %v613 = vld [vmem:[#allocation10 + $0x270] sm:$0xff]
      %v614 = vld [vmem:[#allocation10 + $0x278] sm:$0xff]
      %v615 = vld [vmem:[#allocation10 + $0x280] sm:$0xff]
      %v616 = vld [vmem:[#allocation10 + $0x288] sm:$0xff]
      %v617 = vld [vmem:[#allocation10 + $0x290] sm:$0xff]
      %v618 = vld [vmem:[#allocation10 + $0x298] sm:$0xff]
      %v619 = vld [vmem:[#allocation10 + $0x2a0] sm:$0xff]
      %v620 = vld [vmem:[#allocation10 + $0x2a8] sm:$0xff]
      %v621 = vld [vmem:[#allocation10 + $0x2b0] sm:$0xff]
      %v622 = vld [vmem:[#allocation10 + $0x2b8] sm:$0xff]
      %v623 = vld [vmem:[#allocation10 + $0x2c0] sm:$0xff]
      %v624 = vld [vmem:[#allocation10 + $0x2c8] sm:$0xff]
      %v625 = vld [vmem:[#allocation10 + $0x2d0] sm:$0xff]
      %v626 = vld [vmem:[#allocation10 + $0x2d8] sm:$0xff]
      %v627 = vld [vmem:[#allocation10 + $0x2e0] sm:$0xff]
      %v628 = vld [vmem:[#allocation10 + $0x2e8] sm:$0xff]
      %v629 = vld [vmem:[#allocation10 + $0x2f0] sm:$0xff]
      %v630 = vld [vmem:[#allocation10 + $0x2f8] sm:$0xff]
      %v631 = vld [vmem:[#allocation10 + $0x300] sm:$0xff]
      %v632 = vld [vmem:[#allocation10 + $0x308] sm:$0xff]
      %v633 = vld [vmem:[#allocation10 + $0x310] sm:$0xff]
      %v634 = vld [vmem:[#allocation10 + $0x318] sm:$0xff]
      %v635 = vld [vmem:[#allocation10 + $0x320] sm:$0xff]
      %v636 = vld [vmem:[#allocation10 + $0x328] sm:$0xff]
      %v637 = vld [vmem:[#allocation10 + $0x330] sm:$0xff]
      %v638 = vld [vmem:[#allocation10 + $0x338] sm:$0xff]
      %v639 = vld [vmem:[#allocation10 + $0x340] sm:$0xff]
      %v640 = vld [vmem:[#allocation10 + $0x348] sm:$0xff]
      %v641 = vld [vmem:[#allocation10 + $0x350] sm:$0xff]
      %v642 = vld [vmem:[#allocation10 + $0x358] sm:$0xff]
      %v643 = vld [vmem:[#allocation10 + $0x360] sm:$0xff]
      %v644 = vld [vmem:[#allocation10 + $0x368] sm:$0xff]
      %v645 = vld [vmem:[#allocation10 + $0x370] sm:$0xff]
      %v646 = vld [vmem:[#allocation10 + $0x378] sm:$0xff]
      %v647 = vld [vmem:[#allocation10 + $0x380] sm:$0xff]
      %v648 = vld [vmem:[#allocation10 + $0x388] sm:$0xff]
      %v649 = vld [vmem:[#allocation10 + $0x390] sm:$0xff]
      %v650 = vld [vmem:[#allocation10 + $0x398] sm:$0xff]
      %v651 = vld [vmem:[#allocation10 + $0x3a0] sm:$0xff]
      %v652 = vld [vmem:[#allocation10 + $0x3a8] sm:$0xff]
      %v653 = vld [vmem:[#allocation10 + $0x3b0] sm:$0xff]
      %v654 = vld [vmem:[#allocation10 + $0x3b8] sm:$0xff]
      %v655 = vld [vmem:[#allocation10 + $0x3c0] sm:$0xff]
      %v656 = vld [vmem:[#allocation10 + $0x3c8] sm:$0xff]
      %v657 = vld [vmem:[#allocation10 + $0x3d0] sm:$0xff]
      %v658 = vld [vmem:[#allocation10 + $0x3d8] sm:$0xff]
      %v659 = vld [vmem:[#allocation10 + $0x3e0] sm:$0xff]
      %v660 = vld [vmem:[#allocation10 + $0x3e8] sm:$0xff]
      %v661 = vld [vmem:[#allocation10 + $0x3f0] sm:$0xff]
      %v662 = vld [vmem:[#allocation10 + $0x3f8] sm:$0xff]
      %v791 = vunpack.c.l.b16 %v535
      %v792 = vunpack.c.h.b16 %v535
      %v793 = vunpack.c.l.b16 %v536
      %v794 = vunpack.c.h.b16 %v536
      %v795 = vunpack.c.l.b16 %v537
      %v796 = vunpack.c.h.b16 %v537
      %v797 = vunpack.c.l.b16 %v538
      %v798 = vunpack.c.h.b16 %v538
      %v799 = vunpack.c.l.b16 %v539
      %v800 = vunpack.c.h.b16 %v539
      %v801 = vunpack.c.l.b16 %v540
      %v802 = vunpack.c.h.b16 %v540
      %v803 = vunpack.c.l.b16 %v541
      %v804 = vunpack.c.h.b16 %v541
      %v805 = vunpack.c.l.b16 %v542
      %v806 = vunpack.c.h.b16 %v542
      %v807 = vunpack.c.l.b16 %v543
      %v808 = vunpack.c.h.b16 %v543
      %v809 = vunpack.c.l.b16 %v544
      %v810 = vunpack.c.h.b16 %v544
      %v811 = vunpack.c.l.b16 %v545
      %v812 = vunpack.c.h.b16 %v545
      %v813 = vunpack.c.l.b16 %v546
      %v814 = vunpack.c.h.b16 %v546
      %v815 = vunpack.c.l.b16 %v547
      %v816 = vunpack.c.h.b16 %v547
      %v817 = vunpack.c.l.b16 %v548
      %v818 = vunpack.c.h.b16 %v548
      %v819 = vunpack.c.l.b16 %v549
      %v820 = vunpack.c.h.b16 %v549
      %v821 = vunpack.c.l.b16 %v550
      %v822 = vunpack.c.h.b16 %v550
      %v823 = vunpack.c.l.b16 %v551
      %v824 = vunpack.c.h.b16 %v551
      %v825 = vunpack.c.l.b16 %v552
      %v826 = vunpack.c.h.b16 %v552
      %v827 = vunpack.c.l.b16 %v553
      %v828 = vunpack.c.h.b16 %v553
      %v829 = vunpack.c.l.b16 %v554
      %v830 = vunpack.c.h.b16 %v554
      %v831 = vunpack.c.l.b16 %v555
      %v832 = vunpack.c.h.b16 %v555
      %v833 = vunpack.c.l.b16 %v556
      %v834 = vunpack.c.h.b16 %v556
      %v835 = vunpack.c.l.b16 %v557
      %v836 = vunpack.c.h.b16 %v557
      %v837 = vunpack.c.l.b16 %v558
      %v838 = vunpack.c.h.b16 %v558
      %v839 = vunpack.c.l.b16 %v559
      %v840 = vunpack.c.h.b16 %v559
      %v841 = vunpack.c.l.b16 %v560
      %v842 = vunpack.c.h.b16 %v560
      %v843 = vunpack.c.l.b16 %v561
      %v844 = vunpack.c.h.b16 %v561
      %v845 = vunpack.c.l.b16 %v562
      %v846 = vunpack.c.h.b16 %v562
      %v847 = vunpack.c.l.b16 %v563
      %v848 = vunpack.c.h.b16 %v563
      %v849 = vunpack.c.l.b16 %v564
      %v850 = vunpack.c.h.b16 %v564
      %v851 = vunpack.c.l.b16 %v565
      %v852 = vunpack.c.h.b16 %v565
      %v853 = vunpack.c.l.b16 %v566
      %v854 = vunpack.c.h.b16 %v566
      %v855 = vunpack.c.l.b16 %v567
      %v856 = vunpack.c.h.b16 %v567
      %v857 = vunpack.c.l.b16 %v568
      %v858 = vunpack.c.h.b16 %v568
      %v859 = vunpack.c.l.b16 %v569
      %v860 = vunpack.c.h.b16 %v569
      %v861 = vunpack.c.l.b16 %v570
      %v862 = vunpack.c.h.b16 %v570
      %v863 = vunpack.c.l.b16 %v571
      %v864 = vunpack.c.h.b16 %v571
      %v865 = vunpack.c.l.b16 %v572
      %v866 = vunpack.c.h.b16 %v572
      %v867 = vunpack.c.l.b16 %v573
      %v868 = vunpack.c.h.b16 %v573
      %v869 = vunpack.c.l.b16 %v574
      %v870 = vunpack.c.h.b16 %v574
      %v871 = vunpack.c.l.b16 %v575
      %v872 = vunpack.c.h.b16 %v575
      %v873 = vunpack.c.l.b16 %v576
      %v874 = vunpack.c.h.b16 %v576
      %v875 = vunpack.c.l.b16 %v577
      %v876 = vunpack.c.h.b16 %v577
      %v877 = vunpack.c.l.b16 %v578
      %v878 = vunpack.c.h.b16 %v578
      %v879 = vunpack.c.l.b16 %v579
      %v880 = vunpack.c.h.b16 %v579
      %v881 = vunpack.c.l.b16 %v580
      %v882 = vunpack.c.h.b16 %v580
      %v883 = vunpack.c.l.b16 %v581
      %v884 = vunpack.c.h.b16 %v581
      %v885 = vunpack.c.l.b16 %v582
      %v886 = vunpack.c.h.b16 %v582
      %v887 = vunpack.c.l.b16 %v583
      %v888 = vunpack.c.h.b16 %v583
      %v889 = vunpack.c.l.b16 %v584
      %v890 = vunpack.c.h.b16 %v584
      %v891 = vunpack.c.l.b16 %v585
      %v892 = vunpack.c.h.b16 %v585
      %v893 = vunpack.c.l.b16 %v586
      %v894 = vunpack.c.h.b16 %v586
      %v895 = vunpack.c.l.b16 %v587
      %v896 = vunpack.c.h.b16 %v587
      %v897 = vunpack.c.l.b16 %v588
      %v898 = vunpack.c.h.b16 %v588
      %v899 = vunpack.c.l.b16 %v589
      %v900 = vunpack.c.h.b16 %v589
      %v901 = vunpack.c.l.b16 %v590
      %v902 = vunpack.c.h.b16 %v590
      %v903 = vunpack.c.l.b16 %v591
      %v904 = vunpack.c.h.b16 %v591
      %v905 = vunpack.c.l.b16 %v592
      %v906 = vunpack.c.h.b16 %v592
      %v907 = vunpack.c.l.b16 %v593
      %v908 = vunpack.c.h.b16 %v593
      %v909 = vunpack.c.l.b16 %v594
      %v910 = vunpack.c.h.b16 %v594
      %v911 = vunpack.c.l.b16 %v595
      %v912 = vunpack.c.h.b16 %v595
      %v913 = vunpack.c.l.b16 %v596
      %v914 = vunpack.c.h.b16 %v596
      %v915 = vunpack.c.l.b16 %v597
      %v916 = vunpack.c.h.b16 %v597
      %v917 = vunpack.c.l.b16 %v598
      %v918 = vunpack.c.h.b16 %v598
      %v919 = vunpack.c.l.b16 %v599
      %v920 = vunpack.c.h.b16 %v599
      %v921 = vunpack.c.l.b16 %v600
      %v922 = vunpack.c.h.b16 %v600
      %v923 = vunpack.c.l.b16 %v601
      %v924 = vunpack.c.h.b16 %v601
      %v925 = vunpack.c.l.b16 %v602
      %v926 = vunpack.c.h.b16 %v602
      %v927 = vunpack.c.l.b16 %v603
      %v928 = vunpack.c.h.b16 %v603
      %v929 = vunpack.c.l.b16 %v604
      %v930 = vunpack.c.h.b16 %v604
      %v931 = vunpack.c.l.b16 %v605
      %v932 = vunpack.c.h.b16 %v605
      %v933 = vunpack.c.l.b16 %v606
      %v934 = vunpack.c.h.b16 %v606
      %v935 = vunpack.c.l.b16 %v607
      %v936 = vunpack.c.h.b16 %v607
      %v937 = vunpack.c.l.b16 %v608
      %v938 = vunpack.c.h.b16 %v608
      %v939 = vunpack.c.l.b16 %v609
      %v940 = vunpack.c.h.b16 %v609
      %v941 = vunpack.c.l.b16 %v610
      %v942 = vunpack.c.h.b16 %v610
      %v943 = vunpack.c.l.b16 %v611
      %v944 = vunpack.c.h.b16 %v611
      %v945 = vunpack.c.l.b16 %v612
      %v946 = vunpack.c.h.b16 %v612
      %v947 = vunpack.c.l.b16 %v613
      %v948 = vunpack.c.h.b16 %v613
      %v949 = vunpack.c.l.b16 %v614
      %v950 = vunpack.c.h.b16 %v614
      %v951 = vunpack.c.l.b16 %v615
      %v952 = vunpack.c.h.b16 %v615
      %v953 = vunpack.c.l.b16 %v616
      %v954 = vunpack.c.h.b16 %v616
      %v955 = vunpack.c.l.b16 %v617
      %v956 = vunpack.c.h.b16 %v617
      %v957 = vunpack.c.l.b16 %v618
      %v958 = vunpack.c.h.b16 %v618
      %v959 = vunpack.c.l.b16 %v619
      %v960 = vunpack.c.h.b16 %v619
      %v961 = vunpack.c.l.b16 %v620
      %v962 = vunpack.c.h.b16 %v620
      %v963 = vunpack.c.l.b16 %v621
      %v964 = vunpack.c.h.b16 %v621
      %v965 = vunpack.c.l.b16 %v622
      %v966 = vunpack.c.h.b16 %v622
      %v967 = vunpack.c.l.b16 %v623
      %v968 = vunpack.c.h.b16 %v623
      %v969 = vunpack.c.l.b16 %v624
      %v970 = vunpack.c.h.b16 %v624
      %v971 = vunpack.c.l.b16 %v625
      %v972 = vunpack.c.h.b16 %v625
      %v973 = vunpack.c.l.b16 %v626
      %v974 = vunpack.c.h.b16 %v626
      %v975 = vunpack.c.l.b16 %v627
      %v976 = vunpack.c.h.b16 %v627
      %v977 = vunpack.c.l.b16 %v628
      %v978 = vunpack.c.h.b16 %v628
      %v979 = vunpack.c.l.b16 %v629
      %v980 = vunpack.c.h.b16 %v629
      %v981 = vunpack.c.l.b16 %v630
      %v982 = vunpack.c.h.b16 %v630
      %v983 = vunpack.c.l.b16 %v631
      %v984 = vunpack.c.h.b16 %v631
      %v985 = vunpack.c.l.b16 %v632
      %v986 = vunpack.c.h.b16 %v632
      %v987 = vunpack.c.l.b16 %v633
      %v988 = vunpack.c.h.b16 %v633
      %v989 = vunpack.c.l.b16 %v634
      %v990 = vunpack.c.h.b16 %v634
      %v991 = vunpack.c.l.b16 %v635
      %v992 = vunpack.c.h.b16 %v635
      %v993 = vunpack.c.l.b16 %v636
      %v994 = vunpack.c.h.b16 %v636
      %v995 = vunpack.c.l.b16 %v637
      %v996 = vunpack.c.h.b16 %v637
      %v997 = vunpack.c.l.b16 %v638
      %v998 = vunpack.c.h.b16 %v638
      %v999 = vunpack.c.l.b16 %v639
      %v1000 = vunpack.c.h.b16 %v639
      %v1001 = vunpack.c.l.b16 %v640
      %v1002 = vunpack.c.h.b16 %v640
      %v1003 = vunpack.c.l.b16 %v641
      %v1004 = vunpack.c.h.b16 %v641
      %v1005 = vunpack.c.l.b16 %v642
      %v1006 = vunpack.c.h.b16 %v642
      %v1007 = vunpack.c.l.b16 %v643
      %v1008 = vunpack.c.h.b16 %v643
      %v1009 = vunpack.c.l.b16 %v644
      %v1010 = vunpack.c.h.b16 %v644
      %v1011 = vunpack.c.l.b16 %v645
      %v1012 = vunpack.c.h.b16 %v645
      %v1013 = vunpack.c.l.b16 %v646
      %v1014 = vunpack.c.h.b16 %v646
      %v1015 = vunpack.c.l.b16 %v647
      %v1016 = vunpack.c.h.b16 %v647
      %v1017 = vunpack.c.l.b16 %v648
      %v1018 = vunpack.c.h.b16 %v648
      %v1019 = vunpack.c.l.b16 %v649
      %v1020 = vunpack.c.h.b16 %v649
      %v1021 = vunpack.c.l.b16 %v650
      %v1022 = vunpack.c.h.b16 %v650
      %v1023 = vunpack.c.l.b16 %v651
      %v1024 = vunpack.c.h.b16 %v651
      %v1025 = vunpack.c.l.b16 %v652
      %v1026 = vunpack.c.h.b16 %v652
      %v1027 = vunpack.c.l.b16 %v653
      %v1028 = vunpack.c.h.b16 %v653
      %v1029 = vunpack.c.l.b16 %v654
      %v1030 = vunpack.c.h.b16 %v654
      %v1031 = vunpack.c.l.b16 %v655
      %v1032 = vunpack.c.h.b16 %v655
      %v1033 = vunpack.c.l.b16 %v656
      %v1034 = vunpack.c.h.b16 %v656
      %v1035 = vunpack.c.l.b16 %v657
      %v1036 = vunpack.c.h.b16 %v657
      %v1037 = vunpack.c.l.b16 %v658
      %v1038 = vunpack.c.h.b16 %v658
      %v1039 = vunpack.c.l.b16 %v659
      %v1040 = vunpack.c.h.b16 %v659
      %v1041 = vunpack.c.l.b16 %v660
      %v1042 = vunpack.c.h.b16 %v660
      %v1043 = vunpack.c.l.b16 %v661
      %v1044 = vunpack.c.h.b16 %v661
      %v1045 = vunpack.c.l.b16 %v662
      %v1046 = vunpack.c.h.b16 %v662
      %v1047 = vpack.c.b16 %v799, %v791
      %v1048 = vpack.c.b16 %v800, %v792
      %v1049 = vpack.c.b16 %v801, %v793
      %v1050 = vpack.c.b16 %v802, %v794
      %v1051 = vpack.c.b16 %v803, %v795
      %v1052 = vpack.c.b16 %v804, %v796
      %v1053 = vpack.c.b16 %v805, %v797
      %v1054 = vpack.c.b16 %v806, %v798
      %v1055 = vpack.c.b16 %v815, %v807
      %v1056 = vpack.c.b16 %v816, %v808
      %v1057 = vpack.c.b16 %v817, %v809
      %v1058 = vpack.c.b16 %v818, %v810
      %v1059 = vpack.c.b16 %v819, %v811
      %v1060 = vpack.c.b16 %v820, %v812
      %v1061 = vpack.c.b16 %v821, %v813
      %v1062 = vpack.c.b16 %v822, %v814
      %v1063 = vpack.c.b16 %v831, %v823
      %v1064 = vpack.c.b16 %v832, %v824
      %v1065 = vpack.c.b16 %v833, %v825
      %v1066 = vpack.c.b16 %v834, %v826
      %v1067 = vpack.c.b16 %v835, %v827
      %v1068 = vpack.c.b16 %v836, %v828
      %v1069 = vpack.c.b16 %v837, %v829
      %v1070 = vpack.c.b16 %v838, %v830
      %v1071 = vpack.c.b16 %v847, %v839
      %v1072 = vpack.c.b16 %v848, %v840
      %v1073 = vpack.c.b16 %v849, %v841
      %v1074 = vpack.c.b16 %v850, %v842
      %v1075 = vpack.c.b16 %v851, %v843
      %v1076 = vpack.c.b16 %v852, %v844
      %v1077 = vpack.c.b16 %v853, %v845
      %v1078 = vpack.c.b16 %v854, %v846
      %v1079 = vpack.c.b16 %v863, %v855
      %v1080 = vpack.c.b16 %v864, %v856
      %v1081 = vpack.c.b16 %v865, %v857
      %v1082 = vpack.c.b16 %v866, %v858
      %v1083 = vpack.c.b16 %v867, %v859
      %v1084 = vpack.c.b16 %v868, %v860
      %v1085 = vpack.c.b16 %v869, %v861
      %v1086 = vpack.c.b16 %v870, %v862
      %v1087 = vpack.c.b16 %v879, %v871
      %v1088 = vpack.c.b16 %v880, %v872
      %v1089 = vpack.c.b16 %v881, %v873
      %v1090 = vpack.c.b16 %v882, %v874
      %v1091 = vpack.c.b16 %v883, %v875
      %v1092 = vpack.c.b16 %v884, %v876
      %v1093 = vpack.c.b16 %v885, %v877
      %v1094 = vpack.c.b16 %v886, %v878
      %v1095 = vpack.c.b16 %v895, %v887
      %v1096 = vpack.c.b16 %v896, %v888
      %v1097 = vpack.c.b16 %v897, %v889
      %v1098 = vpack.c.b16 %v898, %v890
      %v1099 = vpack.c.b16 %v899, %v891
      %v1100 = vpack.c.b16 %v900, %v892
      %v1101 = vpack.c.b16 %v901, %v893
      %v1102 = vpack.c.b16 %v902, %v894
      %v1103 = vpack.c.b16 %v911, %v903
      %v1104 = vpack.c.b16 %v912, %v904
      %v1105 = vpack.c.b16 %v913, %v905
      %v1106 = vpack.c.b16 %v914, %v906
      %v1107 = vpack.c.b16 %v915, %v907
      %v1108 = vpack.c.b16 %v916, %v908
      %v1109 = vpack.c.b16 %v917, %v909
      %v1110 = vpack.c.b16 %v918, %v910
      %v1111 = vpack.c.b16 %v927, %v919
      %v1112 = vpack.c.b16 %v928, %v920
      %v1113 = vpack.c.b16 %v929, %v921
      %v1114 = vpack.c.b16 %v930, %v922
      %v1115 = vpack.c.b16 %v931, %v923
      %v1116 = vpack.c.b16 %v932, %v924
      %v1117 = vpack.c.b16 %v933, %v925
      %v1118 = vpack.c.b16 %v934, %v926
      %v1119 = vpack.c.b16 %v943, %v935
      %v1120 = vpack.c.b16 %v944, %v936
      %v1121 = vpack.c.b16 %v945, %v937
      %v1122 = vpack.c.b16 %v946, %v938
      %v1123 = vpack.c.b16 %v947, %v939
      %v1124 = vpack.c.b16 %v948, %v940
      %v1125 = vpack.c.b16 %v949, %v941
      %v1126 = vpack.c.b16 %v950, %v942
      %v1127 = vpack.c.b16 %v959, %v951
      %v1128 = vpack.c.b16 %v960, %v952
      %v1129 = vpack.c.b16 %v961, %v953
      %v1130 = vpack.c.b16 %v962, %v954
      %v1131 = vpack.c.b16 %v963, %v955
      %v1132 = vpack.c.b16 %v964, %v956
      %v1133 = vpack.c.b16 %v965, %v957
      %v1134 = vpack.c.b16 %v966, %v958
      %v1135 = vpack.c.b16 %v975, %v967
      %v1136 = vpack.c.b16 %v976, %v968
      %v1137 = vpack.c.b16 %v977, %v969
      %v1138 = vpack.c.b16 %v978, %v970
      %v1139 = vpack.c.b16 %v979, %v971
      %v1140 = vpack.c.b16 %v980, %v972
      %v1141 = vpack.c.b16 %v981, %v973
      %v1142 = vpack.c.b16 %v982, %v974
      %v1143 = vpack.c.b16 %v991, %v983
      %v1144 = vpack.c.b16 %v992, %v984
      %v1145 = vpack.c.b16 %v993, %v985
      %v1146 = vpack.c.b16 %v994, %v986
      %v1147 = vpack.c.b16 %v995, %v987
      %v1148 = vpack.c.b16 %v996, %v988
      %v1149 = vpack.c.b16 %v997, %v989
      %v1150 = vpack.c.b16 %v998, %v990
      %v1151 = vpack.c.b16 %v1007, %v999
      %v1152 = vpack.c.b16 %v1008, %v1000
      %v1153 = vpack.c.b16 %v1009, %v1001
      %v1154 = vpack.c.b16 %v1010, %v1002
      %v1155 = vpack.c.b16 %v1011, %v1003
      %v1156 = vpack.c.b16 %v1012, %v1004
      %v1157 = vpack.c.b16 %v1013, %v1005
      %v1158 = vpack.c.b16 %v1014, %v1006
      %v1159 = vpack.c.b16 %v1023, %v1015
      %v1160 = vpack.c.b16 %v1024, %v1016
      %v1161 = vpack.c.b16 %v1025, %v1017
      %v1162 = vpack.c.b16 %v1026, %v1018
      %v1163 = vpack.c.b16 %v1027, %v1019
      %v1164 = vpack.c.b16 %v1028, %v1020
      %v1165 = vpack.c.b16 %v1029, %v1021
      %v1166 = vpack.c.b16 %v1030, %v1022
      %v1167 = vpack.c.b16 %v1039, %v1031
      %v1168 = vpack.c.b16 %v1040, %v1032
      %v1169 = vpack.c.b16 %v1041, %v1033
      %v1170 = vpack.c.b16 %v1042, %v1034
      %v1171 = vpack.c.b16 %v1043, %v1035
      %v1172 = vpack.c.b16 %v1044, %v1036
      %v1173 = vpack.c.b16 %v1045, %v1037
      %v1174 = vpack.c.b16 %v1046, %v1038
      %1303 = vmatprep.subr.bf16.mxu0 %v1104
      %1304 = vmatpush1.bf16.msra.mxu0 %v1103
      %1305 = vmatprep.subr.bf16.mxu0 %v1096
      %1306 = vmatpush1.bf16.msra.mxu0 %v1095
      %1307 = vmatprep.subr.bf16.mxu0 %v1088
      %1308 = vmatpush1.bf16.msra.mxu0 %v1087
      %1309 = vmatprep.subr.bf16.mxu0 %v1080
      %1310 = vmatpush1.bf16.msra.mxu0 %v1079
      %1311 = vmatprep.subr.bf16.mxu0 %v1072
      %1312 = vmatpush1.bf16.msra.mxu0 %v1071
      %1313 = vmatprep.subr.bf16.mxu0 %v1064
      %1314 = vmatpush1.bf16.msra.mxu0 %v1063
      %1315 = vmatprep.subr.bf16.mxu0 %v1056
      %1316 = vmatpush1.bf16.msra.mxu0 %v1055
      %1317 = vmatprep.subr.bf16.mxu0 %v1048
      %1318 = vmatpush1.bf16.msra.mxu0 %v1047
      %1319 = vmatprep.subr.bf16.mxu0 %v1168
      %1320 = vmatpush2.bf16.msra.mxu0 %v1167
      %1321 = vmatprep.subr.bf16.mxu0 %v1160
      %1322 = vmatpush2.bf16.msra.mxu0 %v1159
      %1323 = vmatprep.subr.bf16.mxu0 %v1152
      %1324 = vmatpush2.bf16.msra.mxu0 %v1151
      %1325 = vmatprep.subr.bf16.mxu0 %v1144
      %1326 = vmatpush2.bf16.msra.mxu0 %v1143
      %1327 = vmatprep.subr.bf16.mxu0 %v1136
      %1328 = vmatpush2.bf16.msra.mxu0 %v1135
      %1329 = vmatprep.subr.bf16.mxu0 %v1128
      %1330 = vmatpush2.bf16.msra.mxu0 %v1127
      %1331 = vmatprep.subr.bf16.mxu0 %v1120
      %1332 = vmatpush2.bf16.msra.mxu0 %v1119
      %1333 = vmatprep.subr.bf16.mxu0 %v1112
      %1334 = vmatpush2.bf16.msra.mxu0 %v1111
      %1335 = vmatprep.mubr.bf16.mxu0 %v534
      %1336 = vmatmul.mubr.bf16.gmra.mxu0 %v533
      %v1337 = vpop.f32.mrf.mxu0
      %v1338 = vadd.f32 0.0, %v1337
      %v1339 = vpop.f32.mrf.mxu0
      %v1340 = vadd.f32 0.0, %v1339
      %v1341 = vpop.f32.mrf.mxu0
      %v1342 = vpop.f32.mrf.mxu0
      %1343 = vdwg.mxu0
      %1344 = vmatprep.subr.bf16.mxu0 %v1106
      %1345 = vmatpush1.bf16.msra.mxu0 %v1105
      %1346 = vmatprep.subr.bf16.mxu0 %v1098
      %1347 = vmatpush1.bf16.msra.mxu0 %v1097
      %1348 = vmatprep.subr.bf16.mxu0 %v1090
      %1349 = vmatpush1.bf16.msra.mxu0 %v1089
      %1350 = vmatprep.subr.bf16.mxu0 %v1082
      %1351 = vmatpush1.bf16.msra.mxu0 %v1081
      %1352 = vmatprep.subr.bf16.mxu0 %v1074
      %1353 = vmatpush1.bf16.msra.mxu0 %v1073
      %1354 = vmatprep.subr.bf16.mxu0 %v1066
      %1355 = vmatpush1.bf16.msra.mxu0 %v1065
      %1356 = vmatprep.subr.bf16.mxu0 %v1058
      %1357 = vmatpush1.bf16.msra.mxu0 %v1057
      %1358 = vmatprep.subr.bf16.mxu0 %v1050
      %1359 = vmatpush1.bf16.msra.mxu0 %v1049
      %1360 = vmatprep.subr.bf16.mxu0 %v1170
      %1361 = vmatpush2.bf16.msra.mxu0 %v1169
      %1362 = vmatprep.subr.bf16.mxu0 %v1162
      %1363 = vmatpush2.bf16.msra.mxu0 %v1161
      %1364 = vmatprep.subr.bf16.mxu0 %v1154
      %1365 = vmatpush2.bf16.msra.mxu0 %v1153
      %1366 = vmatprep.subr.bf16.mxu0 %v1146
      %1367 = vmatpush2.bf16.msra.mxu0 %v1145
      %1368 = vmatprep.subr.bf16.mxu0 %v1138
      %1369 = vmatpush2.bf16.msra.mxu0 %v1137
      %1370 = vmatprep.subr.bf16.mxu0 %v1130
      %1371 = vmatpush2.bf16.msra.mxu0 %v1129
      %1372 = vmatprep.subr.bf16.mxu0 %v1122
      %1373 = vmatpush2.bf16.msra.mxu0 %v1121
      %1374 = vmatprep.subr.bf16.mxu0 %v1114
      %1375 = vmatpush2.bf16.msra.mxu0 %v1113
      %1376 = vmatprep.mubr.bf16.mxu0 %v534
      %1377 = vmatmul.mubr.bf16.gmra.mxu0 %v533
      %v1378 = vpop.f32.mrf.mxu0
      %v1379 = vadd.f32 0.0, %v1378
      %v1380 = vpop.f32.mrf.mxu0
      %v1381 = vadd.f32 0.0, %v1380
      %v1382 = vpop.f32.mrf.mxu0
      %v1383 = vpop.f32.mrf.mxu0
      %1384 = vdwg.mxu0
      %1385 = vmatprep.subr.bf16.mxu0 %v1108
      %1386 = vmatpush1.bf16.msra.mxu0 %v1107
      %1387 = vmatprep.subr.bf16.mxu0 %v1100
      %1388 = vmatpush1.bf16.msra.mxu0 %v1099
      %1389 = vmatprep.subr.bf16.mxu0 %v1092
      %1390 = vmatpush1.bf16.msra.mxu0 %v1091
      %1391 = vmatprep.subr.bf16.mxu0 %v1084
      %1392 = vmatpush1.bf16.msra.mxu0 %v1083
      %1393 = vmatprep.subr.bf16.mxu0 %v1076
      %1394 = vmatpush1.bf16.msra.mxu0 %v1075
      %1395 = vmatprep.subr.bf16.mxu0 %v1068
      %1396 = vmatpush1.bf16.msra.mxu0 %v1067
      %1397 = vmatprep.subr.bf16.mxu0 %v1060
      %1398 = vmatpush1.bf16.msra.mxu0 %v1059
      %1399 = vmatprep.subr.bf16.mxu0 %v1052
      %1400 = vmatpush1.bf16.msra.mxu0 %v1051
      %1401 = vmatprep.subr.bf16.mxu0 %v1172
      %1402 = vmatpush2.bf16.msra.mxu0 %v1171
      %1403 = vmatprep.subr.bf16.mxu0 %v1164
      %1404 = vmatpush2.bf16.msra.mxu0 %v1163
      %1405 = vmatprep.subr.bf16.mxu0 %v1156
      %1406 = vmatpush2.bf16.msra.mxu0 %v1155
      %1407 = vmatprep.subr.bf16.mxu0 %v1148
      %1408 = vmatpush2.bf16.msra.mxu0 %v1147
      %1409 = vmatprep.subr.bf16.mxu0 %v1140
      %1410 = vmatpush2.bf16.msra.mxu0 %v1139
      %1411 = vmatprep.subr.bf16.mxu0 %v1132
      %1412 = vmatpush2.bf16.msra.mxu0 %v1131
      %1413 = vmatprep.subr.bf16.mxu0 %v1124
      %1414 = vmatpush2.bf16.msra.mxu0 %v1123
      %1415 = vmatprep.subr.bf16.mxu0 %v1116
      %1416 = vmatpush2.bf16.msra.mxu0 %v1115
      %1417 = vmatprep.mubr.bf16.mxu0 %v534
      %1418 = vmatmul.mubr.bf16.gmra.mxu0 %v533
      %v1419 = vpop.f32.mrf.mxu0
      %v1420 = vadd.f32 0.0, %v1419
      %v1421 = vpop.f32.mrf.mxu0
      %v1422 = vadd.f32 0.0, %v1421
      %v1423 = vpop.f32.mrf.mxu0
      %v1424 = vpop.f32.mrf.mxu0
      %1425 = vdwg.mxu0
      %1426 = vmatprep.subr.bf16.mxu0 %v1110
      %1427 = vmatpush1.bf16.msra.mxu0 %v1109
      %1428 = vmatprep.subr.bf16.mxu0 %v1102
      %1429 = vmatpush1.bf16.msra.mxu0 %v1101
      %1430 = vmatprep.subr.bf16.mxu0 %v1094
      %1431 = vmatpush1.bf16.msra.mxu0 %v1093
      %1432 = vmatprep.subr.bf16.mxu0 %v1086
      %1433 = vmatpush1.bf16.msra.mxu0 %v1085
      %1434 = vmatprep.subr.bf16.mxu0 %v1078
      %1435 = vmatpush1.bf16.msra.mxu0 %v1077
      %1436 = vmatprep.subr.bf16.mxu0 %v1070
      %1437 = vmatpush1.bf16.msra.mxu0 %v1069
      %1438 = vmatprep.subr.bf16.mxu0 %v1062
      %1439 = vmatpush1.bf16.msra.mxu0 %v1061
      %1440 = vmatprep.subr.bf16.mxu0 %v1054
      %1441 = vmatpush1.bf16.msra.mxu0 %v1053
      %1442 = vmatprep.subr.bf16.mxu0 %v1174
      %1443 = vmatpush2.bf16.msra.mxu0 %v1173
      %1444 = vmatprep.subr.bf16.mxu0 %v1166
      %1445 = vmatpush2.bf16.msra.mxu0 %v1165
      %1446 = vmatprep.subr.bf16.mxu0 %v1158
      %1447 = vmatpush2.bf16.msra.mxu0 %v1157
      %1448 = vmatprep.subr.bf16.mxu0 %v1150
      %1449 = vmatpush2.bf16.msra.mxu0 %v1149
      %1450 = vmatprep.subr.bf16.mxu0 %v1142
      %1451 = vmatpush2.bf16.msra.mxu0 %v1141
      %1452 = vmatprep.subr.bf16.mxu0 %v1134
      %1453 = vmatpush2.bf16.msra.mxu0 %v1133
      %1454 = vmatprep.subr.bf16.mxu0 %v1126
      %1455 = vmatpush2.bf16.msra.mxu0 %v1125
      %1456 = vmatprep.subr.bf16.mxu0 %v1118
      %1457 = vmatpush2.bf16.msra.mxu0 %v1117
      %1458 = vmatprep.mubr.bf16.mxu0 %v534
      %1459 = vmatmul.mubr.bf16.gmra.mxu0 %v533
      %v1460 = vpop.f32.mrf.mxu0
      %v1461 = vadd.f32 0.0, %v1460
      %v1462 = vpop.f32.mrf.mxu0
      %v1463 = vadd.f32 0.0, %v1462
      %v1464 = vpop.f32.mrf.mxu0
      %v1465 = vpop.f32.mrf.mxu0
      %1466 = vdwg.mxu0
      %v1467 = vadd.f32 %v402, %v1338
      %v1468 = vadd.f32 %v404, %v1340
      %v1469 = vadd.f32 %v443, %v1379
      %v1470 = vadd.f32 %v445, %v1381
      %v1471 = vadd.f32 %v484, %v1420
      %v1472 = vadd.f32 %v486, %v1422
      %v1473 = vadd.f32 %v525, %v1461
      %v1474 = vadd.f32 %v527, %v1463
      %v1475 = vmul.f32 %v1469, 0.5
      %v1476 = vmul.f32 %v1470, 0.5
      %v1477 = vtanh.pop %v1475
      %v1478 = vtanh.pop %v1476
      %v1479 = vmul.f32 %v1477, 0.5
      %v1480 = vmul.f32 %v1478, 0.5
      %v1481 = vadd.f32 %v1479, 0.5
      %v1482 = vadd.f32 %v1480, 0.5
      %v1483 = vld [vmem:[#allocation4] sm:$0xff]
      %v1484 = vld [vmem:[#allocation4 + $0x8] sm:$0xff]
      %v1485 = vmul.f32 %v1481, %v1483
      %v1486 = vmul.f32 %v1482, %v1484
      %v1487 = vmul.f32 %v1467, 0.5
      %v1488 = vmul.f32 %v1468, 0.5
      %v1489 = vtanh.pop %v1487
      %v1490 = vtanh.pop %v1488
      %v1491 = vmul.f32 %v1489, 0.5
      %v1492 = vmul.f32 %v1490, 0.5
      %v1493 = vadd.f32 %v1491, 0.5
      %v1494 = vadd.f32 %v1492, 0.5
      %v1495 = vtanh.pop %v1471
      %v1496 = vtanh.pop %v1472
      %v1497 = vmul.f32 %v1493, %v1495
      %v1498 = vmul.f32 %v1494, %v1496
      %v1499 = vadd.f32 %v1485, %v1497
      %v1500 = vadd.f32 %v1486, %v1498
      %v1501 = vmul.f32 %v1473, 0.5
      %v1502 = vmul.f32 %v1474, 0.5
      %v1503 = vtanh.pop %v1501
      %v1504 = vtanh.pop %v1502
      %v1505 = vmul.f32 %v1503, 0.5
      %v1506 = vmul.f32 %v1504, 0.5
      %v1507 = vadd.f32 %v1505, 0.5
      %v1508 = vadd.f32 %v1506, 0.5
      %v1509 = vtanh.pop %v1499
      %v1510 = vtanh.pop %v1500
      %v1511 = vmul.f32 %v1507, %v1509
      %v1512 = vmul.f32 %v1508, %v1510
      %1513 = vst [vmem:[#allocation4] sm:$0xff] %v1499
      %1514 = vst [vmem:[#allocation4 + $0x8] sm:$0xff] %v1500
      %1515 = vst [vmem:[#allocation3] sm:$0xff] %v1511
      %1516 = vst [vmem:[#allocation3 + $0x8] sm:$0xff] %v1512
      %v1517 = vpack.c.bf16 %v1511, %v1511
      %v1518 = vpack.c.bf16 %v1512, %v1512
      %v1519 = vld [vmem:[#allocation13] sm:$0xff]
      %v1520 = vld [vmem:[#allocation13 + $0x8] sm:$0xff]
      %v1521 = vld [vmem:[#allocation13 + $0x10] sm:$0xff]
      %v1522 = vld [vmem:[#allocation13 + $0x18] sm:$0xff]
      %v1523 = vld [vmem:[#allocation13 + $0x20] sm:$0xff]
      %v1524 = vld [vmem:[#allocation13 + $0x28] sm:$0xff]
      %v1525 = vld [vmem:[#allocation13 + $0x30] sm:$0xff]
      %v1526 = vld [vmem:[#allocation13 + $0x38] sm:$0xff]
      %v1527 = vld [vmem:[#allocation13 + $0x40] sm:$0xff]
      %v1528 = vld [vmem:[#allocation13 + $0x48] sm:$0xff]
      %v1529 = vld [vmem:[#allocation13 + $0x50] sm:$0xff]
      %v1530 = vld [vmem:[#allocation13 + $0x58] sm:$0xff]
      %v1531 = vld [vmem:[#allocation13 + $0x60] sm:$0xff]
      %v1532 = vld [vmem:[#allocation13 + $0x68] sm:$0xff]
      %v1533 = vld [vmem:[#allocation13 + $0x70] sm:$0xff]
      %v1534 = vld [vmem:[#allocation13 + $0x78] sm:$0xff]
      %v1535 = vld [vmem:[#allocation13 + $0x80] sm:$0xff]
      %v1536 = vld [vmem:[#allocation13 + $0x88] sm:$0xff]
      %v1537 = vld [vmem:[#allocation13 + $0x90] sm:$0xff]
      %v1538 = vld [vmem:[#allocation13 + $0x98] sm:$0xff]
      %v1539 = vld [vmem:[#allocation13 + $0xa0] sm:$0xff]
      %v1540 = vld [vmem:[#allocation13 + $0xa8] sm:$0xff]
      %v1541 = vld [vmem:[#allocation13 + $0xb0] sm:$0xff]
      %v1542 = vld [vmem:[#allocation13 + $0xb8] sm:$0xff]
      %v1543 = vld [vmem:[#allocation13 + $0xc0] sm:$0xff]
      %v1544 = vld [vmem:[#allocation13 + $0xc8] sm:$0xff]
      %v1545 = vld [vmem:[#allocation13 + $0xd0] sm:$0xff]
      %v1546 = vld [vmem:[#allocation13 + $0xd8] sm:$0xff]
      %v1547 = vld [vmem:[#allocation13 + $0xe0] sm:$0xff]
      %v1548 = vld [vmem:[#allocation13 + $0xe8] sm:$0xff]
      %v1549 = vld [vmem:[#allocation13 + $0xf0] sm:$0xff]
      %v1550 = vld [vmem:[#allocation13 + $0xf8] sm:$0xff]
      %v1551 = vld [vmem:[#allocation13 + $0x100] sm:$0xff]
      %v1552 = vld [vmem:[#allocation13 + $0x108] sm:$0xff]
      %v1553 = vld [vmem:[#allocation13 + $0x110] sm:$0xff]
      %v1554 = vld [vmem:[#allocation13 + $0x118] sm:$0xff]
      %v1555 = vld [vmem:[#allocation13 + $0x120] sm:$0xff]
      %v1556 = vld [vmem:[#allocation13 + $0x128] sm:$0xff]
      %v1557 = vld [vmem:[#allocation13 + $0x130] sm:$0xff]
      %v1558 = vld [vmem:[#allocation13 + $0x138] sm:$0xff]
      %v1559 = vld [vmem:[#allocation13 + $0x140] sm:$0xff]
      %v1560 = vld [vmem:[#allocation13 + $0x148] sm:$0xff]
      %v1561 = vld [vmem:[#allocation13 + $0x150] sm:$0xff]
      %v1562 = vld [vmem:[#allocation13 + $0x158] sm:$0xff]
      %v1563 = vld [vmem:[#allocation13 + $0x160] sm:$0xff]
      %v1564 = vld [vmem:[#allocation13 + $0x168] sm:$0xff]
      %v1565 = vld [vmem:[#allocation13 + $0x170] sm:$0xff]
      %v1566 = vld [vmem:[#allocation13 + $0x178] sm:$0xff]
      %v1567 = vld [vmem:[#allocation13 + $0x180] sm:$0xff]
      %v1568 = vld [vmem:[#allocation13 + $0x188] sm:$0xff]
      %v1569 = vld [vmem:[#allocation13 + $0x190] sm:$0xff]
      %v1570 = vld [vmem:[#allocation13 + $0x198] sm:$0xff]
      %v1571 = vld [vmem:[#allocation13 + $0x1a0] sm:$0xff]
      %v1572 = vld [vmem:[#allocation13 + $0x1a8] sm:$0xff]
      %v1573 = vld [vmem:[#allocation13 + $0x1b0] sm:$0xff]
      %v1574 = vld [vmem:[#allocation13 + $0x1b8] sm:$0xff]
      %v1575 = vld [vmem:[#allocation13 + $0x1c0] sm:$0xff]
      %v1576 = vld [vmem:[#allocation13 + $0x1c8] sm:$0xff]
      %v1577 = vld [vmem:[#allocation13 + $0x1d0] sm:$0xff]
      %v1578 = vld [vmem:[#allocation13 + $0x1d8] sm:$0xff]
      %v1579 = vld [vmem:[#allocation13 + $0x1e0] sm:$0xff]
      %v1580 = vld [vmem:[#allocation13 + $0x1e8] sm:$0xff]
      %v1581 = vld [vmem:[#allocation13 + $0x1f0] sm:$0xff]
      %v1582 = vld [vmem:[#allocation13 + $0x1f8] sm:$0xff]
      %v1583 = vld [vmem:[#allocation13 + $0x200] sm:$0xff]
      %v1584 = vld [vmem:[#allocation13 + $0x208] sm:$0xff]
      %v1585 = vld [vmem:[#allocation13 + $0x210] sm:$0xff]
      %v1586 = vld [vmem:[#allocation13 + $0x218] sm:$0xff]
      %v1587 = vld [vmem:[#allocation13 + $0x220] sm:$0xff]
      %v1588 = vld [vmem:[#allocation13 + $0x228] sm:$0xff]
      %v1589 = vld [vmem:[#allocation13 + $0x230] sm:$0xff]
      %v1590 = vld [vmem:[#allocation13 + $0x238] sm:$0xff]
      %v1591 = vld [vmem:[#allocation13 + $0x240] sm:$0xff]
      %v1592 = vld [vmem:[#allocation13 + $0x248] sm:$0xff]
      %v1593 = vld [vmem:[#allocation13 + $0x250] sm:$0xff]
      %v1594 = vld [vmem:[#allocation13 + $0x258] sm:$0xff]
      %v1595 = vld [vmem:[#allocation13 + $0x260] sm:$0xff]
      %v1596 = vld [vmem:[#allocation13 + $0x268] sm:$0xff]
      %v1597 = vld [vmem:[#allocation13 + $0x270] sm:$0xff]
      %v1598 = vld [vmem:[#allocation13 + $0x278] sm:$0xff]
      %v1599 = vld [vmem:[#allocation13 + $0x280] sm:$0xff]
      %v1600 = vld [vmem:[#allocation13 + $0x288] sm:$0xff]
      %v1601 = vld [vmem:[#allocation13 + $0x290] sm:$0xff]
      %v1602 = vld [vmem:[#allocation13 + $0x298] sm:$0xff]
      %v1603 = vld [vmem:[#allocation13 + $0x2a0] sm:$0xff]
      %v1604 = vld [vmem:[#allocation13 + $0x2a8] sm:$0xff]
      %v1605 = vld [vmem:[#allocation13 + $0x2b0] sm:$0xff]
      %v1606 = vld [vmem:[#allocation13 + $0x2b8] sm:$0xff]
      %v1607 = vld [vmem:[#allocation13 + $0x2c0] sm:$0xff]
      %v1608 = vld [vmem:[#allocation13 + $0x2c8] sm:$0xff]
      %v1609 = vld [vmem:[#allocation13 + $0x2d0] sm:$0xff]
      %v1610 = vld [vmem:[#allocation13 + $0x2d8] sm:$0xff]
      %v1611 = vld [vmem:[#allocation13 + $0x2e0] sm:$0xff]
      %v1612 = vld [vmem:[#allocation13 + $0x2e8] sm:$0xff]
      %v1613 = vld [vmem:[#allocation13 + $0x2f0] sm:$0xff]
      %v1614 = vld [vmem:[#allocation13 + $0x2f8] sm:$0xff]
      %v1615 = vld [vmem:[#allocation13 + $0x300] sm:$0xff]
      %v1616 = vld [vmem:[#allocation13 + $0x308] sm:$0xff]
      %v1617 = vld [vmem:[#allocation13 + $0x310] sm:$0xff]
      %v1618 = vld [vmem:[#allocation13 + $0x318] sm:$0xff]
      %v1619 = vld [vmem:[#allocation13 + $0x320] sm:$0xff]
      %v1620 = vld [vmem:[#allocation13 + $0x328] sm:$0xff]
      %v1621 = vld [vmem:[#allocation13 + $0x330] sm:$0xff]
      %v1622 = vld [vmem:[#allocation13 + $0x338] sm:$0xff]
      %v1623 = vld [vmem:[#allocation13 + $0x340] sm:$0xff]
      %v1624 = vld [vmem:[#allocation13 + $0x348] sm:$0xff]
      %v1625 = vld [vmem:[#allocation13 + $0x350] sm:$0xff]
      %v1626 = vld [vmem:[#allocation13 + $0x358] sm:$0xff]
      %v1627 = vld [vmem:[#allocation13 + $0x360] sm:$0xff]
      %v1628 = vld [vmem:[#allocation13 + $0x368] sm:$0xff]
      %v1629 = vld [vmem:[#allocation13 + $0x370] sm:$0xff]
      %v1630 = vld [vmem:[#allocation13 + $0x378] sm:$0xff]
      %v1631 = vld [vmem:[#allocation13 + $0x380] sm:$0xff]
      %v1632 = vld [vmem:[#allocation13 + $0x388] sm:$0xff]
      %v1633 = vld [vmem:[#allocation13 + $0x390] sm:$0xff]
      %v1634 = vld [vmem:[#allocation13 + $0x398] sm:$0xff]
      %v1635 = vld [vmem:[#allocation13 + $0x3a0] sm:$0xff]
      %v1636 = vld [vmem:[#allocation13 + $0x3a8] sm:$0xff]
      %v1637 = vld [vmem:[#allocation13 + $0x3b0] sm:$0xff]
      %v1638 = vld [vmem:[#allocation13 + $0x3b8] sm:$0xff]
      %v1639 = vld [vmem:[#allocation13 + $0x3c0] sm:$0xff]
      %v1640 = vld [vmem:[#allocation13 + $0x3c8] sm:$0xff]
      %v1641 = vld [vmem:[#allocation13 + $0x3d0] sm:$0xff]
      %v1642 = vld [vmem:[#allocation13 + $0x3d8] sm:$0xff]
      %v1643 = vld [vmem:[#allocation13 + $0x3e0] sm:$0xff]
      %v1644 = vld [vmem:[#allocation13 + $0x3e8] sm:$0xff]
      %v1645 = vld [vmem:[#allocation13 + $0x3f0] sm:$0xff]
      %v1646 = vld [vmem:[#allocation13 + $0x3f8] sm:$0xff]
      %v1647 = vld [vmem:[%s6] sm:$0xff]
      %v1649 = vlaneseq
      %v1650 = vshrl.u32 %v1649, 7
      %v1651 = vsub.s32 0, %v1650
      %v1652 = vrot.slane %v1647, %v1651
      %v1653 = vlaneseq
      %v1654 = vshrl.u32 %v1653, 7
      %v1655 = vsub.s32 1, %v1654
      %v1656 = vrot.slane %v1647, %v1655
      %v1657 = vlaneseq
      %v1658 = vshrl.u32 %v1657, 7
      %v1659 = vsub.s32 2, %v1658
      %v1660 = vrot.slane %v1647, %v1659
      %v1661 = vlaneseq
      %v1662 = vshrl.u32 %v1661, 7
      %v1663 = vsub.s32 3, %v1662
      %v1664 = vrot.slane %v1647, %v1663
      %v1665 = vlaneseq
      %v1666 = vshrl.u32 %v1665, 7
      %v1667 = vsub.s32 4, %v1666
      %v1668 = vrot.slane %v1647, %v1667
      %v1669 = vlaneseq
      %v1670 = vshrl.u32 %v1669, 7
      %v1671 = vsub.s32 5, %v1670
      %v1672 = vrot.slane %v1647, %v1671
      %v1673 = vlaneseq
      %v1674 = vshrl.u32 %v1673, 7
      %v1675 = vsub.s32 6, %v1674
      %v1676 = vrot.slane %v1647, %v1675
      %v1677 = vlaneseq
      %v1678 = vshrl.u32 %v1677, 7
      %v1679 = vsub.s32 7, %v1678
      %v1680 = vrot.slane %v1647, %v1679
      %v1817 = vunpack.c.l.b16 %v1519
      %v1818 = vunpack.c.h.b16 %v1519
      %v1819 = vunpack.c.l.b16 %v1520
      %v1820 = vunpack.c.h.b16 %v1520
      %v1821 = vunpack.c.l.b16 %v1521
      %v1822 = vunpack.c.h.b16 %v1521
      %v1823 = vunpack.c.l.b16 %v1522
      %v1824 = vunpack.c.h.b16 %v1522
      %v1825 = vunpack.c.l.b16 %v1523
      %v1826 = vunpack.c.h.b16 %v1523
      %v1827 = vunpack.c.l.b16 %v1524
      %v1828 = vunpack.c.h.b16 %v1524
      %v1829 = vunpack.c.l.b16 %v1525
      %v1830 = vunpack.c.h.b16 %v1525
      %v1831 = vunpack.c.l.b16 %v1526
      %v1832 = vunpack.c.h.b16 %v1526
      %v1833 = vunpack.c.l.b16 %v1527
      %v1834 = vunpack.c.h.b16 %v1527
      %v1835 = vunpack.c.l.b16 %v1528
      %v1836 = vunpack.c.h.b16 %v1528
      %v1837 = vunpack.c.l.b16 %v1529
      %v1838 = vunpack.c.h.b16 %v1529
      %v1839 = vunpack.c.l.b16 %v1530
      %v1840 = vunpack.c.h.b16 %v1530
      %v1841 = vunpack.c.l.b16 %v1531
      %v1842 = vunpack.c.h.b16 %v1531
      %v1843 = vunpack.c.l.b16 %v1532
      %v1844 = vunpack.c.h.b16 %v1532
      %v1845 = vunpack.c.l.b16 %v1533
      %v1846 = vunpack.c.h.b16 %v1533
      %v1847 = vunpack.c.l.b16 %v1534
      %v1848 = vunpack.c.h.b16 %v1534
      %v1849 = vunpack.c.l.b16 %v1535
      %v1850 = vunpack.c.h.b16 %v1535
      %v1851 = vunpack.c.l.b16 %v1536
      %v1852 = vunpack.c.h.b16 %v1536
      %v1853 = vunpack.c.l.b16 %v1537
      %v1854 = vunpack.c.h.b16 %v1537
      %v1855 = vunpack.c.l.b16 %v1538
      %v1856 = vunpack.c.h.b16 %v1538
      %v1857 = vunpack.c.l.b16 %v1539
      %v1858 = vunpack.c.h.b16 %v1539
      %v1859 = vunpack.c.l.b16 %v1540
      %v1860 = vunpack.c.h.b16 %v1540
      %v1861 = vunpack.c.l.b16 %v1541
      %v1862 = vunpack.c.h.b16 %v1541
      %v1863 = vunpack.c.l.b16 %v1542
      %v1864 = vunpack.c.h.b16 %v1542
      %v1865 = vunpack.c.l.b16 %v1543
      %v1866 = vunpack.c.h.b16 %v1543
      %v1867 = vunpack.c.l.b16 %v1544
      %v1868 = vunpack.c.h.b16 %v1544
      %v1869 = vunpack.c.l.b16 %v1545
      %v1870 = vunpack.c.h.b16 %v1545
      %v1871 = vunpack.c.l.b16 %v1546
      %v1872 = vunpack.c.h.b16 %v1546
      %v1873 = vunpack.c.l.b16 %v1547
      %v1874 = vunpack.c.h.b16 %v1547
      %v1875 = vunpack.c.l.b16 %v1548
      %v1876 = vunpack.c.h.b16 %v1548
      %v1877 = vunpack.c.l.b16 %v1549
      %v1878 = vunpack.c.h.b16 %v1549
      %v1879 = vunpack.c.l.b16 %v1550
      %v1880 = vunpack.c.h.b16 %v1550
      %v1881 = vunpack.c.l.b16 %v1551
      %v1882 = vunpack.c.h.b16 %v1551
      %v1883 = vunpack.c.l.b16 %v1552
      %v1884 = vunpack.c.h.b16 %v1552
      %v1885 = vunpack.c.l.b16 %v1553
      %v1886 = vunpack.c.h.b16 %v1553
      %v1887 = vunpack.c.l.b16 %v1554
      %v1888 = vunpack.c.h.b16 %v1554
      %v1889 = vunpack.c.l.b16 %v1555
      %v1890 = vunpack.c.h.b16 %v1555
      %v1891 = vunpack.c.l.b16 %v1556
      %v1892 = vunpack.c.h.b16 %v1556
      %v1893 = vunpack.c.l.b16 %v1557
      %v1894 = vunpack.c.h.b16 %v1557
      %v1895 = vunpack.c.l.b16 %v1558
      %v1896 = vunpack.c.h.b16 %v1558
      %v1897 = vunpack.c.l.b16 %v1559
      %v1898 = vunpack.c.h.b16 %v1559
      %v1899 = vunpack.c.l.b16 %v1560
      %v1900 = vunpack.c.h.b16 %v1560
      %v1901 = vunpack.c.l.b16 %v1561
      %v1902 = vunpack.c.h.b16 %v1561
      %v1903 = vunpack.c.l.b16 %v1562
      %v1904 = vunpack.c.h.b16 %v1562
      %v1905 = vunpack.c.l.b16 %v1563
      %v1906 = vunpack.c.h.b16 %v1563
      %v1907 = vunpack.c.l.b16 %v1564
      %v1908 = vunpack.c.h.b16 %v1564
      %v1909 = vunpack.c.l.b16 %v1565
      %v1910 = vunpack.c.h.b16 %v1565
      %v1911 = vunpack.c.l.b16 %v1566
      %v1912 = vunpack.c.h.b16 %v1566
      %v1913 = vunpack.c.l.b16 %v1567
      %v1914 = vunpack.c.h.b16 %v1567
      %v1915 = vunpack.c.l.b16 %v1568
      %v1916 = vunpack.c.h.b16 %v1568
      %v1917 = vunpack.c.l.b16 %v1569
      %v1918 = vunpack.c.h.b16 %v1569
      %v1919 = vunpack.c.l.b16 %v1570
      %v1920 = vunpack.c.h.b16 %v1570
      %v1921 = vunpack.c.l.b16 %v1571
      %v1922 = vunpack.c.h.b16 %v1571
      %v1923 = vunpack.c.l.b16 %v1572
      %v1924 = vunpack.c.h.b16 %v1572
      %v1925 = vunpack.c.l.b16 %v1573
      %v1926 = vunpack.c.h.b16 %v1573
      %v1927 = vunpack.c.l.b16 %v1574
      %v1928 = vunpack.c.h.b16 %v1574
      %v1929 = vunpack.c.l.b16 %v1575
      %v1930 = vunpack.c.h.b16 %v1575
      %v1931 = vunpack.c.l.b16 %v1576
      %v1932 = vunpack.c.h.b16 %v1576
      %v1933 = vunpack.c.l.b16 %v1577
      %v1934 = vunpack.c.h.b16 %v1577
      %v1935 = vunpack.c.l.b16 %v1578
      %v1936 = vunpack.c.h.b16 %v1578
      %v1937 = vunpack.c.l.b16 %v1579
      %v1938 = vunpack.c.h.b16 %v1579
      %v1939 = vunpack.c.l.b16 %v1580
      %v1940 = vunpack.c.h.b16 %v1580
      %v1941 = vunpack.c.l.b16 %v1581
      %v1942 = vunpack.c.h.b16 %v1581
      %v1943 = vunpack.c.l.b16 %v1582
      %v1944 = vunpack.c.h.b16 %v1582
      %v1945 = vunpack.c.l.b16 %v1583
      %v1946 = vunpack.c.h.b16 %v1583
      %v1947 = vunpack.c.l.b16 %v1584
      %v1948 = vunpack.c.h.b16 %v1584
      %v1949 = vunpack.c.l.b16 %v1585
      %v1950 = vunpack.c.h.b16 %v1585
      %v1951 = vunpack.c.l.b16 %v1586
      %v1952 = vunpack.c.h.b16 %v1586
      %v1953 = vunpack.c.l.b16 %v1587
      %v1954 = vunpack.c.h.b16 %v1587
      %v1955 = vunpack.c.l.b16 %v1588
      %v1956 = vunpack.c.h.b16 %v1588
      %v1957 = vunpack.c.l.b16 %v1589
      %v1958 = vunpack.c.h.b16 %v1589
      %v1959 = vunpack.c.l.b16 %v1590
      %v1960 = vunpack.c.h.b16 %v1590
      %v1961 = vunpack.c.l.b16 %v1591
      %v1962 = vunpack.c.h.b16 %v1591
      %v1963 = vunpack.c.l.b16 %v1592
      %v1964 = vunpack.c.h.b16 %v1592
      %v1965 = vunpack.c.l.b16 %v1593
      %v1966 = vunpack.c.h.b16 %v1593
      %v1967 = vunpack.c.l.b16 %v1594
      %v1968 = vunpack.c.h.b16 %v1594
      %v1969 = vunpack.c.l.b16 %v1595
      %v1970 = vunpack.c.h.b16 %v1595
      %v1971 = vunpack.c.l.b16 %v1596
      %v1972 = vunpack.c.h.b16 %v1596
      %v1973 = vunpack.c.l.b16 %v1597
      %v1974 = vunpack.c.h.b16 %v1597
      %v1975 = vunpack.c.l.b16 %v1598
      %v1976 = vunpack.c.h.b16 %v1598
      %v1977 = vunpack.c.l.b16 %v1599
      %v1978 = vunpack.c.h.b16 %v1599
      %v1979 = vunpack.c.l.b16 %v1600
      %v1980 = vunpack.c.h.b16 %v1600
      %v1981 = vunpack.c.l.b16 %v1601
      %v1982 = vunpack.c.h.b16 %v1601
      %v1983 = vunpack.c.l.b16 %v1602
      %v1984 = vunpack.c.h.b16 %v1602
      %v1985 = vunpack.c.l.b16 %v1603
      %v1986 = vunpack.c.h.b16 %v1603
      %v1987 = vunpack.c.l.b16 %v1604
      %v1988 = vunpack.c.h.b16 %v1604
      %v1989 = vunpack.c.l.b16 %v1605
      %v1990 = vunpack.c.h.b16 %v1605
      %v1991 = vunpack.c.l.b16 %v1606
      %v1992 = vunpack.c.h.b16 %v1606
      %v1993 = vunpack.c.l.b16 %v1607
      %v1994 = vunpack.c.h.b16 %v1607
      %v1995 = vunpack.c.l.b16 %v1608
      %v1996 = vunpack.c.h.b16 %v1608
      %v1997 = vunpack.c.l.b16 %v1609
      %v1998 = vunpack.c.h.b16 %v1609
      %v1999 = vunpack.c.l.b16 %v1610
      %v2000 = vunpack.c.h.b16 %v1610
      %v2001 = vunpack.c.l.b16 %v1611
      %v2002 = vunpack.c.h.b16 %v1611
      %v2003 = vunpack.c.l.b16 %v1612
      %v2004 = vunpack.c.h.b16 %v1612
      %v2005 = vunpack.c.l.b16 %v1613
      %v2006 = vunpack.c.h.b16 %v1613
      %v2007 = vunpack.c.l.b16 %v1614
      %v2008 = vunpack.c.h.b16 %v1614
      %v2009 = vunpack.c.l.b16 %v1615
      %v2010 = vunpack.c.h.b16 %v1615
      %v2011 = vunpack.c.l.b16 %v1616
      %v2012 = vunpack.c.h.b16 %v1616
      %v2013 = vunpack.c.l.b16 %v1617
      %v2014 = vunpack.c.h.b16 %v1617
      %v2015 = vunpack.c.l.b16 %v1618
      %v2016 = vunpack.c.h.b16 %v1618
      %v2017 = vunpack.c.l.b16 %v1619
      %v2018 = vunpack.c.h.b16 %v1619
      %v2019 = vunpack.c.l.b16 %v1620
      %v2020 = vunpack.c.h.b16 %v1620
      %v2021 = vunpack.c.l.b16 %v1621
      %v2022 = vunpack.c.h.b16 %v1621
      %v2023 = vunpack.c.l.b16 %v1622
      %v2024 = vunpack.c.h.b16 %v1622
      %v2025 = vunpack.c.l.b16 %v1623
      %v2026 = vunpack.c.h.b16 %v1623
      %v2027 = vunpack.c.l.b16 %v1624
      %v2028 = vunpack.c.h.b16 %v1624
      %v2029 = vunpack.c.l.b16 %v1625
      %v2030 = vunpack.c.h.b16 %v1625
      %v2031 = vunpack.c.l.b16 %v1626
      %v2032 = vunpack.c.h.b16 %v1626
      %v2033 = vunpack.c.l.b16 %v1627
      %v2034 = vunpack.c.h.b16 %v1627
      %v2035 = vunpack.c.l.b16 %v1628
      %v2036 = vunpack.c.h.b16 %v1628
      %v2037 = vunpack.c.l.b16 %v1629
      %v2038 = vunpack.c.h.b16 %v1629
      %v2039 = vunpack.c.l.b16 %v1630
      %v2040 = vunpack.c.h.b16 %v1630
      %v2041 = vunpack.c.l.b16 %v1631
      %v2042 = vunpack.c.h.b16 %v1631
      %v2043 = vunpack.c.l.b16 %v1632
      %v2044 = vunpack.c.h.b16 %v1632
      %v2045 = vunpack.c.l.b16 %v1633
      %v2046 = vunpack.c.h.b16 %v1633
      %v2047 = vunpack.c.l.b16 %v1634
      %v2048 = vunpack.c.h.b16 %v1634
      %v2049 = vunpack.c.l.b16 %v1635
      %v2050 = vunpack.c.h.b16 %v1635
      %v2051 = vunpack.c.l.b16 %v1636
      %v2052 = vunpack.c.h.b16 %v1636
      %v2053 = vunpack.c.l.b16 %v1637
      %v2054 = vunpack.c.h.b16 %v1637
      %v2055 = vunpack.c.l.b16 %v1638
      %v2056 = vunpack.c.h.b16 %v1638
      %v2057 = vunpack.c.l.b16 %v1639
      %v2058 = vunpack.c.h.b16 %v1639
      %v2059 = vunpack.c.l.b16 %v1640
      %v2060 = vunpack.c.h.b16 %v1640
      %v2061 = vunpack.c.l.b16 %v1641
      %v2062 = vunpack.c.h.b16 %v1641
      %v2063 = vunpack.c.l.b16 %v1642
      %v2064 = vunpack.c.h.b16 %v1642
      %v2065 = vunpack.c.l.b16 %v1643
      %v2066 = vunpack.c.h.b16 %v1643
      %v2067 = vunpack.c.l.b16 %v1644
      %v2068 = vunpack.c.h.b16 %v1644
      %v2069 = vunpack.c.l.b16 %v1645
      %v2070 = vunpack.c.h.b16 %v1645
      %v2071 = vunpack.c.l.b16 %v1646
      %v2072 = vunpack.c.h.b16 %v1646
      %v2073 = vpack.c.b16 %v1825, %v1817
      %v2074 = vpack.c.b16 %v1826, %v1818
      %v2075 = vpack.c.b16 %v1827, %v1819
      %v2076 = vpack.c.b16 %v1828, %v1820
      %v2077 = vpack.c.b16 %v1829, %v1821
      %v2078 = vpack.c.b16 %v1830, %v1822
      %v2079 = vpack.c.b16 %v1831, %v1823
      %v2080 = vpack.c.b16 %v1832, %v1824
      %v2081 = vpack.c.b16 %v1841, %v1833
      %v2082 = vpack.c.b16 %v1842, %v1834
      %v2083 = vpack.c.b16 %v1843, %v1835
      %v2084 = vpack.c.b16 %v1844, %v1836
      %v2085 = vpack.c.b16 %v1845, %v1837
      %v2086 = vpack.c.b16 %v1846, %v1838
      %v2087 = vpack.c.b16 %v1847, %v1839
      %v2088 = vpack.c.b16 %v1848, %v1840
      %v2089 = vpack.c.b16 %v1857, %v1849
      %v2090 = vpack.c.b16 %v1858, %v1850
      %v2091 = vpack.c.b16 %v1859, %v1851
      %v2092 = vpack.c.b16 %v1860, %v1852
      %v2093 = vpack.c.b16 %v1861, %v1853
      %v2094 = vpack.c.b16 %v1862, %v1854
      %v2095 = vpack.c.b16 %v1863, %v1855
      %v2096 = vpack.c.b16 %v1864, %v1856
      %v2097 = vpack.c.b16 %v1873, %v1865
      %v2098 = vpack.c.b16 %v1874, %v1866
      %v2099 = vpack.c.b16 %v1875, %v1867
      %v2100 = vpack.c.b16 %v1876, %v1868
      %v2101 = vpack.c.b16 %v1877, %v1869
      %v2102 = vpack.c.b16 %v1878, %v1870
      %v2103 = vpack.c.b16 %v1879, %v1871
      %v2104 = vpack.c.b16 %v1880, %v1872
      %v2105 = vpack.c.b16 %v1889, %v1881
      %v2106 = vpack.c.b16 %v1890, %v1882
      %v2107 = vpack.c.b16 %v1891, %v1883
      %v2108 = vpack.c.b16 %v1892, %v1884
      %v2109 = vpack.c.b16 %v1893, %v1885
      %v2110 = vpack.c.b16 %v1894, %v1886
      %v2111 = vpack.c.b16 %v1895, %v1887
      %v2112 = vpack.c.b16 %v1896, %v1888
      %v2113 = vpack.c.b16 %v1905, %v1897
      %v2114 = vpack.c.b16 %v1906, %v1898
      %v2115 = vpack.c.b16 %v1907, %v1899
      %v2116 = vpack.c.b16 %v1908, %v1900
      %v2117 = vpack.c.b16 %v1909, %v1901
      %v2118 = vpack.c.b16 %v1910, %v1902
      %v2119 = vpack.c.b16 %v1911, %v1903
      %v2120 = vpack.c.b16 %v1912, %v1904
      %v2121 = vpack.c.b16 %v1921, %v1913
      %v2122 = vpack.c.b16 %v1922, %v1914
      %v2123 = vpack.c.b16 %v1923, %v1915
      %v2124 = vpack.c.b16 %v1924, %v1916
      %v2125 = vpack.c.b16 %v1925, %v1917
      %v2126 = vpack.c.b16 %v1926, %v1918
      %v2127 = vpack.c.b16 %v1927, %v1919
      %v2128 = vpack.c.b16 %v1928, %v1920
      %v2129 = vpack.c.b16 %v1937, %v1929
      %v2130 = vpack.c.b16 %v1938, %v1930
      %v2131 = vpack.c.b16 %v1939, %v1931
      %v2132 = vpack.c.b16 %v1940, %v1932
      %v2133 = vpack.c.b16 %v1941, %v1933
      %v2134 = vpack.c.b16 %v1942, %v1934
      %v2135 = vpack.c.b16 %v1943, %v1935
      %v2136 = vpack.c.b16 %v1944, %v1936
      %v2137 = vpack.c.b16 %v1953, %v1945
      %v2138 = vpack.c.b16 %v1954, %v1946
      %v2139 = vpack.c.b16 %v1955, %v1947
      %v2140 = vpack.c.b16 %v1956, %v1948
      %v2141 = vpack.c.b16 %v1957, %v1949
      %v2142 = vpack.c.b16 %v1958, %v1950
      %v2143 = vpack.c.b16 %v1959, %v1951
      %v2144 = vpack.c.b16 %v1960, %v1952
      %v2145 = vpack.c.b16 %v1969, %v1961
      %v2146 = vpack.c.b16 %v1970, %v1962
      %v2147 = vpack.c.b16 %v1971, %v1963
      %v2148 = vpack.c.b16 %v1972, %v1964
      %v2149 = vpack.c.b16 %v1973, %v1965
      %v2150 = vpack.c.b16 %v1974, %v1966
      %v2151 = vpack.c.b16 %v1975, %v1967
      %v2152 = vpack.c.b16 %v1976, %v1968
      %v2153 = vpack.c.b16 %v1985, %v1977
      %v2154 = vpack.c.b16 %v1986, %v1978
      %v2155 = vpack.c.b16 %v1987, %v1979
      %v2156 = vpack.c.b16 %v1988, %v1980
      %v2157 = vpack.c.b16 %v1989, %v1981
      %v2158 = vpack.c.b16 %v1990, %v1982
      %v2159 = vpack.c.b16 %v1991, %v1983
      %v2160 = vpack.c.b16 %v1992, %v1984
      %v2161 = vpack.c.b16 %v2001, %v1993
      %v2162 = vpack.c.b16 %v2002, %v1994
      %v2163 = vpack.c.b16 %v2003, %v1995
      %v2164 = vpack.c.b16 %v2004, %v1996
      %v2165 = vpack.c.b16 %v2005, %v1997
      %v2166 = vpack.c.b16 %v2006, %v1998
      %v2167 = vpack.c.b16 %v2007, %v1999
      %v2168 = vpack.c.b16 %v2008, %v2000
      %v2169 = vpack.c.b16 %v2017, %v2009
      %v2170 = vpack.c.b16 %v2018, %v2010
      %v2171 = vpack.c.b16 %v2019, %v2011
      %v2172 = vpack.c.b16 %v2020, %v2012
      %v2173 = vpack.c.b16 %v2021, %v2013
      %v2174 = vpack.c.b16 %v2022, %v2014
      %v2175 = vpack.c.b16 %v2023, %v2015
      %v2176 = vpack.c.b16 %v2024, %v2016
      %v2177 = vpack.c.b16 %v2033, %v2025
      %v2178 = vpack.c.b16 %v2034, %v2026
      %v2179 = vpack.c.b16 %v2035, %v2027
      %v2180 = vpack.c.b16 %v2036, %v2028
      %v2181 = vpack.c.b16 %v2037, %v2029
      %v2182 = vpack.c.b16 %v2038, %v2030
      %v2183 = vpack.c.b16 %v2039, %v2031
      %v2184 = vpack.c.b16 %v2040, %v2032
      %v2185 = vpack.c.b16 %v2049, %v2041
      %v2186 = vpack.c.b16 %v2050, %v2042
      %v2187 = vpack.c.b16 %v2051, %v2043
      %v2188 = vpack.c.b16 %v2052, %v2044
      %v2189 = vpack.c.b16 %v2053, %v2045
      %v2190 = vpack.c.b16 %v2054, %v2046
      %v2191 = vpack.c.b16 %v2055, %v2047
      %v2192 = vpack.c.b16 %v2056, %v2048
      %v2193 = vpack.c.b16 %v2065, %v2057
      %v2194 = vpack.c.b16 %v2066, %v2058
      %v2195 = vpack.c.b16 %v2067, %v2059
      %v2196 = vpack.c.b16 %v2068, %v2060
      %v2197 = vpack.c.b16 %v2069, %v2061
      %v2198 = vpack.c.b16 %v2070, %v2062
      %v2199 = vpack.c.b16 %v2071, %v2063
      %v2200 = vpack.c.b16 %v2072, %v2064
      %2329 = vmatprep.subr.bf16.mxu0 %v2130
      %2330 = vmatpush1.bf16.msra.mxu0 %v2129
      %2331 = vmatprep.subr.bf16.mxu0 %v2122
      %2332 = vmatpush1.bf16.msra.mxu0 %v2121
      %2333 = vmatprep.subr.bf16.mxu0 %v2114
      %2334 = vmatpush1.bf16.msra.mxu0 %v2113
      %2335 = vmatprep.subr.bf16.mxu0 %v2106
      %2336 = vmatpush1.bf16.msra.mxu0 %v2105
      %2337 = vmatprep.subr.bf16.mxu0 %v2098
      %2338 = vmatpush1.bf16.msra.mxu0 %v2097
      %2339 = vmatprep.subr.bf16.mxu0 %v2090
      %2340 = vmatpush1.bf16.msra.mxu0 %v2089
      %2341 = vmatprep.subr.bf16.mxu0 %v2082
      %2342 = vmatpush1.bf16.msra.mxu0 %v2081
      %2343 = vmatprep.subr.bf16.mxu0 %v2074
      %2344 = vmatpush1.bf16.msra.mxu0 %v2073
      %2345 = vmatprep.subr.bf16.mxu0 %v2194
      %2346 = vmatpush2.bf16.msra.mxu0 %v2193
      %2347 = vmatprep.subr.bf16.mxu0 %v2186
      %2348 = vmatpush2.bf16.msra.mxu0 %v2185
      %2349 = vmatprep.subr.bf16.mxu0 %v2178
      %2350 = vmatpush2.bf16.msra.mxu0 %v2177
      %2351 = vmatprep.subr.bf16.mxu0 %v2170
      %2352 = vmatpush2.bf16.msra.mxu0 %v2169
      %2353 = vmatprep.subr.bf16.mxu0 %v2162
      %2354 = vmatpush2.bf16.msra.mxu0 %v2161
      %2355 = vmatprep.subr.bf16.mxu0 %v2154
      %2356 = vmatpush2.bf16.msra.mxu0 %v2153
      %2357 = vmatprep.subr.bf16.mxu0 %v2146
      %2358 = vmatpush2.bf16.msra.mxu0 %v2145
      %2359 = vmatprep.subr.bf16.mxu0 %v2138
      %2360 = vmatpush2.bf16.msra.mxu0 %v2137
      %2361 = vmatprep.mubr.bf16.mxu0 %v1518
      %2362 = vmatmul.mubr.bf16.gmra.mxu0 %v1517
      %v2363 = vpop.f32.mrf.mxu0
      %v2364 = vadd.f32 %v1652, %v2363
      %v2365 = vpop.f32.mrf.mxu0
      %v2366 = vadd.f32 %v1656, %v2365
      %v2367 = vpop.f32.mrf.mxu0
      %v2368 = vpop.f32.mrf.mxu0
      %2369 = vdwg.mxu0
      %2370 = vmatprep.subr.bf16.mxu0 %v2132
      %2371 = vmatpush1.bf16.msra.mxu0 %v2131
      %2372 = vmatprep.subr.bf16.mxu0 %v2124
      %2373 = vmatpush1.bf16.msra.mxu0 %v2123
      %2374 = vmatprep.subr.bf16.mxu0 %v2116
      %2375 = vmatpush1.bf16.msra.mxu0 %v2115
      %2376 = vmatprep.subr.bf16.mxu0 %v2108
      %2377 = vmatpush1.bf16.msra.mxu0 %v2107
      %2378 = vmatprep.subr.bf16.mxu0 %v2100
      %2379 = vmatpush1.bf16.msra.mxu0 %v2099
      %2380 = vmatprep.subr.bf16.mxu0 %v2092
      %2381 = vmatpush1.bf16.msra.mxu0 %v2091
      %2382 = vmatprep.subr.bf16.mxu0 %v2084
      %2383 = vmatpush1.bf16.msra.mxu0 %v2083
      %2384 = vmatprep.subr.bf16.mxu0 %v2076
      %2385 = vmatpush1.bf16.msra.mxu0 %v2075
      %2386 = vmatprep.subr.bf16.mxu0 %v2196
      %2387 = vmatpush2.bf16.msra.mxu0 %v2195
      %2388 = vmatprep.subr.bf16.mxu0 %v2188
      %2389 = vmatpush2.bf16.msra.mxu0 %v2187
      %2390 = vmatprep.subr.bf16.mxu0 %v2180
      %2391 = vmatpush2.bf16.msra.mxu0 %v2179
      %2392 = vmatprep.subr.bf16.mxu0 %v2172
      %2393 = vmatpush2.bf16.msra.mxu0 %v2171
      %2394 = vmatprep.subr.bf16.mxu0 %v2164
      %2395 = vmatpush2.bf16.msra.mxu0 %v2163
      %2396 = vmatprep.subr.bf16.mxu0 %v2156
      %2397 = vmatpush2.bf16.msra.mxu0 %v2155
      %2398 = vmatprep.subr.bf16.mxu0 %v2148
      %2399 = vmatpush2.bf16.msra.mxu0 %v2147
      %2400 = vmatprep.subr.bf16.mxu0 %v2140
      %2401 = vmatpush2.bf16.msra.mxu0 %v2139
      %2402 = vmatprep.mubr.bf16.mxu0 %v1518
      %2403 = vmatmul.mubr.bf16.gmra.mxu0 %v1517
      %v2404 = vpop.f32.mrf.mxu0
      %v2405 = vadd.f32 %v1660, %v2404
      %v2406 = vpop.f32.mrf.mxu0
      %v2407 = vadd.f32 %v1664, %v2406
      %v2408 = vpop.f32.mrf.mxu0
      %v2409 = vpop.f32.mrf.mxu0
      %2410 = vdwg.mxu0
      %2411 = vmatprep.subr.bf16.mxu0 %v2134
      %2412 = vmatpush1.bf16.msra.mxu0 %v2133
      %2413 = vmatprep.subr.bf16.mxu0 %v2126
      %2414 = vmatpush1.bf16.msra.mxu0 %v2125
      %2415 = vmatprep.subr.bf16.mxu0 %v2118
      %2416 = vmatpush1.bf16.msra.mxu0 %v2117
      %2417 = vmatprep.subr.bf16.mxu0 %v2110
      %2418 = vmatpush1.bf16.msra.mxu0 %v2109
      %2419 = vmatprep.subr.bf16.mxu0 %v2102
      %2420 = vmatpush1.bf16.msra.mxu0 %v2101
      %2421 = vmatprep.subr.bf16.mxu0 %v2094
      %2422 = vmatpush1.bf16.msra.mxu0 %v2093
      %2423 = vmatprep.subr.bf16.mxu0 %v2086
      %2424 = vmatpush1.bf16.msra.mxu0 %v2085
      %2425 = vmatprep.subr.bf16.mxu0 %v2078
      %2426 = vmatpush1.bf16.msra.mxu0 %v2077
      %2427 = vmatprep.subr.bf16.mxu0 %v2198
      %2428 = vmatpush2.bf16.msra.mxu0 %v2197
      %2429 = vmatprep.subr.bf16.mxu0 %v2190
      %2430 = vmatpush2.bf16.msra.mxu0 %v2189
      %2431 = vmatprep.subr.bf16.mxu0 %v2182
      %2432 = vmatpush2.bf16.msra.mxu0 %v2181
      %2433 = vmatprep.subr.bf16.mxu0 %v2174
      %2434 = vmatpush2.bf16.msra.mxu0 %v2173
      %2435 = vmatprep.subr.bf16.mxu0 %v2166
      %2436 = vmatpush2.bf16.msra.mxu0 %v2165
      %2437 = vmatprep.subr.bf16.mxu0 %v2158
      %2438 = vmatpush2.bf16.msra.mxu0 %v2157
      %2439 = vmatprep.subr.bf16.mxu0 %v2150
      %2440 = vmatpush2.bf16.msra.mxu0 %v2149
      %2441 = vmatprep.subr.bf16.mxu0 %v2142
      %2442 = vmatpush2.bf16.msra.mxu0 %v2141
      %2443 = vmatprep.mubr.bf16.mxu0 %v1518
      %2444 = vmatmul.mubr.bf16.gmra.mxu0 %v1517
      %v2445 = vpop.f32.mrf.mxu0
      %v2446 = vadd.f32 %v1668, %v2445
      %v2447 = vpop.f32.mrf.mxu0
      %v2448 = vadd.f32 %v1672, %v2447
      %v2449 = vpop.f32.mrf.mxu0
      %v2450 = vpop.f32.mrf.mxu0
      %2451 = vdwg.mxu0
      %2452 = vmatprep.subr.bf16.mxu0 %v2136
      %2453 = vmatpush1.bf16.msra.mxu0 %v2135
      %2454 = vmatprep.subr.bf16.mxu0 %v2128
      %2455 = vmatpush1.bf16.msra.mxu0 %v2127
      %2456 = vmatprep.subr.bf16.mxu0 %v2120
      %2457 = vmatpush1.bf16.msra.mxu0 %v2119
      %2458 = vmatprep.subr.bf16.mxu0 %v2112
      %2459 = vmatpush1.bf16.msra.mxu0 %v2111
      %2460 = vmatprep.subr.bf16.mxu0 %v2104
      %2461 = vmatpush1.bf16.msra.mxu0 %v2103
      %2462 = vmatprep.subr.bf16.mxu0 %v2096
      %2463 = vmatpush1.bf16.msra.mxu0 %v2095
      %2464 = vmatprep.subr.bf16.mxu0 %v2088
      %2465 = vmatpush1.bf16.msra.mxu0 %v2087
      %2466 = vmatprep.subr.bf16.mxu0 %v2080
      %2467 = vmatpush1.bf16.msra.mxu0 %v2079
      %2468 = vmatprep.subr.bf16.mxu0 %v2200
      %2469 = vmatpush2.bf16.msra.mxu0 %v2199
      %2470 = vmatprep.subr.bf16.mxu0 %v2192
      %2471 = vmatpush2.bf16.msra.mxu0 %v2191
      %2472 = vmatprep.subr.bf16.mxu0 %v2184
      %2473 = vmatpush2.bf16.msra.mxu0 %v2183
      %2474 = vmatprep.subr.bf16.mxu0 %v2176
      %2475 = vmatpush2.bf16.msra.mxu0 %v2175
      %2476 = vmatprep.subr.bf16.mxu0 %v2168
      %2477 = vmatpush2.bf16.msra.mxu0 %v2167
      %2478 = vmatprep.subr.bf16.mxu0 %v2160
      %2479 = vmatpush2.bf16.msra.mxu0 %v2159
      %2480 = vmatprep.subr.bf16.mxu0 %v2152
      %2481 = vmatpush2.bf16.msra.mxu0 %v2151
      %2482 = vmatprep.subr.bf16.mxu0 %v2144
      %2483 = vmatpush2.bf16.msra.mxu0 %v2143
      %2484 = vmatprep.mubr.bf16.mxu0 %v1518
      %2485 = vmatmul.mubr.bf16.gmra.mxu0 %v1517
      %v2486 = vpop.f32.mrf.mxu0
      %v2487 = vadd.f32 %v1676, %v2486
      %v2488 = vpop.f32.mrf.mxu0
      %v2489 = vadd.f32 %v1680, %v2488
      %v2490 = vpop.f32.mrf.mxu0
      %v2491 = vpop.f32.mrf.mxu0
      %2492 = vdwg.mxu0
      %v2493 = vpack.c.bf16 %v2364, %v2364
      %v2494 = vpack.c.bf16 %v2366, %v2366
      %v2495 = vpack.c.bf16 %v2405, %v2405
      %v2496 = vpack.c.bf16 %v2407, %v2407
      %v2497 = vpack.c.bf16 %v2446, %v2446
      %v2498 = vpack.c.bf16 %v2448, %v2448
      %v2499 = vpack.c.bf16 %v2487, %v2487
      %v2500 = vpack.c.bf16 %v2489, %v2489
      %v2509 = vunpack.c.l.b16 %v2493
      %v2510 = vunpack.c.l.b16 %v2494
      %v2511 = vunpack.c.l.b16 %v2495
      %v2512 = vunpack.c.l.b16 %v2496
      %v2513 = vunpack.c.l.b16 %v2497
      %v2514 = vunpack.c.l.b16 %v2498
      %v2515 = vunpack.c.l.b16 %v2499
      %v2516 = vunpack.c.l.b16 %v2500
      %v2517 = vpack.c.b16 %v2510, %v2509
      %v2518 = vpack.c.b16 %v2512, %v2511
      %v2519 = vpack.c.b16 %v2514, %v2513
      %v2520 = vpack.c.b16 %v2516, %v2515
      %s2525 = smul.u32 %s168, 8
      %s2526 = smul.addr %s2525, 4
      %s2527 = scalar_lea.vmem [#allocation2], %s2526
      %2528 = vst [vmem:[%s2527] sm:$0xff] %v2517
      %2529 = vst [vmem:[%s2527 + $0x8] sm:$0xff] %v2518
      %2530 = vst [vmem:[%s2527 + $0x10] sm:$0xff] %v2519
      %2531 = vst [vmem:[%s2527 + $0x18] sm:$0xff] %v2520
    $region90: #{tpu_custom_call.1} parent=1 // loop_footer
      %s172 = sadd.s32 1, %s168
    $region91: #{tpu_custom_call.1} parent=1 // loop_footer_branch
      %167 = sbr.rel target = $region87
    $region92: #{tpu_custom_call.1} parent=1 // loop_exit
      _
    %2532 = vst [vmem:[#allocation3] sm:$0xff] 0.0
    %2533 = vst [vmem:[#allocation3 + $0x8] sm:$0xff] 0.0
    %2534 = vst [vmem:[#allocation4] sm:$0xff] 0.0
    %2535 = vst [vmem:[#allocation4 + $0x8] sm:$0xff] 0.0
    loop: start=0, step=1, limit=8
    $region93: #{tpu_custom_call.1} parent=1 // loop_pre_header
      _
    $region94: #{tpu_custom_call.1} parent=1 // loop_header
      %s2537 = sphi 0, %s2541
      %p2538 = scmp.ge.s32.totalorder %s2537, 8
    $region95: #{tpu_custom_call.1} parent=1 // loop_header_branch
      %2540 = sbr.rel (%p2538) target = $region99
    $region96: #{tpu_custom_call.1} parent=1 // loop_body
      %s2542 = smul.u32 %s2537, 8
      %s2543 = smul.addr %s2542, 4
      %s2544 = scalar_lea.vmem [#allocation2], %s2543
      %v2545 = vld [vmem:[%s2544] sm:$0xff]
      %v2546 = vld [vmem:[%s2544 + $0x8] sm:$0xff]
      %v2547 = vld [vmem:[%s2544 + $0x10] sm:$0xff]
      %v2548 = vld [vmem:[%s2544 + $0x18] sm:$0xff]
      %v2549 = vunpack.c.l.bf16 %v2545
      %v2550 = vunpack.c.h.bf16 %v2545
      %v2551 = vunpack.c.l.bf16 %v2546
      %v2552 = vunpack.c.h.bf16 %v2546
      %v2553 = vunpack.c.l.bf16 %v2547
      %v2554 = vunpack.c.h.bf16 %v2547
      %v2555 = vunpack.c.l.bf16 %v2548
      %v2556 = vunpack.c.h.bf16 %v2548
      %v2557 = vld [vmem:[#allocation3] sm:$0xff]
      %v2558 = vld [vmem:[#allocation3 + $0x8] sm:$0xff]
      %v2559 = vpack.c.bf16 %v2557, %v2557
      %v2560 = vpack.c.bf16 %v2558, %v2558
      %v2561 = vld [vmem:[#allocation14] sm:$0xff]
      %v2562 = vld [vmem:[#allocation14 + $0x8] sm:$0xff]
      %v2563 = vld [vmem:[#allocation14 + $0x10] sm:$0xff]
      %v2564 = vld [vmem:[#allocation14 + $0x18] sm:$0xff]
      %v2565 = vld [vmem:[#allocation14 + $0x20] sm:$0xff]
      %v2566 = vld [vmem:[#allocation14 + $0x28] sm:$0xff]
      %v2567 = vld [vmem:[#allocation14 + $0x30] sm:$0xff]
      %v2568 = vld [vmem:[#allocation14 + $0x38] sm:$0xff]
      %v2569 = vld [vmem:[#allocation14 + $0x40] sm:$0xff]
      %v2570 = vld [vmem:[#allocation14 + $0x48] sm:$0xff]
      %v2571 = vld [vmem:[#allocation14 + $0x50] sm:$0xff]
      %v2572 = vld [vmem:[#allocation14 + $0x58] sm:$0xff]
      %v2573 = vld [vmem:[#allocation14 + $0x60] sm:$0xff]
      %v2574 = vld [vmem:[#allocation14 + $0x68] sm:$0xff]
      %v2575 = vld [vmem:[#allocation14 + $0x70] sm:$0xff]
      %v2576 = vld [vmem:[#allocation14 + $0x78] sm:$0xff]
      %v2577 = vld [vmem:[#allocation14 + $0x80] sm:$0xff]
      %v2578 = vld [vmem:[#allocation14 + $0x88] sm:$0xff]
      %v2579 = vld [vmem:[#allocation14 + $0x90] sm:$0xff]
      %v2580 = vld [vmem:[#allocation14 + $0x98] sm:$0xff]
      %v2581 = vld [vmem:[#allocation14 + $0xa0] sm:$0xff]
      %v2582 = vld [vmem:[#allocation14 + $0xa8] sm:$0xff]
      %v2583 = vld [vmem:[#allocation14 + $0xb0] sm:$0xff]
      %v2584 = vld [vmem:[#allocation14 + $0xb8] sm:$0xff]
      %v2585 = vld [vmem:[#allocation14 + $0xc0] sm:$0xff]
      %v2586 = vld [vmem:[#allocation14 + $0xc8] sm:$0xff]
      %v2587 = vld [vmem:[#allocation14 + $0xd0] sm:$0xff]
      %v2588 = vld [vmem:[#allocation14 + $0xd8] sm:$0xff]
      %v2589 = vld [vmem:[#allocation14 + $0xe0] sm:$0xff]
      %v2590 = vld [vmem:[#allocation14 + $0xe8] sm:$0xff]
      %v2591 = vld [vmem:[#allocation14 + $0xf0] sm:$0xff]
      %v2592 = vld [vmem:[#allocation14 + $0xf8] sm:$0xff]
      %v2593 = vld [vmem:[#allocation14 + $0x100] sm:$0xff]
      %v2594 = vld [vmem:[#allocation14 + $0x108] sm:$0xff]
      %v2595 = vld [vmem:[#allocation14 + $0x110] sm:$0xff]
      %v2596 = vld [vmem:[#allocation14 + $0x118] sm:$0xff]
      %v2597 = vld [vmem:[#allocation14 + $0x120] sm:$0xff]
      %v2598 = vld [vmem:[#allocation14 + $0x128] sm:$0xff]
      %v2599 = vld [vmem:[#allocation14 + $0x130] sm:$0xff]
      %v2600 = vld [vmem:[#allocation14 + $0x138] sm:$0xff]
      %v2601 = vld [vmem:[#allocation14 + $0x140] sm:$0xff]
      %v2602 = vld [vmem:[#allocation14 + $0x148] sm:$0xff]
      %v2603 = vld [vmem:[#allocation14 + $0x150] sm:$0xff]
      %v2604 = vld [vmem:[#allocation14 + $0x158] sm:$0xff]
      %v2605 = vld [vmem:[#allocation14 + $0x160] sm:$0xff]
      %v2606 = vld [vmem:[#allocation14 + $0x168] sm:$0xff]
      %v2607 = vld [vmem:[#allocation14 + $0x170] sm:$0xff]
      %v2608 = vld [vmem:[#allocation14 + $0x178] sm:$0xff]
      %v2609 = vld [vmem:[#allocation14 + $0x180] sm:$0xff]
      %v2610 = vld [vmem:[#allocation14 + $0x188] sm:$0xff]
      %v2611 = vld [vmem:[#allocation14 + $0x190] sm:$0xff]
      %v2612 = vld [vmem:[#allocation14 + $0x198] sm:$0xff]
      %v2613 = vld [vmem:[#allocation14 + $0x1a0] sm:$0xff]
      %v2614 = vld [vmem:[#allocation14 + $0x1a8] sm:$0xff]
      %v2615 = vld [vmem:[#allocation14 + $0x1b0] sm:$0xff]
      %v2616 = vld [vmem:[#allocation14 + $0x1b8] sm:$0xff]
      %v2617 = vld [vmem:[#allocation14 + $0x1c0] sm:$0xff]
      %v2618 = vld [vmem:[#allocation14 + $0x1c8] sm:$0xff]
      %v2619 = vld [vmem:[#allocation14 + $0x1d0] sm:$0xff]
      %v2620 = vld [vmem:[#allocation14 + $0x1d8] sm:$0xff]
      %v2621 = vld [vmem:[#allocation14 + $0x1e0] sm:$0xff]
      %v2622 = vld [vmem:[#allocation14 + $0x1e8] sm:$0xff]
      %v2623 = vld [vmem:[#allocation14 + $0x1f0] sm:$0xff]
      %v2624 = vld [vmem:[#allocation14 + $0x1f8] sm:$0xff]
      %v2625 = vld [vmem:[#allocation14 + $0x200] sm:$0xff]
      %v2626 = vld [vmem:[#allocation14 + $0x208] sm:$0xff]
      %v2627 = vld [vmem:[#allocation14 + $0x210] sm:$0xff]
      %v2628 = vld [vmem:[#allocation14 + $0x218] sm:$0xff]
      %v2629 = vld [vmem:[#allocation14 + $0x220] sm:$0xff]
      %v2630 = vld [vmem:[#allocation14 + $0x228] sm:$0xff]
      %v2631 = vld [vmem:[#allocation14 + $0x230] sm:$0xff]
      %v2632 = vld [vmem:[#allocation14 + $0x238] sm:$0xff]
      %v2633 = vld [vmem:[#allocation14 + $0x240] sm:$0xff]
      %v2634 = vld [vmem:[#allocation14 + $0x248] sm:$0xff]
      %v2635 = vld [vmem:[#allocation14 + $0x250] sm:$0xff]
      %v2636 = vld [vmem:[#allocation14 + $0x258] sm:$0xff]
      %v2637 = vld [vmem:[#allocation14 + $0x260] sm:$0xff]
      %v2638 = vld [vmem:[#allocation14 + $0x268] sm:$0xff]
      %v2639 = vld [vmem:[#allocation14 + $0x270] sm:$0xff]
      %v2640 = vld [vmem:[#allocation14 + $0x278] sm:$0xff]
      %v2641 = vld [vmem:[#allocation14 + $0x280] sm:$0xff]
      %v2642 = vld [vmem:[#allocation14 + $0x288] sm:$0xff]
      %v2643 = vld [vmem:[#allocation14 + $0x290] sm:$0xff]
      %v2644 = vld [vmem:[#allocation14 + $0x298] sm:$0xff]
      %v2645 = vld [vmem:[#allocation14 + $0x2a0] sm:$0xff]
      %v2646 = vld [vmem:[#allocation14 + $0x2a8] sm:$0xff]
      %v2647 = vld [vmem:[#allocation14 + $0x2b0] sm:$0xff]
      %v2648 = vld [vmem:[#allocation14 + $0x2b8] sm:$0xff]
      %v2649 = vld [vmem:[#allocation14 + $0x2c0] sm:$0xff]
      %v2650 = vld [vmem:[#allocation14 + $0x2c8] sm:$0xff]
      %v2651 = vld [vmem:[#allocation14 + $0x2d0] sm:$0xff]
      %v2652 = vld [vmem:[#allocation14 + $0x2d8] sm:$0xff]
      %v2653 = vld [vmem:[#allocation14 + $0x2e0] sm:$0xff]
      %v2654 = vld [vmem:[#allocation14 + $0x2e8] sm:$0xff]
      %v2655 = vld [vmem:[#allocation14 + $0x2f0] sm:$0xff]
      %v2656 = vld [vmem:[#allocation14 + $0x2f8] sm:$0xff]
      %v2657 = vld [vmem:[#allocation14 + $0x300] sm:$0xff]
      %v2658 = vld [vmem:[#allocation14 + $0x308] sm:$0xff]
      %v2659 = vld [vmem:[#allocation14 + $0x310] sm:$0xff]
      %v2660 = vld [vmem:[#allocation14 + $0x318] sm:$0xff]
      %v2661 = vld [vmem:[#allocation14 + $0x320] sm:$0xff]
      %v2662 = vld [vmem:[#allocation14 + $0x328] sm:$0xff]
      %v2663 = vld [vmem:[#allocation14 + $0x330] sm:$0xff]
      %v2664 = vld [vmem:[#allocation14 + $0x338] sm:$0xff]
      %v2665 = vld [vmem:[#allocation14 + $0x340] sm:$0xff]
      %v2666 = vld [vmem:[#allocation14 + $0x348] sm:$0xff]
      %v2667 = vld [vmem:[#allocation14 + $0x350] sm:$0xff]
      %v2668 = vld [vmem:[#allocation14 + $0x358] sm:$0xff]
      %v2669 = vld [vmem:[#allocation14 + $0x360] sm:$0xff]
      %v2670 = vld [vmem:[#allocation14 + $0x368] sm:$0xff]
      %v2671 = vld [vmem:[#allocation14 + $0x370] sm:$0xff]
      %v2672 = vld [vmem:[#allocation14 + $0x378] sm:$0xff]
      %v2673 = vld [vmem:[#allocation14 + $0x380] sm:$0xff]
      %v2674 = vld [vmem:[#allocation14 + $0x388] sm:$0xff]
      %v2675 = vld [vmem:[#allocation14 + $0x390] sm:$0xff]
      %v2676 = vld [vmem:[#allocation14 + $0x398] sm:$0xff]
      %v2677 = vld [vmem:[#allocation14 + $0x3a0] sm:$0xff]
      %v2678 = vld [vmem:[#allocation14 + $0x3a8] sm:$0xff]
      %v2679 = vld [vmem:[#allocation14 + $0x3b0] sm:$0xff]
      %v2680 = vld [vmem:[#allocation14 + $0x3b8] sm:$0xff]
      %v2681 = vld [vmem:[#allocation14 + $0x3c0] sm:$0xff]
      %v2682 = vld [vmem:[#allocation14 + $0x3c8] sm:$0xff]
      %v2683 = vld [vmem:[#allocation14 + $0x3d0] sm:$0xff]
      %v2684 = vld [vmem:[#allocation14 + $0x3d8] sm:$0xff]
      %v2685 = vld [vmem:[#allocation14 + $0x3e0] sm:$0xff]
      %v2686 = vld [vmem:[#allocation14 + $0x3e8] sm:$0xff]
      %v2687 = vld [vmem:[#allocation14 + $0x3f0] sm:$0xff]
      %v2688 = vld [vmem:[#allocation14 + $0x3f8] sm:$0xff]
      %v2817 = vunpack.c.l.b16 %v2561
      %v2818 = vunpack.c.h.b16 %v2561
      %v2819 = vunpack.c.l.b16 %v2562
      %v2820 = vunpack.c.h.b16 %v2562
      %v2821 = vunpack.c.l.b16 %v2563
      %v2822 = vunpack.c.h.b16 %v2563
      %v2823 = vunpack.c.l.b16 %v2564
      %v2824 = vunpack.c.h.b16 %v2564
      %v2825 = vunpack.c.l.b16 %v2565
      %v2826 = vunpack.c.h.b16 %v2565
      %v2827 = vunpack.c.l.b16 %v2566
      %v2828 = vunpack.c.h.b16 %v2566
      %v2829 = vunpack.c.l.b16 %v2567
      %v2830 = vunpack.c.h.b16 %v2567
      %v2831 = vunpack.c.l.b16 %v2568
      %v2832 = vunpack.c.h.b16 %v2568
      %v2833 = vunpack.c.l.b16 %v2569
      %v2834 = vunpack.c.h.b16 %v2569
      %v2835 = vunpack.c.l.b16 %v2570
      %v2836 = vunpack.c.h.b16 %v2570
      %v2837 = vunpack.c.l.b16 %v2571
      %v2838 = vunpack.c.h.b16 %v2571
      %v2839 = vunpack.c.l.b16 %v2572
      %v2840 = vunpack.c.h.b16 %v2572
      %v2841 = vunpack.c.l.b16 %v2573
      %v2842 = vunpack.c.h.b16 %v2573
      %v2843 = vunpack.c.l.b16 %v2574
      %v2844 = vunpack.c.h.b16 %v2574
      %v2845 = vunpack.c.l.b16 %v2575
      %v2846 = vunpack.c.h.b16 %v2575
      %v2847 = vunpack.c.l.b16 %v2576
      %v2848 = vunpack.c.h.b16 %v2576
      %v2849 = vunpack.c.l.b16 %v2577
      %v2850 = vunpack.c.h.b16 %v2577
      %v2851 = vunpack.c.l.b16 %v2578
      %v2852 = vunpack.c.h.b16 %v2578
      %v2853 = vunpack.c.l.b16 %v2579
      %v2854 = vunpack.c.h.b16 %v2579
      %v2855 = vunpack.c.l.b16 %v2580
      %v2856 = vunpack.c.h.b16 %v2580
      %v2857 = vunpack.c.l.b16 %v2581
      %v2858 = vunpack.c.h.b16 %v2581
      %v2859 = vunpack.c.l.b16 %v2582
      %v2860 = vunpack.c.h.b16 %v2582
      %v2861 = vunpack.c.l.b16 %v2583
      %v2862 = vunpack.c.h.b16 %v2583
      %v2863 = vunpack.c.l.b16 %v2584
      %v2864 = vunpack.c.h.b16 %v2584
      %v2865 = vunpack.c.l.b16 %v2585
      %v2866 = vunpack.c.h.b16 %v2585
      %v2867 = vunpack.c.l.b16 %v2586
      %v2868 = vunpack.c.h.b16 %v2586
      %v2869 = vunpack.c.l.b16 %v2587
      %v2870 = vunpack.c.h.b16 %v2587
      %v2871 = vunpack.c.l.b16 %v2588
      %v2872 = vunpack.c.h.b16 %v2588
      %v2873 = vunpack.c.l.b16 %v2589
      %v2874 = vunpack.c.h.b16 %v2589
      %v2875 = vunpack.c.l.b16 %v2590
      %v2876 = vunpack.c.h.b16 %v2590
      %v2877 = vunpack.c.l.b16 %v2591
      %v2878 = vunpack.c.h.b16 %v2591
      %v2879 = vunpack.c.l.b16 %v2592
      %v2880 = vunpack.c.h.b16 %v2592
      %v2881 = vunpack.c.l.b16 %v2593
      %v2882 = vunpack.c.h.b16 %v2593
      %v2883 = vunpack.c.l.b16 %v2594
      %v2884 = vunpack.c.h.b16 %v2594
      %v2885 = vunpack.c.l.b16 %v2595
      %v2886 = vunpack.c.h.b16 %v2595
      %v2887 = vunpack.c.l.b16 %v2596
      %v2888 = vunpack.c.h.b16 %v2596
      %v2889 = vunpack.c.l.b16 %v2597
      %v2890 = vunpack.c.h.b16 %v2597
      %v2891 = vunpack.c.l.b16 %v2598
      %v2892 = vunpack.c.h.b16 %v2598
      %v2893 = vunpack.c.l.b16 %v2599
      %v2894 = vunpack.c.h.b16 %v2599
      %v2895 = vunpack.c.l.b16 %v2600
      %v2896 = vunpack.c.h.b16 %v2600
      %v2897 = vunpack.c.l.b16 %v2601
      %v2898 = vunpack.c.h.b16 %v2601
      %v2899 = vunpack.c.l.b16 %v2602
      %v2900 = vunpack.c.h.b16 %v2602
      %v2901 = vunpack.c.l.b16 %v2603
      %v2902 = vunpack.c.h.b16 %v2603
      %v2903 = vunpack.c.l.b16 %v2604
      %v2904 = vunpack.c.h.b16 %v2604
      %v2905 = vunpack.c.l.b16 %v2605
      %v2906 = vunpack.c.h.b16 %v2605
      %v2907 = vunpack.c.l.b16 %v2606
      %v2908 = vunpack.c.h.b16 %v2606
      %v2909 = vunpack.c.l.b16 %v2607
      %v2910 = vunpack.c.h.b16 %v2607
      %v2911 = vunpack.c.l.b16 %v2608
      %v2912 = vunpack.c.h.b16 %v2608
      %v2913 = vunpack.c.l.b16 %v2609
      %v2914 = vunpack.c.h.b16 %v2609
      %v2915 = vunpack.c.l.b16 %v2610
      %v2916 = vunpack.c.h.b16 %v2610
      %v2917 = vunpack.c.l.b16 %v2611
      %v2918 = vunpack.c.h.b16 %v2611
      %v2919 = vunpack.c.l.b16 %v2612
      %v2920 = vunpack.c.h.b16 %v2612
      %v2921 = vunpack.c.l.b16 %v2613
      %v2922 = vunpack.c.h.b16 %v2613
      %v2923 = vunpack.c.l.b16 %v2614
      %v2924 = vunpack.c.h.b16 %v2614
      %v2925 = vunpack.c.l.b16 %v2615
      %v2926 = vunpack.c.h.b16 %v2615
      %v2927 = vunpack.c.l.b16 %v2616
      %v2928 = vunpack.c.h.b16 %v2616
      %v2929 = vunpack.c.l.b16 %v2617
      %v2930 = vunpack.c.h.b16 %v2617
      %v2931 = vunpack.c.l.b16 %v2618
      %v2932 = vunpack.c.h.b16 %v2618
      %v2933 = vunpack.c.l.b16 %v2619
      %v2934 = vunpack.c.h.b16 %v2619
      %v2935 = vunpack.c.l.b16 %v2620
      %v2936 = vunpack.c.h.b16 %v2620
      %v2937 = vunpack.c.l.b16 %v2621
      %v2938 = vunpack.c.h.b16 %v2621
      %v2939 = vunpack.c.l.b16 %v2622
      %v2940 = vunpack.c.h.b16 %v2622
      %v2941 = vunpack.c.l.b16 %v2623
      %v2942 = vunpack.c.h.b16 %v2623
      %v2943 = vunpack.c.l.b16 %v2624
      %v2944 = vunpack.c.h.b16 %v2624
      %v2945 = vunpack.c.l.b16 %v2625
      %v2946 = vunpack.c.h.b16 %v2625
      %v2947 = vunpack.c.l.b16 %v2626
      %v2948 = vunpack.c.h.b16 %v2626
      %v2949 = vunpack.c.l.b16 %v2627
      %v2950 = vunpack.c.h.b16 %v2627
      %v2951 = vunpack.c.l.b16 %v2628
      %v2952 = vunpack.c.h.b16 %v2628
      %v2953 = vunpack.c.l.b16 %v2629
      %v2954 = vunpack.c.h.b16 %v2629
      %v2955 = vunpack.c.l.b16 %v2630
      %v2956 = vunpack.c.h.b16 %v2630
      %v2957 = vunpack.c.l.b16 %v2631
      %v2958 = vunpack.c.h.b16 %v2631
      %v2959 = vunpack.c.l.b16 %v2632
      %v2960 = vunpack.c.h.b16 %v2632
      %v2961 = vunpack.c.l.b16 %v2633
      %v2962 = vunpack.c.h.b16 %v2633
      %v2963 = vunpack.c.l.b16 %v2634
      %v2964 = vunpack.c.h.b16 %v2634
      %v2965 = vunpack.c.l.b16 %v2635
      %v2966 = vunpack.c.h.b16 %v2635
      %v2967 = vunpack.c.l.b16 %v2636
      %v2968 = vunpack.c.h.b16 %v2636
      %v2969 = vunpack.c.l.b16 %v2637
      %v2970 = vunpack.c.h.b16 %v2637
      %v2971 = vunpack.c.l.b16 %v2638
      %v2972 = vunpack.c.h.b16 %v2638
      %v2973 = vunpack.c.l.b16 %v2639
      %v2974 = vunpack.c.h.b16 %v2639
      %v2975 = vunpack.c.l.b16 %v2640
      %v2976 = vunpack.c.h.b16 %v2640
      %v2977 = vunpack.c.l.b16 %v2641
      %v2978 = vunpack.c.h.b16 %v2641
      %v2979 = vunpack.c.l.b16 %v2642
      %v2980 = vunpack.c.h.b16 %v2642
      %v2981 = vunpack.c.l.b16 %v2643
      %v2982 = vunpack.c.h.b16 %v2643
      %v2983 = vunpack.c.l.b16 %v2644
      %v2984 = vunpack.c.h.b16 %v2644
      %v2985 = vunpack.c.l.b16 %v2645
      %v2986 = vunpack.c.h.b16 %v2645
      %v2987 = vunpack.c.l.b16 %v2646
      %v2988 = vunpack.c.h.b16 %v2646
      %v2989 = vunpack.c.l.b16 %v2647
      %v2990 = vunpack.c.h.b16 %v2647
      %v2991 = vunpack.c.l.b16 %v2648
      %v2992 = vunpack.c.h.b16 %v2648
      %v2993 = vunpack.c.l.b16 %v2649
      %v2994 = vunpack.c.h.b16 %v2649
      %v2995 = vunpack.c.l.b16 %v2650
      %v2996 = vunpack.c.h.b16 %v2650
      %v2997 = vunpack.c.l.b16 %v2651
      %v2998 = vunpack.c.h.b16 %v2651
      %v2999 = vunpack.c.l.b16 %v2652
      %v3000 = vunpack.c.h.b16 %v2652
      %v3001 = vunpack.c.l.b16 %v2653
      %v3002 = vunpack.c.h.b16 %v2653
      %v3003 = vunpack.c.l.b16 %v2654
      %v3004 = vunpack.c.h.b16 %v2654
      %v3005 = vunpack.c.l.b16 %v2655
      %v3006 = vunpack.c.h.b16 %v2655
      %v3007 = vunpack.c.l.b16 %v2656
      %v3008 = vunpack.c.h.b16 %v2656
      %v3009 = vunpack.c.l.b16 %v2657
      %v3010 = vunpack.c.h.b16 %v2657
      %v3011 = vunpack.c.l.b16 %v2658
      %v3012 = vunpack.c.h.b16 %v2658
      %v3013 = vunpack.c.l.b16 %v2659
      %v3014 = vunpack.c.h.b16 %v2659
      %v3015 = vunpack.c.l.b16 %v2660
      %v3016 = vunpack.c.h.b16 %v2660
      %v3017 = vunpack.c.l.b16 %v2661
      %v3018 = vunpack.c.h.b16 %v2661
      %v3019 = vunpack.c.l.b16 %v2662
      %v3020 = vunpack.c.h.b16 %v2662
      %v3021 = vunpack.c.l.b16 %v2663
      %v3022 = vunpack.c.h.b16 %v2663
      %v3023 = vunpack.c.l.b16 %v2664
      %v3024 = vunpack.c.h.b16 %v2664
      %v3025 = vunpack.c.l.b16 %v2665
      %v3026 = vunpack.c.h.b16 %v2665
      %v3027 = vunpack.c.l.b16 %v2666
      %v3028 = vunpack.c.h.b16 %v2666
      %v3029 = vunpack.c.l.b16 %v2667
      %v3030 = vunpack.c.h.b16 %v2667
      %v3031 = vunpack.c.l.b16 %v2668
      %v3032 = vunpack.c.h.b16 %v2668
      %v3033 = vunpack.c.l.b16 %v2669
      %v3034 = vunpack.c.h.b16 %v2669
      %v3035 = vunpack.c.l.b16 %v2670
      %v3036 = vunpack.c.h.b16 %v2670
      %v3037 = vunpack.c.l.b16 %v2671
      %v3038 = vunpack.c.h.b16 %v2671
      %v3039 = vunpack.c.l.b16 %v2672
      %v3040 = vunpack.c.h.b16 %v2672
      %v3041 = vunpack.c.l.b16 %v2673
      %v3042 = vunpack.c.h.b16 %v2673
      %v3043 = vunpack.c.l.b16 %v2674
      %v3044 = vunpack.c.h.b16 %v2674
      %v3045 = vunpack.c.l.b16 %v2675
      %v3046 = vunpack.c.h.b16 %v2675
      %v3047 = vunpack.c.l.b16 %v2676
      %v3048 = vunpack.c.h.b16 %v2676
      %v3049 = vunpack.c.l.b16 %v2677
      %v3050 = vunpack.c.h.b16 %v2677
      %v3051 = vunpack.c.l.b16 %v2678
      %v3052 = vunpack.c.h.b16 %v2678
      %v3053 = vunpack.c.l.b16 %v2679
      %v3054 = vunpack.c.h.b16 %v2679
      %v3055 = vunpack.c.l.b16 %v2680
      %v3056 = vunpack.c.h.b16 %v2680
      %v3057 = vunpack.c.l.b16 %v2681
      %v3058 = vunpack.c.h.b16 %v2681
      %v3059 = vunpack.c.l.b16 %v2682
      %v3060 = vunpack.c.h.b16 %v2682
      %v3061 = vunpack.c.l.b16 %v2683
      %v3062 = vunpack.c.h.b16 %v2683
      %v3063 = vunpack.c.l.b16 %v2684
      %v3064 = vunpack.c.h.b16 %v2684
      %v3065 = vunpack.c.l.b16 %v2685
      %v3066 = vunpack.c.h.b16 %v2685
      %v3067 = vunpack.c.l.b16 %v2686
      %v3068 = vunpack.c.h.b16 %v2686
      %v3069 = vunpack.c.l.b16 %v2687
      %v3070 = vunpack.c.h.b16 %v2687
      %v3071 = vunpack.c.l.b16 %v2688
      %v3072 = vunpack.c.h.b16 %v2688
      %v3073 = vpack.c.b16 %v2825, %v2817
      %v3074 = vpack.c.b16 %v2826, %v2818
      %v3075 = vpack.c.b16 %v2827, %v2819
      %v3076 = vpack.c.b16 %v2828, %v2820
      %v3077 = vpack.c.b16 %v2829, %v2821
      %v3078 = vpack.c.b16 %v2830, %v2822
      %v3079 = vpack.c.b16 %v2831, %v2823
      %v3080 = vpack.c.b16 %v2832, %v2824
      %v3081 = vpack.c.b16 %v2841, %v2833
      %v3082 = vpack.c.b16 %v2842, %v2834
      %v3083 = vpack.c.b16 %v2843, %v2835
      %v3084 = vpack.c.b16 %v2844, %v2836
      %v3085 = vpack.c.b16 %v2845, %v2837
      %v3086 = vpack.c.b16 %v2846, %v2838
      %v3087 = vpack.c.b16 %v2847, %v2839
      %v3088 = vpack.c.b16 %v2848, %v2840
      %v3089 = vpack.c.b16 %v2857, %v2849
      %v3090 = vpack.c.b16 %v2858, %v2850
      %v3091 = vpack.c.b16 %v2859, %v2851
      %v3092 = vpack.c.b16 %v2860, %v2852
      %v3093 = vpack.c.b16 %v2861, %v2853
      %v3094 = vpack.c.b16 %v2862, %v2854
      %v3095 = vpack.c.b16 %v2863, %v2855
      %v3096 = vpack.c.b16 %v2864, %v2856
      %v3097 = vpack.c.b16 %v2873, %v2865
      %v3098 = vpack.c.b16 %v2874, %v2866
      %v3099 = vpack.c.b16 %v2875, %v2867
      %v3100 = vpack.c.b16 %v2876, %v2868
      %v3101 = vpack.c.b16 %v2877, %v2869
      %v3102 = vpack.c.b16 %v2878, %v2870
      %v3103 = vpack.c.b16 %v2879, %v2871
      %v3104 = vpack.c.b16 %v2880, %v2872
      %v3105 = vpack.c.b16 %v2889, %v2881
      %v3106 = vpack.c.b16 %v2890, %v2882
      %v3107 = vpack.c.b16 %v2891, %v2883
      %v3108 = vpack.c.b16 %v2892, %v2884
      %v3109 = vpack.c.b16 %v2893, %v2885
      %v3110 = vpack.c.b16 %v2894, %v2886
      %v3111 = vpack.c.b16 %v2895, %v2887
      %v3112 = vpack.c.b16 %v2896, %v2888
      %v3113 = vpack.c.b16 %v2905, %v2897
      %v3114 = vpack.c.b16 %v2906, %v2898
      %v3115 = vpack.c.b16 %v2907, %v2899
      %v3116 = vpack.c.b16 %v2908, %v2900
      %v3117 = vpack.c.b16 %v2909, %v2901
      %v3118 = vpack.c.b16 %v2910, %v2902
      %v3119 = vpack.c.b16 %v2911, %v2903
      %v3120 = vpack.c.b16 %v2912, %v2904
      %v3121 = vpack.c.b16 %v2921, %v2913
      %v3122 = vpack.c.b16 %v2922, %v2914
      %v3123 = vpack.c.b16 %v2923, %v2915
      %v3124 = vpack.c.b16 %v2924, %v2916
      %v3125 = vpack.c.b16 %v2925, %v2917
      %v3126 = vpack.c.b16 %v2926, %v2918
      %v3127 = vpack.c.b16 %v2927, %v2919
      %v3128 = vpack.c.b16 %v2928, %v2920
      %v3129 = vpack.c.b16 %v2937, %v2929
      %v3130 = vpack.c.b16 %v2938, %v2930
      %v3131 = vpack.c.b16 %v2939, %v2931
      %v3132 = vpack.c.b16 %v2940, %v2932
      %v3133 = vpack.c.b16 %v2941, %v2933
      %v3134 = vpack.c.b16 %v2942, %v2934
      %v3135 = vpack.c.b16 %v2943, %v2935
      %v3136 = vpack.c.b16 %v2944, %v2936
      %v3137 = vpack.c.b16 %v2953, %v2945
      %v3138 = vpack.c.b16 %v2954, %v2946
      %v3139 = vpack.c.b16 %v2955, %v2947
      %v3140 = vpack.c.b16 %v2956, %v2948
      %v3141 = vpack.c.b16 %v2957, %v2949
      %v3142 = vpack.c.b16 %v2958, %v2950
      %v3143 = vpack.c.b16 %v2959, %v2951
      %v3144 = vpack.c.b16 %v2960, %v2952
      %v3145 = vpack.c.b16 %v2969, %v2961
      %v3146 = vpack.c.b16 %v2970, %v2962
      %v3147 = vpack.c.b16 %v2971, %v2963
      %v3148 = vpack.c.b16 %v2972, %v2964
      %v3149 = vpack.c.b16 %v2973, %v2965
      %v3150 = vpack.c.b16 %v2974, %v2966
      %v3151 = vpack.c.b16 %v2975, %v2967
      %v3152 = vpack.c.b16 %v2976, %v2968
      %v3153 = vpack.c.b16 %v2985, %v2977
      %v3154 = vpack.c.b16 %v2986, %v2978
      %v3155 = vpack.c.b16 %v2987, %v2979
      %v3156 = vpack.c.b16 %v2988, %v2980
      %v3157 = vpack.c.b16 %v2989, %v2981
      %v3158 = vpack.c.b16 %v2990, %v2982
      %v3159 = vpack.c.b16 %v2991, %v2983
      %v3160 = vpack.c.b16 %v2992, %v2984
      %v3161 = vpack.c.b16 %v3001, %v2993
      %v3162 = vpack.c.b16 %v3002, %v2994
      %v3163 = vpack.c.b16 %v3003, %v2995
      %v3164 = vpack.c.b16 %v3004, %v2996
      %v3165 = vpack.c.b16 %v3005, %v2997
      %v3166 = vpack.c.b16 %v3006, %v2998
      %v3167 = vpack.c.b16 %v3007, %v2999
      %v3168 = vpack.c.b16 %v3008, %v3000
      %v3169 = vpack.c.b16 %v3017, %v3009
      %v3170 = vpack.c.b16 %v3018, %v3010
      %v3171 = vpack.c.b16 %v3019, %v3011
      %v3172 = vpack.c.b16 %v3020, %v3012
      %v3173 = vpack.c.b16 %v3021, %v3013
      %v3174 = vpack.c.b16 %v3022, %v3014
      %v3175 = vpack.c.b16 %v3023, %v3015
      %v3176 = vpack.c.b16 %v3024, %v3016
      %v3177 = vpack.c.b16 %v3033, %v3025
      %v3178 = vpack.c.b16 %v3034, %v3026
      %v3179 = vpack.c.b16 %v3035, %v3027
      %v3180 = vpack.c.b16 %v3036, %v3028
      %v3181 = vpack.c.b16 %v3037, %v3029
      %v3182 = vpack.c.b16 %v3038, %v3030
      %v3183 = vpack.c.b16 %v3039, %v3031
      %v3184 = vpack.c.b16 %v3040, %v3032
      %v3185 = vpack.c.b16 %v3049, %v3041
      %v3186 = vpack.c.b16 %v3050, %v3042
      %v3187 = vpack.c.b16 %v3051, %v3043
      %v3188 = vpack.c.b16 %v3052, %v3044
      %v3189 = vpack.c.b16 %v3053, %v3045
      %v3190 = vpack.c.b16 %v3054, %v3046
      %v3191 = vpack.c.b16 %v3055, %v3047
      %v3192 = vpack.c.b16 %v3056, %v3048
      %v3193 = vpack.c.b16 %v3065, %v3057
      %v3194 = vpack.c.b16 %v3066, %v3058
      %v3195 = vpack.c.b16 %v3067, %v3059
      %v3196 = vpack.c.b16 %v3068, %v3060
      %v3197 = vpack.c.b16 %v3069, %v3061
      %v3198 = vpack.c.b16 %v3070, %v3062
      %v3199 = vpack.c.b16 %v3071, %v3063
      %v3200 = vpack.c.b16 %v3072, %v3064
      %3329 = vmatprep.subr.bf16.mxu0 %v3130
      %3330 = vmatpush1.bf16.msra.mxu0 %v3129
      %3331 = vmatprep.subr.bf16.mxu0 %v3122
      %3332 = vmatpush1.bf16.msra.mxu0 %v3121
      %3333 = vmatprep.subr.bf16.mxu0 %v3114
      %3334 = vmatpush1.bf16.msra.mxu0 %v3113
      %3335 = vmatprep.subr.bf16.mxu0 %v3106
      %3336 = vmatpush1.bf16.msra.mxu0 %v3105
      %3337 = vmatprep.subr.bf16.mxu0 %v3098
      %3338 = vmatpush1.bf16.msra.mxu0 %v3097
      %3339 = vmatprep.subr.bf16.mxu0 %v3090
      %3340 = vmatpush1.bf16.msra.mxu0 %v3089
      %3341 = vmatprep.subr.bf16.mxu0 %v3082
      %3342 = vmatpush1.bf16.msra.mxu0 %v3081
      %3343 = vmatprep.subr.bf16.mxu0 %v3074
      %3344 = vmatpush1.bf16.msra.mxu0 %v3073
      %3345 = vmatprep.subr.bf16.mxu0 %v3194
      %3346 = vmatpush2.bf16.msra.mxu0 %v3193
      %3347 = vmatprep.subr.bf16.mxu0 %v3186
      %3348 = vmatpush2.bf16.msra.mxu0 %v3185
      %3349 = vmatprep.subr.bf16.mxu0 %v3178
      %3350 = vmatpush2.bf16.msra.mxu0 %v3177
      %3351 = vmatprep.subr.bf16.mxu0 %v3170
      %3352 = vmatpush2.bf16.msra.mxu0 %v3169
      %3353 = vmatprep.subr.bf16.mxu0 %v3162
      %3354 = vmatpush2.bf16.msra.mxu0 %v3161
      %3355 = vmatprep.subr.bf16.mxu0 %v3154
      %3356 = vmatpush2.bf16.msra.mxu0 %v3153
      %3357 = vmatprep.subr.bf16.mxu0 %v3146
      %3358 = vmatpush2.bf16.msra.mxu0 %v3145
      %3359 = vmatprep.subr.bf16.mxu0 %v3138
      %3360 = vmatpush2.bf16.msra.mxu0 %v3137
      %3361 = vmatprep.mubr.bf16.mxu0 %v2560
      %3362 = vmatmul.mubr.bf16.gmra.mxu0 %v2559
      %v3363 = vpop.f32.mrf.mxu0
      %v3364 = vadd.f32 0.0, %v3363
      %v3365 = vpop.f32.mrf.mxu0
      %v3366 = vadd.f32 0.0, %v3365
      %v3367 = vpop.f32.mrf.mxu0
      %v3368 = vpop.f32.mrf.mxu0
      %3369 = vdwg.mxu0
      %3370 = vmatprep.subr.bf16.mxu0 %v3132
      %3371 = vmatpush1.bf16.msra.mxu0 %v3131
      %3372 = vmatprep.subr.bf16.mxu0 %v3124
      %3373 = vmatpush1.bf16.msra.mxu0 %v3123
      %3374 = vmatprep.subr.bf16.mxu0 %v3116
      %3375 = vmatpush1.bf16.msra.mxu0 %v3115
      %3376 = vmatprep.subr.bf16.mxu0 %v3108
      %3377 = vmatpush1.bf16.msra.mxu0 %v3107
      %3378 = vmatprep.subr.bf16.mxu0 %v3100
      %3379 = vmatpush1.bf16.msra.mxu0 %v3099
      %3380 = vmatprep.subr.bf16.mxu0 %v3092
      %3381 = vmatpush1.bf16.msra.mxu0 %v3091
      %3382 = vmatprep.subr.bf16.mxu0 %v3084
      %3383 = vmatpush1.bf16.msra.mxu0 %v3083
      %3384 = vmatprep.subr.bf16.mxu0 %v3076
      %3385 = vmatpush1.bf16.msra.mxu0 %v3075
      %3386 = vmatprep.subr.bf16.mxu0 %v3196
      %3387 = vmatpush2.bf16.msra.mxu0 %v3195
      %3388 = vmatprep.subr.bf16.mxu0 %v3188
      %3389 = vmatpush2.bf16.msra.mxu0 %v3187
      %3390 = vmatprep.subr.bf16.mxu0 %v3180
      %3391 = vmatpush2.bf16.msra.mxu0 %v3179
      %3392 = vmatprep.subr.bf16.mxu0 %v3172
      %3393 = vmatpush2.bf16.msra.mxu0 %v3171
      %3394 = vmatprep.subr.bf16.mxu0 %v3164
      %3395 = vmatpush2.bf16.msra.mxu0 %v3163
      %3396 = vmatprep.subr.bf16.mxu0 %v3156
      %3397 = vmatpush2.bf16.msra.mxu0 %v3155
      %3398 = vmatprep.subr.bf16.mxu0 %v3148
      %3399 = vmatpush2.bf16.msra.mxu0 %v3147
      %3400 = vmatprep.subr.bf16.mxu0 %v3140
      %3401 = vmatpush2.bf16.msra.mxu0 %v3139
      %3402 = vmatprep.mubr.bf16.mxu0 %v2560
      %3403 = vmatmul.mubr.bf16.gmra.mxu0 %v2559
      %v3404 = vpop.f32.mrf.mxu0
      %v3405 = vadd.f32 0.0, %v3404
      %v3406 = vpop.f32.mrf.mxu0
      %v3407 = vadd.f32 0.0, %v3406
      %v3408 = vpop.f32.mrf.mxu0
      %v3409 = vpop.f32.mrf.mxu0
      %3410 = vdwg.mxu0
      %3411 = vmatprep.subr.bf16.mxu0 %v3134
      %3412 = vmatpush1.bf16.msra.mxu0 %v3133
      %3413 = vmatprep.subr.bf16.mxu0 %v3126
      %3414 = vmatpush1.bf16.msra.mxu0 %v3125
      %3415 = vmatprep.subr.bf16.mxu0 %v3118
      %3416 = vmatpush1.bf16.msra.mxu0 %v3117
      %3417 = vmatprep.subr.bf16.mxu0 %v3110
      %3418 = vmatpush1.bf16.msra.mxu0 %v3109
      %3419 = vmatprep.subr.bf16.mxu0 %v3102
      %3420 = vmatpush1.bf16.msra.mxu0 %v3101
      %3421 = vmatprep.subr.bf16.mxu0 %v3094
      %3422 = vmatpush1.bf16.msra.mxu0 %v3093
      %3423 = vmatprep.subr.bf16.mxu0 %v3086
      %3424 = vmatpush1.bf16.msra.mxu0 %v3085
      %3425 = vmatprep.subr.bf16.mxu0 %v3078
      %3426 = vmatpush1.bf16.msra.mxu0 %v3077
      %3427 = vmatprep.subr.bf16.mxu0 %v3198
      %3428 = vmatpush2.bf16.msra.mxu0 %v3197
      %3429 = vmatprep.subr.bf16.mxu0 %v3190
      %3430 = vmatpush2.bf16.msra.mxu0 %v3189
      %3431 = vmatprep.subr.bf16.mxu0 %v3182
      %3432 = vmatpush2.bf16.msra.mxu0 %v3181
      %3433 = vmatprep.subr.bf16.mxu0 %v3174
      %3434 = vmatpush2.bf16.msra.mxu0 %v3173
      %3435 = vmatprep.subr.bf16.mxu0 %v3166
      %3436 = vmatpush2.bf16.msra.mxu0 %v3165
      %3437 = vmatprep.subr.bf16.mxu0 %v3158
      %3438 = vmatpush2.bf16.msra.mxu0 %v3157
      %3439 = vmatprep.subr.bf16.mxu0 %v3150
      %3440 = vmatpush2.bf16.msra.mxu0 %v3149
      %3441 = vmatprep.subr.bf16.mxu0 %v3142
      %3442 = vmatpush2.bf16.msra.mxu0 %v3141
      %3443 = vmatprep.mubr.bf16.mxu0 %v2560
      %3444 = vmatmul.mubr.bf16.gmra.mxu0 %v2559
      %v3445 = vpop.f32.mrf.mxu0
      %v3446 = vadd.f32 0.0, %v3445
      %v3447 = vpop.f32.mrf.mxu0
      %v3448 = vadd.f32 0.0, %v3447
      %v3449 = vpop.f32.mrf.mxu0
      %v3450 = vpop.f32.mrf.mxu0
      %3451 = vdwg.mxu0
      %3452 = vmatprep.subr.bf16.mxu0 %v3136
      %3453 = vmatpush1.bf16.msra.mxu0 %v3135
      %3454 = vmatprep.subr.bf16.mxu0 %v3128
      %3455 = vmatpush1.bf16.msra.mxu0 %v3127
      %3456 = vmatprep.subr.bf16.mxu0 %v3120
      %3457 = vmatpush1.bf16.msra.mxu0 %v3119
      %3458 = vmatprep.subr.bf16.mxu0 %v3112
      %3459 = vmatpush1.bf16.msra.mxu0 %v3111
      %3460 = vmatprep.subr.bf16.mxu0 %v3104
      %3461 = vmatpush1.bf16.msra.mxu0 %v3103
      %3462 = vmatprep.subr.bf16.mxu0 %v3096
      %3463 = vmatpush1.bf16.msra.mxu0 %v3095
      %3464 = vmatprep.subr.bf16.mxu0 %v3088
      %3465 = vmatpush1.bf16.msra.mxu0 %v3087
      %3466 = vmatprep.subr.bf16.mxu0 %v3080
      %3467 = vmatpush1.bf16.msra.mxu0 %v3079
      %3468 = vmatprep.subr.bf16.mxu0 %v3200
      %3469 = vmatpush2.bf16.msra.mxu0 %v3199
      %3470 = vmatprep.subr.bf16.mxu0 %v3192
      %3471 = vmatpush2.bf16.msra.mxu0 %v3191
      %3472 = vmatprep.subr.bf16.mxu0 %v3184
      %3473 = vmatpush2.bf16.msra.mxu0 %v3183
      %3474 = vmatprep.subr.bf16.mxu0 %v3176
      %3475 = vmatpush2.bf16.msra.mxu0 %v3175
      %3476 = vmatprep.subr.bf16.mxu0 %v3168
      %3477 = vmatpush2.bf16.msra.mxu0 %v3167
      %3478 = vmatprep.subr.bf16.mxu0 %v3160
      %3479 = vmatpush2.bf16.msra.mxu0 %v3159
      %3480 = vmatprep.subr.bf16.mxu0 %v3152
      %3481 = vmatpush2.bf16.msra.mxu0 %v3151
      %3482 = vmatprep.subr.bf16.mxu0 %v3144
      %3483 = vmatpush2.bf16.msra.mxu0 %v3143
      %3484 = vmatprep.mubr.bf16.mxu0 %v2560
      %3485 = vmatmul.mubr.bf16.gmra.mxu0 %v2559
      %v3486 = vpop.f32.mrf.mxu0
      %v3487 = vadd.f32 0.0, %v3486
      %v3488 = vpop.f32.mrf.mxu0
      %v3489 = vadd.f32 0.0, %v3488
      %v3490 = vpop.f32.mrf.mxu0
      %v3491 = vpop.f32.mrf.mxu0
      %3492 = vdwg.mxu0
      %v3493 = vadd.f32 %v2549, %v3364
      %v3494 = vadd.f32 %v2550, %v3366
      %v3495 = vadd.f32 %v2551, %v3405
      %v3496 = vadd.f32 %v2552, %v3407
      %v3497 = vadd.f32 %v2553, %v3446
      %v3498 = vadd.f32 %v2554, %v3448
      %v3499 = vadd.f32 %v2555, %v3487
      %v3500 = vadd.f32 %v2556, %v3489
      %v3501 = vmul.f32 %v3495, 0.5
      %v3502 = vmul.f32 %v3496, 0.5
      %v3503 = vtanh.pop %v3501
      %v3504 = vtanh.pop %v3502
      %v3505 = vmul.f32 %v3503, 0.5
      %v3506 = vmul.f32 %v3504, 0.5
      %v3507 = vadd.f32 %v3505, 0.5
      %v3508 = vadd.f32 %v3506, 0.5
      %v3509 = vld [vmem:[#allocation4] sm:$0xff]
      %v3510 = vld [vmem:[#allocation4 + $0x8] sm:$0xff]
      %v3511 = vmul.f32 %v3507, %v3509
      %v3512 = vmul.f32 %v3508, %v3510
      %v3513 = vmul.f32 %v3493, 0.5
      %v3514 = vmul.f32 %v3494, 0.5
      %v3515 = vtanh.pop %v3513
      %v3516 = vtanh.pop %v3514
      %v3517 = vmul.f32 %v3515, 0.5
      %v3518 = vmul.f32 %v3516, 0.5
      %v3519 = vadd.f32 %v3517, 0.5
      %v3520 = vadd.f32 %v3518, 0.5
      %v3521 = vtanh.pop %v3497
      %v3522 = vtanh.pop %v3498
      %v3523 = vmul.f32 %v3519, %v3521
      %v3524 = vmul.f32 %v3520, %v3522
      %v3525 = vadd.f32 %v3511, %v3523
      %v3526 = vadd.f32 %v3512, %v3524
      %v3527 = vmul.f32 %v3499, 0.5
      %v3528 = vmul.f32 %v3500, 0.5
      %v3529 = vtanh.pop %v3527
      %v3530 = vtanh.pop %v3528
      %v3531 = vmul.f32 %v3529, 0.5
      %v3532 = vmul.f32 %v3530, 0.5
      %v3533 = vadd.f32 %v3531, 0.5
      %v3534 = vadd.f32 %v3532, 0.5
      %v3535 = vtanh.pop %v3525
      %v3536 = vtanh.pop %v3526
      %v3537 = vmul.f32 %v3533, %v3535
      %v3538 = vmul.f32 %v3534, %v3536
      %3539 = vst [vmem:[#allocation4] sm:$0xff] %v3525
      %3540 = vst [vmem:[#allocation4 + $0x8] sm:$0xff] %v3526
      %3541 = vst [vmem:[#allocation3] sm:$0xff] %v3537
      %3542 = vst [vmem:[#allocation3 + $0x8] sm:$0xff] %v3538
      %v3543 = vpack.c.bf16 %v3537, %v3537
      %v3544 = vpack.c.bf16 %v3538, %v3538
      %v3545 = vld [vmem:[#allocation16] sm:$0xff]
      %v3546 = vld [vmem:[#allocation16 + $0x8] sm:$0xff]
      %v3547 = vld [vmem:[#allocation16 + $0x10] sm:$0xff]
      %v3548 = vld [vmem:[#allocation16 + $0x18] sm:$0xff]
      %v3549 = vld [vmem:[#allocation16 + $0x20] sm:$0xff]
      %v3550 = vld [vmem:[#allocation16 + $0x28] sm:$0xff]
      %v3551 = vld [vmem:[#allocation16 + $0x30] sm:$0xff]
      %v3552 = vld [vmem:[#allocation16 + $0x38] sm:$0xff]
      %v3553 = vld [vmem:[#allocation16 + $0x40] sm:$0xff]
      %v3554 = vld [vmem:[#allocation16 + $0x48] sm:$0xff]
      %v3555 = vld [vmem:[#allocation16 + $0x50] sm:$0xff]
      %v3556 = vld [vmem:[#allocation16 + $0x58] sm:$0xff]
      %v3557 = vld [vmem:[#allocation16 + $0x60] sm:$0xff]
      %v3558 = vld [vmem:[#allocation16 + $0x68] sm:$0xff]
      %v3559 = vld [vmem:[#allocation16 + $0x70] sm:$0xff]
      %v3560 = vld [vmem:[#allocation16 + $0x78] sm:$0xff]
      %v3561 = vld [vmem:[#allocation16 + $0x80] sm:$0xff]
      %v3562 = vld [vmem:[#allocation16 + $0x88] sm:$0xff]
      %v3563 = vld [vmem:[#allocation16 + $0x90] sm:$0xff]
      %v3564 = vld [vmem:[#allocation16 + $0x98] sm:$0xff]
      %v3565 = vld [vmem:[#allocation16 + $0xa0] sm:$0xff]
      %v3566 = vld [vmem:[#allocation16 + $0xa8] sm:$0xff]
      %v3567 = vld [vmem:[#allocation16 + $0xb0] sm:$0xff]
      %v3568 = vld [vmem:[#allocation16 + $0xb8] sm:$0xff]
      %v3569 = vld [vmem:[#allocation16 + $0xc0] sm:$0xff]
      %v3570 = vld [vmem:[#allocation16 + $0xc8] sm:$0xff]
      %v3571 = vld [vmem:[#allocation16 + $0xd0] sm:$0xff]
      %v3572 = vld [vmem:[#allocation16 + $0xd8] sm:$0xff]
      %v3573 = vld [vmem:[#allocation16 + $0xe0] sm:$0xff]
      %v3574 = vld [vmem:[#allocation16 + $0xe8] sm:$0xff]
      %v3575 = vld [vmem:[#allocation16 + $0xf0] sm:$0xff]
      %v3576 = vld [vmem:[#allocation16 + $0xf8] sm:$0xff]
      %v3577 = vld [vmem:[#allocation16 + $0x100] sm:$0xff]
      %v3578 = vld [vmem:[#allocation16 + $0x108] sm:$0xff]
      %v3579 = vld [vmem:[#allocation16 + $0x110] sm:$0xff]
      %v3580 = vld [vmem:[#allocation16 + $0x118] sm:$0xff]
      %v3581 = vld [vmem:[#allocation16 + $0x120] sm:$0xff]
      %v3582 = vld [vmem:[#allocation16 + $0x128] sm:$0xff]
      %v3583 = vld [vmem:[#allocation16 + $0x130] sm:$0xff]
      %v3584 = vld [vmem:[#allocation16 + $0x138] sm:$0xff]
      %v3585 = vld [vmem:[#allocation16 + $0x140] sm:$0xff]
      %v3586 = vld [vmem:[#allocation16 + $0x148] sm:$0xff]
      %v3587 = vld [vmem:[#allocation16 + $0x150] sm:$0xff]
      %v3588 = vld [vmem:[#allocation16 + $0x158] sm:$0xff]
      %v3589 = vld [vmem:[#allocation16 + $0x160] sm:$0xff]
      %v3590 = vld [vmem:[#allocation16 + $0x168] sm:$0xff]
      %v3591 = vld [vmem:[#allocation16 + $0x170] sm:$0xff]
      %v3592 = vld [vmem:[#allocation16 + $0x178] sm:$0xff]
      %v3593 = vld [vmem:[#allocation16 + $0x180] sm:$0xff]
      %v3594 = vld [vmem:[#allocation16 + $0x188] sm:$0xff]
      %v3595 = vld [vmem:[#allocation16 + $0x190] sm:$0xff]
      %v3596 = vld [vmem:[#allocation16 + $0x198] sm:$0xff]
      %v3597 = vld [vmem:[#allocation16 + $0x1a0] sm:$0xff]
      %v3598 = vld [vmem:[#allocation16 + $0x1a8] sm:$0xff]
      %v3599 = vld [vmem:[#allocation16 + $0x1b0] sm:$0xff]
      %v3600 = vld [vmem:[#allocation16 + $0x1b8] sm:$0xff]
      %v3601 = vld [vmem:[#allocation16 + $0x1c0] sm:$0xff]
      %v3602 = vld [vmem:[#allocation16 + $0x1c8] sm:$0xff]
      %v3603 = vld [vmem:[#allocation16 + $0x1d0] sm:$0xff]
      %v3604 = vld [vmem:[#allocation16 + $0x1d8] sm:$0xff]
      %v3605 = vld [vmem:[#allocation16 + $0x1e0] sm:$0xff]
      %v3606 = vld [vmem:[#allocation16 + $0x1e8] sm:$0xff]
      %v3607 = vld [vmem:[#allocation16 + $0x1f0] sm:$0xff]
      %v3608 = vld [vmem:[#allocation16 + $0x1f8] sm:$0xff]
      %v3609 = vld [vmem:[#allocation16 + $0x200] sm:$0xff]
      %v3610 = vld [vmem:[#allocation16 + $0x208] sm:$0xff]
      %v3611 = vld [vmem:[#allocation16 + $0x210] sm:$0xff]
      %v3612 = vld [vmem:[#allocation16 + $0x218] sm:$0xff]
      %v3613 = vld [vmem:[#allocation16 + $0x220] sm:$0xff]
      %v3614 = vld [vmem:[#allocation16 + $0x228] sm:$0xff]
      %v3615 = vld [vmem:[#allocation16 + $0x230] sm:$0xff]
      %v3616 = vld [vmem:[#allocation16 + $0x238] sm:$0xff]
      %v3617 = vld [vmem:[#allocation16 + $0x240] sm:$0xff]
      %v3618 = vld [vmem:[#allocation16 + $0x248] sm:$0xff]
      %v3619 = vld [vmem:[#allocation16 + $0x250] sm:$0xff]
      %v3620 = vld [vmem:[#allocation16 + $0x258] sm:$0xff]
      %v3621 = vld [vmem:[#allocation16 + $0x260] sm:$0xff]
      %v3622 = vld [vmem:[#allocation16 + $0x268] sm:$0xff]
      %v3623 = vld [vmem:[#allocation16 + $0x270] sm:$0xff]
      %v3624 = vld [vmem:[#allocation16 + $0x278] sm:$0xff]
      %v3625 = vld [vmem:[#allocation16 + $0x280] sm:$0xff]
      %v3626 = vld [vmem:[#allocation16 + $0x288] sm:$0xff]
      %v3627 = vld [vmem:[#allocation16 + $0x290] sm:$0xff]
      %v3628 = vld [vmem:[#allocation16 + $0x298] sm:$0xff]
      %v3629 = vld [vmem:[#allocation16 + $0x2a0] sm:$0xff]
      %v3630 = vld [vmem:[#allocation16 + $0x2a8] sm:$0xff]
      %v3631 = vld [vmem:[#allocation16 + $0x2b0] sm:$0xff]
      %v3632 = vld [vmem:[#allocation16 + $0x2b8] sm:$0xff]
      %v3633 = vld [vmem:[#allocation16 + $0x2c0] sm:$0xff]
      %v3634 = vld [vmem:[#allocation16 + $0x2c8] sm:$0xff]
      %v3635 = vld [vmem:[#allocation16 + $0x2d0] sm:$0xff]
      %v3636 = vld [vmem:[#allocation16 + $0x2d8] sm:$0xff]
      %v3637 = vld [vmem:[#allocation16 + $0x2e0] sm:$0xff]
      %v3638 = vld [vmem:[#allocation16 + $0x2e8] sm:$0xff]
      %v3639 = vld [vmem:[#allocation16 + $0x2f0] sm:$0xff]
      %v3640 = vld [vmem:[#allocation16 + $0x2f8] sm:$0xff]
      %v3641 = vld [vmem:[#allocation16 + $0x300] sm:$0xff]
      %v3642 = vld [vmem:[#allocation16 + $0x308] sm:$0xff]
      %v3643 = vld [vmem:[#allocation16 + $0x310] sm:$0xff]
      %v3644 = vld [vmem:[#allocation16 + $0x318] sm:$0xff]
      %v3645 = vld [vmem:[#allocation16 + $0x320] sm:$0xff]
      %v3646 = vld [vmem:[#allocation16 + $0x328] sm:$0xff]
      %v3647 = vld [vmem:[#allocation16 + $0x330] sm:$0xff]
      %v3648 = vld [vmem:[#allocation16 + $0x338] sm:$0xff]
      %v3649 = vld [vmem:[#allocation16 + $0x340] sm:$0xff]
      %v3650 = vld [vmem:[#allocation16 + $0x348] sm:$0xff]
      %v3651 = vld [vmem:[#allocation16 + $0x350] sm:$0xff]
      %v3652 = vld [vmem:[#allocation16 + $0x358] sm:$0xff]
      %v3653 = vld [vmem:[#allocation16 + $0x360] sm:$0xff]
      %v3654 = vld [vmem:[#allocation16 + $0x368] sm:$0xff]
      %v3655 = vld [vmem:[#allocation16 + $0x370] sm:$0xff]
      %v3656 = vld [vmem:[#allocation16 + $0x378] sm:$0xff]
      %v3657 = vld [vmem:[#allocation16 + $0x380] sm:$0xff]
      %v3658 = vld [vmem:[#allocation16 + $0x388] sm:$0xff]
      %v3659 = vld [vmem:[#allocation16 + $0x390] sm:$0xff]
      %v3660 = vld [vmem:[#allocation16 + $0x398] sm:$0xff]
      %v3661 = vld [vmem:[#allocation16 + $0x3a0] sm:$0xff]
      %v3662 = vld [vmem:[#allocation16 + $0x3a8] sm:$0xff]
      %v3663 = vld [vmem:[#allocation16 + $0x3b0] sm:$0xff]
      %v3664 = vld [vmem:[#allocation16 + $0x3b8] sm:$0xff]
      %v3665 = vld [vmem:[#allocation16 + $0x3c0] sm:$0xff]
      %v3666 = vld [vmem:[#allocation16 + $0x3c8] sm:$0xff]
      %v3667 = vld [vmem:[#allocation16 + $0x3d0] sm:$0xff]
      %v3668 = vld [vmem:[#allocation16 + $0x3d8] sm:$0xff]
      %v3669 = vld [vmem:[#allocation16 + $0x3e0] sm:$0xff]
      %v3670 = vld [vmem:[#allocation16 + $0x3e8] sm:$0xff]
      %v3671 = vld [vmem:[#allocation16 + $0x3f0] sm:$0xff]
      %v3672 = vld [vmem:[#allocation16 + $0x3f8] sm:$0xff]
      %v3673 = vld [vmem:[%s9] sm:$0xff]
      %v3675 = vlaneseq
      %v3676 = vshrl.u32 %v3675, 7
      %v3677 = vsub.s32 0, %v3676
      %v3678 = vrot.slane %v3673, %v3677
      %v3679 = vlaneseq
      %v3680 = vshrl.u32 %v3679, 7
      %v3681 = vsub.s32 1, %v3680
      %v3682 = vrot.slane %v3673, %v3681
      %v3683 = vlaneseq
      %v3684 = vshrl.u32 %v3683, 7
      %v3685 = vsub.s32 2, %v3684
      %v3686 = vrot.slane %v3673, %v3685
      %v3687 = vlaneseq
      %v3688 = vshrl.u32 %v3687, 7
      %v3689 = vsub.s32 3, %v3688
      %v3690 = vrot.slane %v3673, %v3689
      %v3691 = vlaneseq
      %v3692 = vshrl.u32 %v3691, 7
      %v3693 = vsub.s32 4, %v3692
      %v3694 = vrot.slane %v3673, %v3693
      %v3695 = vlaneseq
      %v3696 = vshrl.u32 %v3695, 7
      %v3697 = vsub.s32 5, %v3696
      %v3698 = vrot.slane %v3673, %v3697
      %v3699 = vlaneseq
      %v3700 = vshrl.u32 %v3699, 7
      %v3701 = vsub.s32 6, %v3700
      %v3702 = vrot.slane %v3673, %v3701
      %v3703 = vlaneseq
      %v3704 = vshrl.u32 %v3703, 7
      %v3705 = vsub.s32 7, %v3704
      %v3706 = vrot.slane %v3673, %v3705
      %v3843 = vunpack.c.l.b16 %v3545
      %v3844 = vunpack.c.h.b16 %v3545
      %v3845 = vunpack.c.l.b16 %v3546
      %v3846 = vunpack.c.h.b16 %v3546
      %v3847 = vunpack.c.l.b16 %v3547
      %v3848 = vunpack.c.h.b16 %v3547
      %v3849 = vunpack.c.l.b16 %v3548
      %v3850 = vunpack.c.h.b16 %v3548
      %v3851 = vunpack.c.l.b16 %v3549
      %v3852 = vunpack.c.h.b16 %v3549
      %v3853 = vunpack.c.l.b16 %v3550
      %v3854 = vunpack.c.h.b16 %v3550
      %v3855 = vunpack.c.l.b16 %v3551
      %v3856 = vunpack.c.h.b16 %v3551
      %v3857 = vunpack.c.l.b16 %v3552
      %v3858 = vunpack.c.h.b16 %v3552
      %v3859 = vunpack.c.l.b16 %v3553
      %v3860 = vunpack.c.h.b16 %v3553
      %v3861 = vunpack.c.l.b16 %v3554
      %v3862 = vunpack.c.h.b16 %v3554
      %v3863 = vunpack.c.l.b16 %v3555
      %v3864 = vunpack.c.h.b16 %v3555
      %v3865 = vunpack.c.l.b16 %v3556
      %v3866 = vunpack.c.h.b16 %v3556
      %v3867 = vunpack.c.l.b16 %v3557
      %v3868 = vunpack.c.h.b16 %v3557
      %v3869 = vunpack.c.l.b16 %v3558
      %v3870 = vunpack.c.h.b16 %v3558
      %v3871 = vunpack.c.l.b16 %v3559
      %v3872 = vunpack.c.h.b16 %v3559
      %v3873 = vunpack.c.l.b16 %v3560
      %v3874 = vunpack.c.h.b16 %v3560
      %v3875 = vunpack.c.l.b16 %v3561
      %v3876 = vunpack.c.h.b16 %v3561
      %v3877 = vunpack.c.l.b16 %v3562
      %v3878 = vunpack.c.h.b16 %v3562
      %v3879 = vunpack.c.l.b16 %v3563
      %v3880 = vunpack.c.h.b16 %v3563
      %v3881 = vunpack.c.l.b16 %v3564
      %v3882 = vunpack.c.h.b16 %v3564
      %v3883 = vunpack.c.l.b16 %v3565
      %v3884 = vunpack.c.h.b16 %v3565
      %v3885 = vunpack.c.l.b16 %v3566
      %v3886 = vunpack.c.h.b16 %v3566
      %v3887 = vunpack.c.l.b16 %v3567
      %v3888 = vunpack.c.h.b16 %v3567
      %v3889 = vunpack.c.l.b16 %v3568
      %v3890 = vunpack.c.h.b16 %v3568
      %v3891 = vunpack.c.l.b16 %v3569
      %v3892 = vunpack.c.h.b16 %v3569
      %v3893 = vunpack.c.l.b16 %v3570
      %v3894 = vunpack.c.h.b16 %v3570
      %v3895 = vunpack.c.l.b16 %v3571
      %v3896 = vunpack.c.h.b16 %v3571
      %v3897 = vunpack.c.l.b16 %v3572
      %v3898 = vunpack.c.h.b16 %v3572
      %v3899 = vunpack.c.l.b16 %v3573
      %v3900 = vunpack.c.h.b16 %v3573
      %v3901 = vunpack.c.l.b16 %v3574
      %v3902 = vunpack.c.h.b16 %v3574
      %v3903 = vunpack.c.l.b16 %v3575
      %v3904 = vunpack.c.h.b16 %v3575
      %v3905 = vunpack.c.l.b16 %v3576
      %v3906 = vunpack.c.h.b16 %v3576
      %v3907 = vunpack.c.l.b16 %v3577
      %v3908 = vunpack.c.h.b16 %v3577
      %v3909 = vunpack.c.l.b16 %v3578
      %v3910 = vunpack.c.h.b16 %v3578
      %v3911 = vunpack.c.l.b16 %v3579
      %v3912 = vunpack.c.h.b16 %v3579
      %v3913 = vunpack.c.l.b16 %v3580
      %v3914 = vunpack.c.h.b16 %v3580
      %v3915 = vunpack.c.l.b16 %v3581
      %v3916 = vunpack.c.h.b16 %v3581
      %v3917 = vunpack.c.l.b16 %v3582
      %v3918 = vunpack.c.h.b16 %v3582
      %v3919 = vunpack.c.l.b16 %v3583
      %v3920 = vunpack.c.h.b16 %v3583
      %v3921 = vunpack.c.l.b16 %v3584
      %v3922 = vunpack.c.h.b16 %v3584
      %v3923 = vunpack.c.l.b16 %v3585
      %v3924 = vunpack.c.h.b16 %v3585
      %v3925 = vunpack.c.l.b16 %v3586
      %v3926 = vunpack.c.h.b16 %v3586
      %v3927 = vunpack.c.l.b16 %v3587
      %v3928 = vunpack.c.h.b16 %v3587
      %v3929 = vunpack.c.l.b16 %v3588
      %v3930 = vunpack.c.h.b16 %v3588
      %v3931 = vunpack.c.l.b16 %v3589
      %v3932 = vunpack.c.h.b16 %v3589
      %v3933 = vunpack.c.l.b16 %v3590
      %v3934 = vunpack.c.h.b16 %v3590
      %v3935 = vunpack.c.l.b16 %v3591
      %v3936 = vunpack.c.h.b16 %v3591
      %v3937 = vunpack.c.l.b16 %v3592
      %v3938 = vunpack.c.h.b16 %v3592
      %v3939 = vunpack.c.l.b16 %v3593
      %v3940 = vunpack.c.h.b16 %v3593
      %v3941 = vunpack.c.l.b16 %v3594
      %v3942 = vunpack.c.h.b16 %v3594
      %v3943 = vunpack.c.l.b16 %v3595
      %v3944 = vunpack.c.h.b16 %v3595
      %v3945 = vunpack.c.l.b16 %v3596
      %v3946 = vunpack.c.h.b16 %v3596
      %v3947 = vunpack.c.l.b16 %v3597
      %v3948 = vunpack.c.h.b16 %v3597
      %v3949 = vunpack.c.l.b16 %v3598
      %v3950 = vunpack.c.h.b16 %v3598
      %v3951 = vunpack.c.l.b16 %v3599
      %v3952 = vunpack.c.h.b16 %v3599
      %v3953 = vunpack.c.l.b16 %v3600
      %v3954 = vunpack.c.h.b16 %v3600
      %v3955 = vunpack.c.l.b16 %v3601
      %v3956 = vunpack.c.h.b16 %v3601
      %v3957 = vunpack.c.l.b16 %v3602
      %v3958 = vunpack.c.h.b16 %v3602
      %v3959 = vunpack.c.l.b16 %v3603
      %v3960 = vunpack.c.h.b16 %v3603
      %v3961 = vunpack.c.l.b16 %v3604
      %v3962 = vunpack.c.h.b16 %v3604
      %v3963 = vunpack.c.l.b16 %v3605
      %v3964 = vunpack.c.h.b16 %v3605
      %v3965 = vunpack.c.l.b16 %v3606
      %v3966 = vunpack.c.h.b16 %v3606
      %v3967 = vunpack.c.l.b16 %v3607
      %v3968 = vunpack.c.h.b16 %v3607
      %v3969 = vunpack.c.l.b16 %v3608
      %v3970 = vunpack.c.h.b16 %v3608
      %v3971 = vunpack.c.l.b16 %v3609
      %v3972 = vunpack.c.h.b16 %v3609
      %v3973 = vunpack.c.l.b16 %v3610
      %v3974 = vunpack.c.h.b16 %v3610
      %v3975 = vunpack.c.l.b16 %v3611
      %v3976 = vunpack.c.h.b16 %v3611
      %v3977 = vunpack.c.l.b16 %v3612
      %v3978 = vunpack.c.h.b16 %v3612
      %v3979 = vunpack.c.l.b16 %v3613
      %v3980 = vunpack.c.h.b16 %v3613
      %v3981 = vunpack.c.l.b16 %v3614
      %v3982 = vunpack.c.h.b16 %v3614
      %v3983 = vunpack.c.l.b16 %v3615
      %v3984 = vunpack.c.h.b16 %v3615
      %v3985 = vunpack.c.l.b16 %v3616
      %v3986 = vunpack.c.h.b16 %v3616
      %v3987 = vunpack.c.l.b16 %v3617
      %v3988 = vunpack.c.h.b16 %v3617
      %v3989 = vunpack.c.l.b16 %v3618
      %v3990 = vunpack.c.h.b16 %v3618
      %v3991 = vunpack.c.l.b16 %v3619
      %v3992 = vunpack.c.h.b16 %v3619
      %v3993 = vunpack.c.l.b16 %v3620
      %v3994 = vunpack.c.h.b16 %v3620
      %v3995 = vunpack.c.l.b16 %v3621
      %v3996 = vunpack.c.h.b16 %v3621
      %v3997 = vunpack.c.l.b16 %v3622
      %v3998 = vunpack.c.h.b16 %v3622
      %v3999 = vunpack.c.l.b16 %v3623
      %v4000 = vunpack.c.h.b16 %v3623
      %v4001 = vunpack.c.l.b16 %v3624
      %v4002 = vunpack.c.h.b16 %v3624
      %v4003 = vunpack.c.l.b16 %v3625
      %v4004 = vunpack.c.h.b16 %v3625
      %v4005 = vunpack.c.l.b16 %v3626
      %v4006 = vunpack.c.h.b16 %v3626
      %v4007 = vunpack.c.l.b16 %v3627
      %v4008 = vunpack.c.h.b16 %v3627
      %v4009 = vunpack.c.l.b16 %v3628
      %v4010 = vunpack.c.h.b16 %v3628
      %v4011 = vunpack.c.l.b16 %v3629
      %v4012 = vunpack.c.h.b16 %v3629
      %v4013 = vunpack.c.l.b16 %v3630
      %v4014 = vunpack.c.h.b16 %v3630
      %v4015 = vunpack.c.l.b16 %v3631
      %v4016 = vunpack.c.h.b16 %v3631
      %v4017 = vunpack.c.l.b16 %v3632
      %v4018 = vunpack.c.h.b16 %v3632
      %v4019 = vunpack.c.l.b16 %v3633
      %v4020 = vunpack.c.h.b16 %v3633
      %v4021 = vunpack.c.l.b16 %v3634
      %v4022 = vunpack.c.h.b16 %v3634
      %v4023 = vunpack.c.l.b16 %v3635
      %v4024 = vunpack.c.h.b16 %v3635
      %v4025 = vunpack.c.l.b16 %v3636
      %v4026 = vunpack.c.h.b16 %v3636
      %v4027 = vunpack.c.l.b16 %v3637
      %v4028 = vunpack.c.h.b16 %v3637
      %v4029 = vunpack.c.l.b16 %v3638
      %v4030 = vunpack.c.h.b16 %v3638
      %v4031 = vunpack.c.l.b16 %v3639
      %v4032 = vunpack.c.h.b16 %v3639
      %v4033 = vunpack.c.l.b16 %v3640
      %v4034 = vunpack.c.h.b16 %v3640
      %v4035 = vunpack.c.l.b16 %v3641
      %v4036 = vunpack.c.h.b16 %v3641
      %v4037 = vunpack.c.l.b16 %v3642
      %v4038 = vunpack.c.h.b16 %v3642
      %v4039 = vunpack.c.l.b16 %v3643
      %v4040 = vunpack.c.h.b16 %v3643
      %v4041 = vunpack.c.l.b16 %v3644
      %v4042 = vunpack.c.h.b16 %v3644
      %v4043 = vunpack.c.l.b16 %v3645
      %v4044 = vunpack.c.h.b16 %v3645
      %v4045 = vunpack.c.l.b16 %v3646
      %v4046 = vunpack.c.h.b16 %v3646
      %v4047 = vunpack.c.l.b16 %v3647
      %v4048 = vunpack.c.h.b16 %v3647
      %v4049 = vunpack.c.l.b16 %v3648
      %v4050 = vunpack.c.h.b16 %v3648
      %v4051 = vunpack.c.l.b16 %v3649
      %v4052 = vunpack.c.h.b16 %v3649
      %v4053 = vunpack.c.l.b16 %v3650
      %v4054 = vunpack.c.h.b16 %v3650
      %v4055 = vunpack.c.l.b16 %v3651
      %v4056 = vunpack.c.h.b16 %v3651
      %v4057 = vunpack.c.l.b16 %v3652
      %v4058 = vunpack.c.h.b16 %v3652
      %v4059 = vunpack.c.l.b16 %v3653
      %v4060 = vunpack.c.h.b16 %v3653
      %v4061 = vunpack.c.l.b16 %v3654
      %v4062 = vunpack.c.h.b16 %v3654
      %v4063 = vunpack.c.l.b16 %v3655
      %v4064 = vunpack.c.h.b16 %v3655
      %v4065 = vunpack.c.l.b16 %v3656
      %v4066 = vunpack.c.h.b16 %v3656
      %v4067 = vunpack.c.l.b16 %v3657
      %v4068 = vunpack.c.h.b16 %v3657
      %v4069 = vunpack.c.l.b16 %v3658
      %v4070 = vunpack.c.h.b16 %v3658
      %v4071 = vunpack.c.l.b16 %v3659
      %v4072 = vunpack.c.h.b16 %v3659
      %v4073 = vunpack.c.l.b16 %v3660
      %v4074 = vunpack.c.h.b16 %v3660
      %v4075 = vunpack.c.l.b16 %v3661
      %v4076 = vunpack.c.h.b16 %v3661
      %v4077 = vunpack.c.l.b16 %v3662
      %v4078 = vunpack.c.h.b16 %v3662
      %v4079 = vunpack.c.l.b16 %v3663
      %v4080 = vunpack.c.h.b16 %v3663
      %v4081 = vunpack.c.l.b16 %v3664
      %v4082 = vunpack.c.h.b16 %v3664
      %v4083 = vunpack.c.l.b16 %v3665
      %v4084 = vunpack.c.h.b16 %v3665
      %v4085 = vunpack.c.l.b16 %v3666
      %v4086 = vunpack.c.h.b16 %v3666
      %v4087 = vunpack.c.l.b16 %v3667
      %v4088 = vunpack.c.h.b16 %v3667
      %v4089 = vunpack.c.l.b16 %v3668
      %v4090 = vunpack.c.h.b16 %v3668
      %v4091 = vunpack.c.l.b16 %v3669
      %v4092 = vunpack.c.h.b16 %v3669
      %v4093 = vunpack.c.l.b16 %v3670
      %v4094 = vunpack.c.h.b16 %v3670
      %v4095 = vunpack.c.l.b16 %v3671
      %v4096 = vunpack.c.h.b16 %v3671
      %v4097 = vunpack.c.l.b16 %v3672
      %v4098 = vunpack.c.h.b16 %v3672
      %v4099 = vpack.c.b16 %v3851, %v3843
      %v4100 = vpack.c.b16 %v3852, %v3844
      %v4101 = vpack.c.b16 %v3853, %v3845
      %v4102 = vpack.c.b16 %v3854, %v3846
      %v4103 = vpack.c.b16 %v3855, %v3847
      %v4104 = vpack.c.b16 %v3856, %v3848
      %v4105 = vpack.c.b16 %v3857, %v3849
      %v4106 = vpack.c.b16 %v3858, %v3850
      %v4107 = vpack.c.b16 %v3867, %v3859
      %v4108 = vpack.c.b16 %v3868, %v3860
      %v4109 = vpack.c.b16 %v3869, %v3861
      %v4110 = vpack.c.b16 %v3870, %v3862
      %v4111 = vpack.c.b16 %v3871, %v3863
      %v4112 = vpack.c.b16 %v3872, %v3864
      %v4113 = vpack.c.b16 %v3873, %v3865
      %v4114 = vpack.c.b16 %v3874, %v3866
      %v4115 = vpack.c.b16 %v3883, %v3875
      %v4116 = vpack.c.b16 %v3884, %v3876
      %v4117 = vpack.c.b16 %v3885, %v3877
      %v4118 = vpack.c.b16 %v3886, %v3878
      %v4119 = vpack.c.b16 %v3887, %v3879
      %v4120 = vpack.c.b16 %v3888, %v3880
      %v4121 = vpack.c.b16 %v3889, %v3881
      %v4122 = vpack.c.b16 %v3890, %v3882
      %v4123 = vpack.c.b16 %v3899, %v3891
      %v4124 = vpack.c.b16 %v3900, %v3892
      %v4125 = vpack.c.b16 %v3901, %v3893
      %v4126 = vpack.c.b16 %v3902, %v3894
      %v4127 = vpack.c.b16 %v3903, %v3895
      %v4128 = vpack.c.b16 %v3904, %v3896
      %v4129 = vpack.c.b16 %v3905, %v3897
      %v4130 = vpack.c.b16 %v3906, %v3898
      %v4131 = vpack.c.b16 %v3915, %v3907
      %v4132 = vpack.c.b16 %v3916, %v3908
      %v4133 = vpack.c.b16 %v3917, %v3909
      %v4134 = vpack.c.b16 %v3918, %v3910
      %v4135 = vpack.c.b16 %v3919, %v3911
      %v4136 = vpack.c.b16 %v3920, %v3912
      %v4137 = vpack.c.b16 %v3921, %v3913
      %v4138 = vpack.c.b16 %v3922, %v3914
      %v4139 = vpack.c.b16 %v3931, %v3923
      %v4140 = vpack.c.b16 %v3932, %v3924
      %v4141 = vpack.c.b16 %v3933, %v3925
      %v4142 = vpack.c.b16 %v3934, %v3926
      %v4143 = vpack.c.b16 %v3935, %v3927
      %v4144 = vpack.c.b16 %v3936, %v3928
      %v4145 = vpack.c.b16 %v3937, %v3929
      %v4146 = vpack.c.b16 %v3938, %v3930
      %v4147 = vpack.c.b16 %v3947, %v3939
      %v4148 = vpack.c.b16 %v3948, %v3940
      %v4149 = vpack.c.b16 %v3949, %v3941
      %v4150 = vpack.c.b16 %v3950, %v3942
      %v4151 = vpack.c.b16 %v3951, %v3943
      %v4152 = vpack.c.b16 %v3952, %v3944
      %v4153 = vpack.c.b16 %v3953, %v3945
      %v4154 = vpack.c.b16 %v3954, %v3946
      %v4155 = vpack.c.b16 %v3963, %v3955
      %v4156 = vpack.c.b16 %v3964, %v3956
      %v4157 = vpack.c.b16 %v3965, %v3957
      %v4158 = vpack.c.b16 %v3966, %v3958
      %v4159 = vpack.c.b16 %v3967, %v3959
      %v4160 = vpack.c.b16 %v3968, %v3960
      %v4161 = vpack.c.b16 %v3969, %v3961
      %v4162 = vpack.c.b16 %v3970, %v3962
      %v4163 = vpack.c.b16 %v3979, %v3971
      %v4164 = vpack.c.b16 %v3980, %v3972
      %v4165 = vpack.c.b16 %v3981, %v3973
      %v4166 = vpack.c.b16 %v3982, %v3974
      %v4167 = vpack.c.b16 %v3983, %v3975
      %v4168 = vpack.c.b16 %v3984, %v3976
      %v4169 = vpack.c.b16 %v3985, %v3977
      %v4170 = vpack.c.b16 %v3986, %v3978
      %v4171 = vpack.c.b16 %v3995, %v3987
      %v4172 = vpack.c.b16 %v3996, %v3988
      %v4173 = vpack.c.b16 %v3997, %v3989
      %v4174 = vpack.c.b16 %v3998, %v3990
      %v4175 = vpack.c.b16 %v3999, %v3991
      %v4176 = vpack.c.b16 %v4000, %v3992
      %v4177 = vpack.c.b16 %v4001, %v3993
      %v4178 = vpack.c.b16 %v4002, %v3994
      %v4179 = vpack.c.b16 %v4011, %v4003
      %v4180 = vpack.c.b16 %v4012, %v4004
      %v4181 = vpack.c.b16 %v4013, %v4005
      %v4182 = vpack.c.b16 %v4014, %v4006
      %v4183 = vpack.c.b16 %v4015, %v4007
      %v4184 = vpack.c.b16 %v4016, %v4008
      %v4185 = vpack.c.b16 %v4017, %v4009
      %v4186 = vpack.c.b16 %v4018, %v4010
      %v4187 = vpack.c.b16 %v4027, %v4019
      %v4188 = vpack.c.b16 %v4028, %v4020
      %v4189 = vpack.c.b16 %v4029, %v4021
      %v4190 = vpack.c.b16 %v4030, %v4022
      %v4191 = vpack.c.b16 %v4031, %v4023
      %v4192 = vpack.c.b16 %v4032, %v4024
      %v4193 = vpack.c.b16 %v4033, %v4025
      %v4194 = vpack.c.b16 %v4034, %v4026
      %v4195 = vpack.c.b16 %v4043, %v4035
      %v4196 = vpack.c.b16 %v4044, %v4036
      %v4197 = vpack.c.b16 %v4045, %v4037
      %v4198 = vpack.c.b16 %v4046, %v4038
      %v4199 = vpack.c.b16 %v4047, %v4039
      %v4200 = vpack.c.b16 %v4048, %v4040
      %v4201 = vpack.c.b16 %v4049, %v4041
      %v4202 = vpack.c.b16 %v4050, %v4042
      %v4203 = vpack.c.b16 %v4059, %v4051
      %v4204 = vpack.c.b16 %v4060, %v4052
      %v4205 = vpack.c.b16 %v4061, %v4053
      %v4206 = vpack.c.b16 %v4062, %v4054
      %v4207 = vpack.c.b16 %v4063, %v4055
      %v4208 = vpack.c.b16 %v4064, %v4056
      %v4209 = vpack.c.b16 %v4065, %v4057
      %v4210 = vpack.c.b16 %v4066, %v4058
      %v4211 = vpack.c.b16 %v4075, %v4067
      %v4212 = vpack.c.b16 %v4076, %v4068
      %v4213 = vpack.c.b16 %v4077, %v4069
      %v4214 = vpack.c.b16 %v4078, %v4070
      %v4215 = vpack.c.b16 %v4079, %v4071
      %v4216 = vpack.c.b16 %v4080, %v4072
      %v4217 = vpack.c.b16 %v4081, %v4073
      %v4218 = vpack.c.b16 %v4082, %v4074
      %v4219 = vpack.c.b16 %v4091, %v4083
      %v4220 = vpack.c.b16 %v4092, %v4084
      %v4221 = vpack.c.b16 %v4093, %v4085
      %v4222 = vpack.c.b16 %v4094, %v4086
      %v4223 = vpack.c.b16 %v4095, %v4087
      %v4224 = vpack.c.b16 %v4096, %v4088
      %v4225 = vpack.c.b16 %v4097, %v4089
      %v4226 = vpack.c.b16 %v4098, %v4090
      %4355 = vmatprep.subr.bf16.mxu0 %v4156
      %4356 = vmatpush1.bf16.msra.mxu0 %v4155
      %4357 = vmatprep.subr.bf16.mxu0 %v4148
      %4358 = vmatpush1.bf16.msra.mxu0 %v4147
      %4359 = vmatprep.subr.bf16.mxu0 %v4140
      %4360 = vmatpush1.bf16.msra.mxu0 %v4139
      %4361 = vmatprep.subr.bf16.mxu0 %v4132
      %4362 = vmatpush1.bf16.msra.mxu0 %v4131
      %4363 = vmatprep.subr.bf16.mxu0 %v4124
      %4364 = vmatpush1.bf16.msra.mxu0 %v4123
      %4365 = vmatprep.subr.bf16.mxu0 %v4116
      %4366 = vmatpush1.bf16.msra.mxu0 %v4115
      %4367 = vmatprep.subr.bf16.mxu0 %v4108
      %4368 = vmatpush1.bf16.msra.mxu0 %v4107
      %4369 = vmatprep.subr.bf16.mxu0 %v4100
      %4370 = vmatpush1.bf16.msra.mxu0 %v4099
      %4371 = vmatprep.subr.bf16.mxu0 %v4220
      %4372 = vmatpush2.bf16.msra.mxu0 %v4219
      %4373 = vmatprep.subr.bf16.mxu0 %v4212
      %4374 = vmatpush2.bf16.msra.mxu0 %v4211
      %4375 = vmatprep.subr.bf16.mxu0 %v4204
      %4376 = vmatpush2.bf16.msra.mxu0 %v4203
      %4377 = vmatprep.subr.bf16.mxu0 %v4196
      %4378 = vmatpush2.bf16.msra.mxu0 %v4195
      %4379 = vmatprep.subr.bf16.mxu0 %v4188
      %4380 = vmatpush2.bf16.msra.mxu0 %v4187
      %4381 = vmatprep.subr.bf16.mxu0 %v4180
      %4382 = vmatpush2.bf16.msra.mxu0 %v4179
      %4383 = vmatprep.subr.bf16.mxu0 %v4172
      %4384 = vmatpush2.bf16.msra.mxu0 %v4171
      %4385 = vmatprep.subr.bf16.mxu0 %v4164
      %4386 = vmatpush2.bf16.msra.mxu0 %v4163
      %4387 = vmatprep.mubr.bf16.mxu0 %v3544
      %4388 = vmatmul.mubr.bf16.gmra.mxu0 %v3543
      %v4389 = vpop.f32.mrf.mxu0
      %v4390 = vadd.f32 %v3678, %v4389
      %v4391 = vpop.f32.mrf.mxu0
      %v4392 = vadd.f32 %v3682, %v4391
      %v4393 = vpop.f32.mrf.mxu0
      %v4394 = vpop.f32.mrf.mxu0
      %4395 = vdwg.mxu0
      %4396 = vmatprep.subr.bf16.mxu0 %v4158
      %4397 = vmatpush1.bf16.msra.mxu0 %v4157
      %4398 = vmatprep.subr.bf16.mxu0 %v4150
      %4399 = vmatpush1.bf16.msra.mxu0 %v4149
      %4400 = vmatprep.subr.bf16.mxu0 %v4142
      %4401 = vmatpush1.bf16.msra.mxu0 %v4141
      %4402 = vmatprep.subr.bf16.mxu0 %v4134
      %4403 = vmatpush1.bf16.msra.mxu0 %v4133
      %4404 = vmatprep.subr.bf16.mxu0 %v4126
      %4405 = vmatpush1.bf16.msra.mxu0 %v4125
      %4406 = vmatprep.subr.bf16.mxu0 %v4118
      %4407 = vmatpush1.bf16.msra.mxu0 %v4117
      %4408 = vmatprep.subr.bf16.mxu0 %v4110
      %4409 = vmatpush1.bf16.msra.mxu0 %v4109
      %4410 = vmatprep.subr.bf16.mxu0 %v4102
      %4411 = vmatpush1.bf16.msra.mxu0 %v4101
      %4412 = vmatprep.subr.bf16.mxu0 %v4222
      %4413 = vmatpush2.bf16.msra.mxu0 %v4221
      %4414 = vmatprep.subr.bf16.mxu0 %v4214
      %4415 = vmatpush2.bf16.msra.mxu0 %v4213
      %4416 = vmatprep.subr.bf16.mxu0 %v4206
      %4417 = vmatpush2.bf16.msra.mxu0 %v4205
      %4418 = vmatprep.subr.bf16.mxu0 %v4198
      %4419 = vmatpush2.bf16.msra.mxu0 %v4197
      %4420 = vmatprep.subr.bf16.mxu0 %v4190
      %4421 = vmatpush2.bf16.msra.mxu0 %v4189
      %4422 = vmatprep.subr.bf16.mxu0 %v4182
      %4423 = vmatpush2.bf16.msra.mxu0 %v4181
      %4424 = vmatprep.subr.bf16.mxu0 %v4174
      %4425 = vmatpush2.bf16.msra.mxu0 %v4173
      %4426 = vmatprep.subr.bf16.mxu0 %v4166
      %4427 = vmatpush2.bf16.msra.mxu0 %v4165
      %4428 = vmatprep.mubr.bf16.mxu0 %v3544
      %4429 = vmatmul.mubr.bf16.gmra.mxu0 %v3543
      %v4430 = vpop.f32.mrf.mxu0
      %v4431 = vadd.f32 %v3686, %v4430
      %v4432 = vpop.f32.mrf.mxu0
      %v4433 = vadd.f32 %v3690, %v4432
      %v4434 = vpop.f32.mrf.mxu0
      %v4435 = vpop.f32.mrf.mxu0
      %4436 = vdwg.mxu0
      %4437 = vmatprep.subr.bf16.mxu0 %v4160
      %4438 = vmatpush1.bf16.msra.mxu0 %v4159
      %4439 = vmatprep.subr.bf16.mxu0 %v4152
      %4440 = vmatpush1.bf16.msra.mxu0 %v4151
      %4441 = vmatprep.subr.bf16.mxu0 %v4144
      %4442 = vmatpush1.bf16.msra.mxu0 %v4143
      %4443 = vmatprep.subr.bf16.mxu0 %v4136
      %4444 = vmatpush1.bf16.msra.mxu0 %v4135
      %4445 = vmatprep.subr.bf16.mxu0 %v4128
      %4446 = vmatpush1.bf16.msra.mxu0 %v4127
      %4447 = vmatprep.subr.bf16.mxu0 %v4120
      %4448 = vmatpush1.bf16.msra.mxu0 %v4119
      %4449 = vmatprep.subr.bf16.mxu0 %v4112
      %4450 = vmatpush1.bf16.msra.mxu0 %v4111
      %4451 = vmatprep.subr.bf16.mxu0 %v4104
      %4452 = vmatpush1.bf16.msra.mxu0 %v4103
      %4453 = vmatprep.subr.bf16.mxu0 %v4224
      %4454 = vmatpush2.bf16.msra.mxu0 %v4223
      %4455 = vmatprep.subr.bf16.mxu0 %v4216
      %4456 = vmatpush2.bf16.msra.mxu0 %v4215
      %4457 = vmatprep.subr.bf16.mxu0 %v4208
      %4458 = vmatpush2.bf16.msra.mxu0 %v4207
      %4459 = vmatprep.subr.bf16.mxu0 %v4200
      %4460 = vmatpush2.bf16.msra.mxu0 %v4199
      %4461 = vmatprep.subr.bf16.mxu0 %v4192
      %4462 = vmatpush2.bf16.msra.mxu0 %v4191
      %4463 = vmatprep.subr.bf16.mxu0 %v4184
      %4464 = vmatpush2.bf16.msra.mxu0 %v4183
      %4465 = vmatprep.subr.bf16.mxu0 %v4176
      %4466 = vmatpush2.bf16.msra.mxu0 %v4175
      %4467 = vmatprep.subr.bf16.mxu0 %v4168
      %4468 = vmatpush2.bf16.msra.mxu0 %v4167
      %4469 = vmatprep.mubr.bf16.mxu0 %v3544
      %4470 = vmatmul.mubr.bf16.gmra.mxu0 %v3543
      %v4471 = vpop.f32.mrf.mxu0
      %v4472 = vadd.f32 %v3694, %v4471
      %v4473 = vpop.f32.mrf.mxu0
      %v4474 = vadd.f32 %v3698, %v4473
      %v4475 = vpop.f32.mrf.mxu0
      %v4476 = vpop.f32.mrf.mxu0
      %4477 = vdwg.mxu0
      %4478 = vmatprep.subr.bf16.mxu0 %v4162
      %4479 = vmatpush1.bf16.msra.mxu0 %v4161
      %4480 = vmatprep.subr.bf16.mxu0 %v4154
      %4481 = vmatpush1.bf16.msra.mxu0 %v4153
      %4482 = vmatprep.subr.bf16.mxu0 %v4146
      %4483 = vmatpush1.bf16.msra.mxu0 %v4145
      %4484 = vmatprep.subr.bf16.mxu0 %v4138
      %4485 = vmatpush1.bf16.msra.mxu0 %v4137
      %4486 = vmatprep.subr.bf16.mxu0 %v4130
      %4487 = vmatpush1.bf16.msra.mxu0 %v4129
      %4488 = vmatprep.subr.bf16.mxu0 %v4122
      %4489 = vmatpush1.bf16.msra.mxu0 %v4121
      %4490 = vmatprep.subr.bf16.mxu0 %v4114
      %4491 = vmatpush1.bf16.msra.mxu0 %v4113
      %4492 = vmatprep.subr.bf16.mxu0 %v4106
      %4493 = vmatpush1.bf16.msra.mxu0 %v4105
      %4494 = vmatprep.subr.bf16.mxu0 %v4226
      %4495 = vmatpush2.bf16.msra.mxu0 %v4225
      %4496 = vmatprep.subr.bf16.mxu0 %v4218
      %4497 = vmatpush2.bf16.msra.mxu0 %v4217
      %4498 = vmatprep.subr.bf16.mxu0 %v4210
      %4499 = vmatpush2.bf16.msra.mxu0 %v4209
      %4500 = vmatprep.subr.bf16.mxu0 %v4202
      %4501 = vmatpush2.bf16.msra.mxu0 %v4201
      %4502 = vmatprep.subr.bf16.mxu0 %v4194
      %4503 = vmatpush2.bf16.msra.mxu0 %v4193
      %4504 = vmatprep.subr.bf16.mxu0 %v4186
      %4505 = vmatpush2.bf16.msra.mxu0 %v4185
      %4506 = vmatprep.subr.bf16.mxu0 %v4178
      %4507 = vmatpush2.bf16.msra.mxu0 %v4177
      %4508 = vmatprep.subr.bf16.mxu0 %v4170
      %4509 = vmatpush2.bf16.msra.mxu0 %v4169
      %4510 = vmatprep.mubr.bf16.mxu0 %v3544
      %4511 = vmatmul.mubr.bf16.gmra.mxu0 %v3543
      %v4512 = vpop.f32.mrf.mxu0
      %v4513 = vadd.f32 %v3702, %v4512
      %v4514 = vpop.f32.mrf.mxu0
      %v4515 = vadd.f32 %v3706, %v4514
      %v4516 = vpop.f32.mrf.mxu0
      %v4517 = vpop.f32.mrf.mxu0
      %4518 = vdwg.mxu0
      %v4519 = vpack.c.bf16 %v4390, %v4390
      %v4520 = vpack.c.bf16 %v4392, %v4392
      %v4521 = vpack.c.bf16 %v4431, %v4431
      %v4522 = vpack.c.bf16 %v4433, %v4433
      %v4523 = vpack.c.bf16 %v4472, %v4472
      %v4524 = vpack.c.bf16 %v4474, %v4474
      %v4525 = vpack.c.bf16 %v4513, %v4513
      %v4526 = vpack.c.bf16 %v4515, %v4515
      %v4535 = vunpack.c.l.b16 %v4519
      %v4536 = vunpack.c.l.b16 %v4520
      %v4537 = vunpack.c.l.b16 %v4521
      %v4538 = vunpack.c.l.b16 %v4522
      %v4539 = vunpack.c.l.b16 %v4523
      %v4540 = vunpack.c.l.b16 %v4524
      %v4541 = vunpack.c.l.b16 %v4525
      %v4542 = vunpack.c.l.b16 %v4526
      %v4543 = vpack.c.b16 %v4536, %v4535
      %v4544 = vpack.c.b16 %v4538, %v4537
      %v4545 = vpack.c.b16 %v4540, %v4539
      %v4546 = vpack.c.b16 %v4542, %v4541
      %4551 = vst [vmem:[%s2544] sm:$0xff] %v4543
      %4552 = vst [vmem:[%s2544 + $0x8] sm:$0xff] %v4544
      %4553 = vst [vmem:[%s2544 + $0x10] sm:$0xff] %v4545
      %4554 = vst [vmem:[%s2544 + $0x18] sm:$0xff] %v4546
    $region97: #{tpu_custom_call.1} parent=1 // loop_footer
      %s2541 = sadd.s32 1, %s2537
    $region98: #{tpu_custom_call.1} parent=1 // loop_footer_branch
      %2536 = sbr.rel target = $region94
    $region99: #{tpu_custom_call.1} parent=1 // loop_exit
      _
    %4555 = vst [vmem:[#allocation3] sm:$0xff] 0.0
    %4556 = vst [vmem:[#allocation3 + $0x8] sm:$0xff] 0.0
    %4557 = vst [vmem:[#allocation4] sm:$0xff] 0.0
    %4558 = vst [vmem:[#allocation4 + $0x8] sm:$0xff] 0.0
    loop: start=0, step=1, limit=8
    $region100: #{tpu_custom_call.1} parent=1 // loop_pre_header
      _
    $region101: #{tpu_custom_call.1} parent=1 // loop_header
      %s4560 = sphi 0, %s4564
      %p4561 = scmp.ge.s32.totalorder %s4560, 8
    $region102: #{tpu_custom_call.1} parent=1 // loop_header_branch
      %4563 = sbr.rel (%p4561) target = $region106
    $region103: #{tpu_custom_call.1} parent=1 // loop_body
      %s4565 = smul.u32 %s4560, 8
      %s4566 = smul.addr %s4565, 4
      %s4567 = scalar_lea.vmem [#allocation2], %s4566
      %v4568 = vld [vmem:[%s4567] sm:$0xff]
      %v4569 = vld [vmem:[%s4567 + $0x8] sm:$0xff]
      %v4570 = vld [vmem:[%s4567 + $0x10] sm:$0xff]
      %v4571 = vld [vmem:[%s4567 + $0x18] sm:$0xff]
      %v4572 = vunpack.c.l.bf16 %v4568
      %v4573 = vunpack.c.h.bf16 %v4568
      %v4574 = vunpack.c.l.bf16 %v4569
      %v4575 = vunpack.c.h.bf16 %v4569
      %v4576 = vunpack.c.l.bf16 %v4570
      %v4577 = vunpack.c.h.bf16 %v4570
      %v4578 = vunpack.c.l.bf16 %v4571
      %v4579 = vunpack.c.h.bf16 %v4571
      %v4580 = vld [vmem:[#allocation3] sm:$0xff]
      %v4581 = vld [vmem:[#allocation3 + $0x8] sm:$0xff]
      %v4582 = vpack.c.bf16 %v4580, %v4580
      %v4583 = vpack.c.bf16 %v4581, %v4581
      %v4584 = vld [vmem:[#allocation17] sm:$0xff]
      %v4585 = vld [vmem:[#allocation17 + $0x8] sm:$0xff]
      %v4586 = vld [vmem:[#allocation17 + $0x10] sm:$0xff]
      %v4587 = vld [vmem:[#allocation17 + $0x18] sm:$0xff]
      %v4588 = vld [vmem:[#allocation17 + $0x20] sm:$0xff]
      %v4589 = vld [vmem:[#allocation17 + $0x28] sm:$0xff]
      %v4590 = vld [vmem:[#allocation17 + $0x30] sm:$0xff]
      %v4591 = vld [vmem:[#allocation17 + $0x38] sm:$0xff]
      %v4592 = vld [vmem:[#allocation17 + $0x40] sm:$0xff]
      %v4593 = vld [vmem:[#allocation17 + $0x48] sm:$0xff]
      %v4594 = vld [vmem:[#allocation17 + $0x50] sm:$0xff]
      %v4595 = vld [vmem:[#allocation17 + $0x58] sm:$0xff]
      %v4596 = vld [vmem:[#allocation17 + $0x60] sm:$0xff]
      %v4597 = vld [vmem:[#allocation17 + $0x68] sm:$0xff]
      %v4598 = vld [vmem:[#allocation17 + $0x70] sm:$0xff]
      %v4599 = vld [vmem:[#allocation17 + $0x78] sm:$0xff]
      %v4600 = vld [vmem:[#allocation17 + $0x80] sm:$0xff]
      %v4601 = vld [vmem:[#allocation17 + $0x88] sm:$0xff]
      %v4602 = vld [vmem:[#allocation17 + $0x90] sm:$0xff]
      %v4603 = vld [vmem:[#allocation17 + $0x98] sm:$0xff]
      %v4604 = vld [vmem:[#allocation17 + $0xa0] sm:$0xff]
      %v4605 = vld [vmem:[#allocation17 + $0xa8] sm:$0xff]
      %v4606 = vld [vmem:[#allocation17 + $0xb0] sm:$0xff]
      %v4607 = vld [vmem:[#allocation17 + $0xb8] sm:$0xff]
      %v4608 = vld [vmem:[#allocation17 + $0xc0] sm:$0xff]
      %v4609 = vld [vmem:[#allocation17 + $0xc8] sm:$0xff]
      %v4610 = vld [vmem:[#allocation17 + $0xd0] sm:$0xff]
      %v4611 = vld [vmem:[#allocation17 + $0xd8] sm:$0xff]
      %v4612 = vld [vmem:[#allocation17 + $0xe0] sm:$0xff]
      %v4613 = vld [vmem:[#allocation17 + $0xe8] sm:$0xff]
      %v4614 = vld [vmem:[#allocation17 + $0xf0] sm:$0xff]
      %v4615 = vld [vmem:[#allocation17 + $0xf8] sm:$0xff]
      %v4616 = vld [vmem:[#allocation17 + $0x100] sm:$0xff]
      %v4617 = vld [vmem:[#allocation17 + $0x108] sm:$0xff]
      %v4618 = vld [vmem:[#allocation17 + $0x110] sm:$0xff]
      %v4619 = vld [vmem:[#allocation17 + $0x118] sm:$0xff]
      %v4620 = vld [vmem:[#allocation17 + $0x120] sm:$0xff]
      %v4621 = vld [vmem:[#allocation17 + $0x128] sm:$0xff]
      %v4622 = vld [vmem:[#allocation17 + $0x130] sm:$0xff]
      %v4623 = vld [vmem:[#allocation17 + $0x138] sm:$0xff]
      %v4624 = vld [vmem:[#allocation17 + $0x140] sm:$0xff]
      %v4625 = vld [vmem:[#allocation17 + $0x148] sm:$0xff]
      %v4626 = vld [vmem:[#allocation17 + $0x150] sm:$0xff]
      %v4627 = vld [vmem:[#allocation17 + $0x158] sm:$0xff]
      %v4628 = vld [vmem:[#allocation17 + $0x160] sm:$0xff]
      %v4629 = vld [vmem:[#allocation17 + $0x168] sm:$0xff]
      %v4630 = vld [vmem:[#allocation17 + $0x170] sm:$0xff]
      %v4631 = vld [vmem:[#allocation17 + $0x178] sm:$0xff]
      %v4632 = vld [vmem:[#allocation17 + $0x180] sm:$0xff]
      %v4633 = vld [vmem:[#allocation17 + $0x188] sm:$0xff]
      %v4634 = vld [vmem:[#allocation17 + $0x190] sm:$0xff]
      %v4635 = vld [vmem:[#allocation17 + $0x198] sm:$0xff]
      %v4636 = vld [vmem:[#allocation17 + $0x1a0] sm:$0xff]
      %v4637 = vld [vmem:[#allocation17 + $0x1a8] sm:$0xff]
      %v4638 = vld [vmem:[#allocation17 + $0x1b0] sm:$0xff]
      %v4639 = vld [vmem:[#allocation17 + $0x1b8] sm:$0xff]
      %v4640 = vld [vmem:[#allocation17 + $0x1c0] sm:$0xff]
      %v4641 = vld [vmem:[#allocation17 + $0x1c8] sm:$0xff]
      %v4642 = vld [vmem:[#allocation17 + $0x1d0] sm:$0xff]
      %v4643 = vld [vmem:[#allocation17 + $0x1d8] sm:$0xff]
      %v4644 = vld [vmem:[#allocation17 + $0x1e0] sm:$0xff]
      %v4645 = vld [vmem:[#allocation17 + $0x1e8] sm:$0xff]
      %v4646 = vld [vmem:[#allocation17 + $0x1f0] sm:$0xff]
      %v4647 = vld [vmem:[#allocation17 + $0x1f8] sm:$0xff]
      %v4648 = vld [vmem:[#allocation17 + $0x200] sm:$0xff]
      %v4649 = vld [vmem:[#allocation17 + $0x208] sm:$0xff]
      %v4650 = vld [vmem:[#allocation17 + $0x210] sm:$0xff]
      %v4651 = vld [vmem:[#allocation17 + $0x218] sm:$0xff]
      %v4652 = vld [vmem:[#allocation17 + $0x220] sm:$0xff]
      %v4653 = vld [vmem:[#allocation17 + $0x228] sm:$0xff]
      %v4654 = vld [vmem:[#allocation17 + $0x230] sm:$0xff]
      %v4655 = vld [vmem:[#allocation17 + $0x238] sm:$0xff]
      %v4656 = vld [vmem:[#allocation17 + $0x240] sm:$0xff]
      %v4657 = vld [vmem:[#allocation17 + $0x248] sm:$0xff]
      %v4658 = vld [vmem:[#allocation17 + $0x250] sm:$0xff]
      %v4659 = vld [vmem:[#allocation17 + $0x258] sm:$0xff]
      %v4660 = vld [vmem:[#allocation17 + $0x260] sm:$0xff]
      %v4661 = vld [vmem:[#allocation17 + $0x268] sm:$0xff]
      %v4662 = vld [vmem:[#allocation17 + $0x270] sm:$0xff]
      %v4663 = vld [vmem:[#allocation17 + $0x278] sm:$0xff]
      %v4664 = vld [vmem:[#allocation17 + $0x280] sm:$0xff]
      %v4665 = vld [vmem:[#allocation17 + $0x288] sm:$0xff]
      %v4666 = vld [vmem:[#allocation17 + $0x290] sm:$0xff]
      %v4667 = vld [vmem:[#allocation17 + $0x298] sm:$0xff]
      %v4668 = vld [vmem:[#allocation17 + $0x2a0] sm:$0xff]
      %v4669 = vld [vmem:[#allocation17 + $0x2a8] sm:$0xff]
      %v4670 = vld [vmem:[#allocation17 + $0x2b0] sm:$0xff]
      %v4671 = vld [vmem:[#allocation17 + $0x2b8] sm:$0xff]
      %v4672 = vld [vmem:[#allocation17 + $0x2c0] sm:$0xff]
      %v4673 = vld [vmem:[#allocation17 + $0x2c8] sm:$0xff]
      %v4674 = vld [vmem:[#allocation17 + $0x2d0] sm:$0xff]
      %v4675 = vld [vmem:[#allocation17 + $0x2d8] sm:$0xff]
      %v4676 = vld [vmem:[#allocation17 + $0x2e0] sm:$0xff]
      %v4677 = vld [vmem:[#allocation17 + $0x2e8] sm:$0xff]
      %v4678 = vld [vmem:[#allocation17 + $0x2f0] sm:$0xff]
      %v4679 = vld [vmem:[#allocation17 + $0x2f8] sm:$0xff]
      %v4680 = vld [vmem:[#allocation17 + $0x300] sm:$0xff]
      %v4681 = vld [vmem:[#allocation17 + $0x308] sm:$0xff]
      %v4682 = vld [vmem:[#allocation17 + $0x310] sm:$0xff]
      %v4683 = vld [vmem:[#allocation17 + $0x318] sm:$0xff]
      %v4684 = vld [vmem:[#allocation17 + $0x320] sm:$0xff]
      %v4685 = vld [vmem:[#allocation17 + $0x328] sm:$0xff]
      %v4686 = vld [vmem:[#allocation17 + $0x330] sm:$0xff]
      %v4687 = vld [vmem:[#allocation17 + $0x338] sm:$0xff]
      %v4688 = vld [vmem:[#allocation17 + $0x340] sm:$0xff]
      %v4689 = vld [vmem:[#allocation17 + $0x348] sm:$0xff]
      %v4690 = vld [vmem:[#allocation17 + $0x350] sm:$0xff]
      %v4691 = vld [vmem:[#allocation17 + $0x358] sm:$0xff]
      %v4692 = vld [vmem:[#allocation17 + $0x360] sm:$0xff]
      %v4693 = vld [vmem:[#allocation17 + $0x368] sm:$0xff]
      %v4694 = vld [vmem:[#allocation17 + $0x370] sm:$0xff]
      %v4695 = vld [vmem:[#allocation17 + $0x378] sm:$0xff]
      %v4696 = vld [vmem:[#allocation17 + $0x380] sm:$0xff]
      %v4697 = vld [vmem:[#allocation17 + $0x388] sm:$0xff]
      %v4698 = vld [vmem:[#allocation17 + $0x390] sm:$0xff]
      %v4699 = vld [vmem:[#allocation17 + $0x398] sm:$0xff]
      %v4700 = vld [vmem:[#allocation17 + $0x3a0] sm:$0xff]
      %v4701 = vld [vmem:[#allocation17 + $0x3a8] sm:$0xff]
      %v4702 = vld [vmem:[#allocation17 + $0x3b0] sm:$0xff]
      %v4703 = vld [vmem:[#allocation17 + $0x3b8] sm:$0xff]
      %v4704 = vld [vmem:[#allocation17 + $0x3c0] sm:$0xff]
      %v4705 = vld [vmem:[#allocation17 + $0x3c8] sm:$0xff]
      %v4706 = vld [vmem:[#allocation17 + $0x3d0] sm:$0xff]
      %v4707 = vld [vmem:[#allocation17 + $0x3d8] sm:$0xff]
      %v4708 = vld [vmem:[#allocation17 + $0x3e0] sm:$0xff]
      %v4709 = vld [vmem:[#allocation17 + $0x3e8] sm:$0xff]
      %v4710 = vld [vmem:[#allocation17 + $0x3f0] sm:$0xff]
      %v4711 = vld [vmem:[#allocation17 + $0x3f8] sm:$0xff]
      %v4840 = vunpack.c.l.b16 %v4584
      %v4841 = vunpack.c.h.b16 %v4584
      %v4842 = vunpack.c.l.b16 %v4585
      %v4843 = vunpack.c.h.b16 %v4585
      %v4844 = vunpack.c.l.b16 %v4586
      %v4845 = vunpack.c.h.b16 %v4586
      %v4846 = vunpack.c.l.b16 %v4587
      %v4847 = vunpack.c.h.b16 %v4587
      %v4848 = vunpack.c.l.b16 %v4588
      %v4849 = vunpack.c.h.b16 %v4588
      %v4850 = vunpack.c.l.b16 %v4589
      %v4851 = vunpack.c.h.b16 %v4589
      %v4852 = vunpack.c.l.b16 %v4590
      %v4853 = vunpack.c.h.b16 %v4590
      %v4854 = vunpack.c.l.b16 %v4591
      %v4855 = vunpack.c.h.b16 %v4591
      %v4856 = vunpack.c.l.b16 %v4592
      %v4857 = vunpack.c.h.b16 %v4592
      %v4858 = vunpack.c.l.b16 %v4593
      %v4859 = vunpack.c.h.b16 %v4593
      %v4860 = vunpack.c.l.b16 %v4594
      %v4861 = vunpack.c.h.b16 %v4594
      %v4862 = vunpack.c.l.b16 %v4595
      %v4863 = vunpack.c.h.b16 %v4595
      %v4864 = vunpack.c.l.b16 %v4596
      %v4865 = vunpack.c.h.b16 %v4596
      %v4866 = vunpack.c.l.b16 %v4597
      %v4867 = vunpack.c.h.b16 %v4597
      %v4868 = vunpack.c.l.b16 %v4598
      %v4869 = vunpack.c.h.b16 %v4598
      %v4870 = vunpack.c.l.b16 %v4599
      %v4871 = vunpack.c.h.b16 %v4599
      %v4872 = vunpack.c.l.b16 %v4600
      %v4873 = vunpack.c.h.b16 %v4600
      %v4874 = vunpack.c.l.b16 %v4601
      %v4875 = vunpack.c.h.b16 %v4601
      %v4876 = vunpack.c.l.b16 %v4602
      %v4877 = vunpack.c.h.b16 %v4602
      %v4878 = vunpack.c.l.b16 %v4603
      %v4879 = vunpack.c.h.b16 %v4603
      %v4880 = vunpack.c.l.b16 %v4604
      %v4881 = vunpack.c.h.b16 %v4604
      %v4882 = vunpack.c.l.b16 %v4605
      %v4883 = vunpack.c.h.b16 %v4605
      %v4884 = vunpack.c.l.b16 %v4606
      %v4885 = vunpack.c.h.b16 %v4606
      %v4886 = vunpack.c.l.b16 %v4607
      %v4887 = vunpack.c.h.b16 %v4607
      %v4888 = vunpack.c.l.b16 %v4608
      %v4889 = vunpack.c.h.b16 %v4608
      %v4890 = vunpack.c.l.b16 %v4609
      %v4891 = vunpack.c.h.b16 %v4609
      %v4892 = vunpack.c.l.b16 %v4610
      %v4893 = vunpack.c.h.b16 %v4610
      %v4894 = vunpack.c.l.b16 %v4611
      %v4895 = vunpack.c.h.b16 %v4611
      %v4896 = vunpack.c.l.b16 %v4612
      %v4897 = vunpack.c.h.b16 %v4612
      %v4898 = vunpack.c.l.b16 %v4613
      %v4899 = vunpack.c.h.b16 %v4613
      %v4900 = vunpack.c.l.b16 %v4614
      %v4901 = vunpack.c.h.b16 %v4614
      %v4902 = vunpack.c.l.b16 %v4615
      %v4903 = vunpack.c.h.b16 %v4615
      %v4904 = vunpack.c.l.b16 %v4616
      %v4905 = vunpack.c.h.b16 %v4616
      %v4906 = vunpack.c.l.b16 %v4617
      %v4907 = vunpack.c.h.b16 %v4617
      %v4908 = vunpack.c.l.b16 %v4618
      %v4909 = vunpack.c.h.b16 %v4618
      %v4910 = vunpack.c.l.b16 %v4619
      %v4911 = vunpack.c.h.b16 %v4619
      %v4912 = vunpack.c.l.b16 %v4620
      %v4913 = vunpack.c.h.b16 %v4620
      %v4914 = vunpack.c.l.b16 %v4621
      %v4915 = vunpack.c.h.b16 %v4621
      %v4916 = vunpack.c.l.b16 %v4622
      %v4917 = vunpack.c.h.b16 %v4622
      %v4918 = vunpack.c.l.b16 %v4623
      %v4919 = vunpack.c.h.b16 %v4623
      %v4920 = vunpack.c.l.b16 %v4624
      %v4921 = vunpack.c.h.b16 %v4624
      %v4922 = vunpack.c.l.b16 %v4625
      %v4923 = vunpack.c.h.b16 %v4625
      %v4924 = vunpack.c.l.b16 %v4626
      %v4925 = vunpack.c.h.b16 %v4626
      %v4926 = vunpack.c.l.b16 %v4627
      %v4927 = vunpack.c.h.b16 %v4627
      %v4928 = vunpack.c.l.b16 %v4628
      %v4929 = vunpack.c.h.b16 %v4628
      %v4930 = vunpack.c.l.b16 %v4629
      %v4931 = vunpack.c.h.b16 %v4629
      %v4932 = vunpack.c.l.b16 %v4630
      %v4933 = vunpack.c.h.b16 %v4630
      %v4934 = vunpack.c.l.b16 %v4631
      %v4935 = vunpack.c.h.b16 %v4631
      %v4936 = vunpack.c.l.b16 %v4632
      %v4937 = vunpack.c.h.b16 %v4632
      %v4938 = vunpack.c.l.b16 %v4633
      %v4939 = vunpack.c.h.b16 %v4633
      %v4940 = vunpack.c.l.b16 %v4634
      %v4941 = vunpack.c.h.b16 %v4634
      %v4942 = vunpack.c.l.b16 %v4635
      %v4943 = vunpack.c.h.b16 %v4635
      %v4944 = vunpack.c.l.b16 %v4636
      %v4945 = vunpack.c.h.b16 %v4636
      %v4946 = vunpack.c.l.b16 %v4637
      %v4947 = vunpack.c.h.b16 %v4637
      %v4948 = vunpack.c.l.b16 %v4638
      %v4949 = vunpack.c.h.b16 %v4638
      %v4950 = vunpack.c.l.b16 %v4639
      %v4951 = vunpack.c.h.b16 %v4639
      %v4952 = vunpack.c.l.b16 %v4640
      %v4953 = vunpack.c.h.b16 %v4640
      %v4954 = vunpack.c.l.b16 %v4641
      %v4955 = vunpack.c.h.b16 %v4641
      %v4956 = vunpack.c.l.b16 %v4642
      %v4957 = vunpack.c.h.b16 %v4642
      %v4958 = vunpack.c.l.b16 %v4643
      %v4959 = vunpack.c.h.b16 %v4643
      %v4960 = vunpack.c.l.b16 %v4644
      %v4961 = vunpack.c.h.b16 %v4644
      %v4962 = vunpack.c.l.b16 %v4645
      %v4963 = vunpack.c.h.b16 %v4645
      %v4964 = vunpack.c.l.b16 %v4646
      %v4965 = vunpack.c.h.b16 %v4646
      %v4966 = vunpack.c.l.b16 %v4647
      %v4967 = vunpack.c.h.b16 %v4647
      %v4968 = vunpack.c.l.b16 %v4648
      %v4969 = vunpack.c.h.b16 %v4648
      %v4970 = vunpack.c.l.b16 %v4649
      %v4971 = vunpack.c.h.b16 %v4649
      %v4972 = vunpack.c.l.b16 %v4650
      %v4973 = vunpack.c.h.b16 %v4650
      %v4974 = vunpack.c.l.b16 %v4651
      %v4975 = vunpack.c.h.b16 %v4651
      %v4976 = vunpack.c.l.b16 %v4652
      %v4977 = vunpack.c.h.b16 %v4652
      %v4978 = vunpack.c.l.b16 %v4653
      %v4979 = vunpack.c.h.b16 %v4653
      %v4980 = vunpack.c.l.b16 %v4654
      %v4981 = vunpack.c.h.b16 %v4654
      %v4982 = vunpack.c.l.b16 %v4655
      %v4983 = vunpack.c.h.b16 %v4655
      %v4984 = vunpack.c.l.b16 %v4656
      %v4985 = vunpack.c.h.b16 %v4656
      %v4986 = vunpack.c.l.b16 %v4657
      %v4987 = vunpack.c.h.b16 %v4657
      %v4988 = vunpack.c.l.b16 %v4658
      %v4989 = vunpack.c.h.b16 %v4658
      %v4990 = vunpack.c.l.b16 %v4659
      %v4991 = vunpack.c.h.b16 %v4659
      %v4992 = vunpack.c.l.b16 %v4660
      %v4993 = vunpack.c.h.b16 %v4660
      %v4994 = vunpack.c.l.b16 %v4661
      %v4995 = vunpack.c.h.b16 %v4661
      %v4996 = vunpack.c.l.b16 %v4662
      %v4997 = vunpack.c.h.b16 %v4662
      %v4998 = vunpack.c.l.b16 %v4663
      %v4999 = vunpack.c.h.b16 %v4663
      %v5000 = vunpack.c.l.b16 %v4664
      %v5001 = vunpack.c.h.b16 %v4664
      %v5002 = vunpack.c.l.b16 %v4665
      %v5003 = vunpack.c.h.b16 %v4665
      %v5004 = vunpack.c.l.b16 %v4666
      %v5005 = vunpack.c.h.b16 %v4666
      %v5006 = vunpack.c.l.b16 %v4667
      %v5007 = vunpack.c.h.b16 %v4667
      %v5008 = vunpack.c.l.b16 %v4668
      %v5009 = vunpack.c.h.b16 %v4668
      %v5010 = vunpack.c.l.b16 %v4669
      %v5011 = vunpack.c.h.b16 %v4669
      %v5012 = vunpack.c.l.b16 %v4670
      %v5013 = vunpack.c.h.b16 %v4670
      %v5014 = vunpack.c.l.b16 %v4671
      %v5015 = vunpack.c.h.b16 %v4671
      %v5016 = vunpack.c.l.b16 %v4672
      %v5017 = vunpack.c.h.b16 %v4672
      %v5018 = vunpack.c.l.b16 %v4673
      %v5019 = vunpack.c.h.b16 %v4673
      %v5020 = vunpack.c.l.b16 %v4674
      %v5021 = vunpack.c.h.b16 %v4674
      %v5022 = vunpack.c.l.b16 %v4675
      %v5023 = vunpack.c.h.b16 %v4675
      %v5024 = vunpack.c.l.b16 %v4676
      %v5025 = vunpack.c.h.b16 %v4676
      %v5026 = vunpack.c.l.b16 %v4677
      %v5027 = vunpack.c.h.b16 %v4677
      %v5028 = vunpack.c.l.b16 %v4678
      %v5029 = vunpack.c.h.b16 %v4678
      %v5030 = vunpack.c.l.b16 %v4679
      %v5031 = vunpack.c.h.b16 %v4679
      %v5032 = vunpack.c.l.b16 %v4680
      %v5033 = vunpack.c.h.b16 %v4680
      %v5034 = vunpack.c.l.b16 %v4681
      %v5035 = vunpack.c.h.b16 %v4681
      %v5036 = vunpack.c.l.b16 %v4682
      %v5037 = vunpack.c.h.b16 %v4682
      %v5038 = vunpack.c.l.b16 %v4683
      %v5039 = vunpack.c.h.b16 %v4683
      %v5040 = vunpack.c.l.b16 %v4684
      %v5041 = vunpack.c.h.b16 %v4684
      %v5042 = vunpack.c.l.b16 %v4685
      %v5043 = vunpack.c.h.b16 %v4685
      %v5044 = vunpack.c.l.b16 %v4686
      %v5045 = vunpack.c.h.b16 %v4686
      %v5046 = vunpack.c.l.b16 %v4687
      %v5047 = vunpack.c.h.b16 %v4687
      %v5048 = vunpack.c.l.b16 %v4688
      %v5049 = vunpack.c.h.b16 %v4688
      %v5050 = vunpack.c.l.b16 %v4689
      %v5051 = vunpack.c.h.b16 %v4689
      %v5052 = vunpack.c.l.b16 %v4690
      %v5053 = vunpack.c.h.b16 %v4690
      %v5054 = vunpack.c.l.b16 %v4691
      %v5055 = vunpack.c.h.b16 %v4691
      %v5056 = vunpack.c.l.b16 %v4692
      %v5057 = vunpack.c.h.b16 %v4692
      %v5058 = vunpack.c.l.b16 %v4693
      %v5059 = vunpack.c.h.b16 %v4693
      %v5060 = vunpack.c.l.b16 %v4694
      %v5061 = vunpack.c.h.b16 %v4694
      %v5062 = vunpack.c.l.b16 %v4695
      %v5063 = vunpack.c.h.b16 %v4695
      %v5064 = vunpack.c.l.b16 %v4696
      %v5065 = vunpack.c.h.b16 %v4696
      %v5066 = vunpack.c.l.b16 %v4697
      %v5067 = vunpack.c.h.b16 %v4697
      %v5068 = vunpack.c.l.b16 %v4698
      %v5069 = vunpack.c.h.b16 %v4698
      %v5070 = vunpack.c.l.b16 %v4699
      %v5071 = vunpack.c.h.b16 %v4699
      %v5072 = vunpack.c.l.b16 %v4700
      %v5073 = vunpack.c.h.b16 %v4700
      %v5074 = vunpack.c.l.b16 %v4701
      %v5075 = vunpack.c.h.b16 %v4701
      %v5076 = vunpack.c.l.b16 %v4702
      %v5077 = vunpack.c.h.b16 %v4702
      %v5078 = vunpack.c.l.b16 %v4703
      %v5079 = vunpack.c.h.b16 %v4703
      %v5080 = vunpack.c.l.b16 %v4704
      %v5081 = vunpack.c.h.b16 %v4704
      %v5082 = vunpack.c.l.b16 %v4705
      %v5083 = vunpack.c.h.b16 %v4705
      %v5084 = vunpack.c.l.b16 %v4706
      %v5085 = vunpack.c.h.b16 %v4706
      %v5086 = vunpack.c.l.b16 %v4707
      %v5087 = vunpack.c.h.b16 %v4707
      %v5088 = vunpack.c.l.b16 %v4708
      %v5089 = vunpack.c.h.b16 %v4708
      %v5090 = vunpack.c.l.b16 %v4709
      %v5091 = vunpack.c.h.b16 %v4709
      %v5092 = vunpack.c.l.b16 %v4710
      %v5093 = vunpack.c.h.b16 %v4710
      %v5094 = vunpack.c.l.b16 %v4711
      %v5095 = vunpack.c.h.b16 %v4711
      %v5096 = vpack.c.b16 %v4848, %v4840
      %v5097 = vpack.c.b16 %v4849, %v4841
      %v5098 = vpack.c.b16 %v4850, %v4842
      %v5099 = vpack.c.b16 %v4851, %v4843
      %v5100 = vpack.c.b16 %v4852, %v4844
      %v5101 = vpack.c.b16 %v4853, %v4845
      %v5102 = vpack.c.b16 %v4854, %v4846
      %v5103 = vpack.c.b16 %v4855, %v4847
      %v5104 = vpack.c.b16 %v4864, %v4856
      %v5105 = vpack.c.b16 %v4865, %v4857
      %v5106 = vpack.c.b16 %v4866, %v4858
      %v5107 = vpack.c.b16 %v4867, %v4859
      %v5108 = vpack.c.b16 %v4868, %v4860
      %v5109 = vpack.c.b16 %v4869, %v4861
      %v5110 = vpack.c.b16 %v4870, %v4862
      %v5111 = vpack.c.b16 %v4871, %v4863
      %v5112 = vpack.c.b16 %v4880, %v4872
      %v5113 = vpack.c.b16 %v4881, %v4873
      %v5114 = vpack.c.b16 %v4882, %v4874
      %v5115 = vpack.c.b16 %v4883, %v4875
      %v5116 = vpack.c.b16 %v4884, %v4876
      %v5117 = vpack.c.b16 %v4885, %v4877
      %v5118 = vpack.c.b16 %v4886, %v4878
      %v5119 = vpack.c.b16 %v4887, %v4879
      %v5120 = vpack.c.b16 %v4896, %v4888
      %v5121 = vpack.c.b16 %v4897, %v4889
      %v5122 = vpack.c.b16 %v4898, %v4890
      %v5123 = vpack.c.b16 %v4899, %v4891
      %v5124 = vpack.c.b16 %v4900, %v4892
      %v5125 = vpack.c.b16 %v4901, %v4893
      %v5126 = vpack.c.b16 %v4902, %v4894
      %v5127 = vpack.c.b16 %v4903, %v4895
      %v5128 = vpack.c.b16 %v4912, %v4904
      %v5129 = vpack.c.b16 %v4913, %v4905
      %v5130 = vpack.c.b16 %v4914, %v4906
      %v5131 = vpack.c.b16 %v4915, %v4907
      %v5132 = vpack.c.b16 %v4916, %v4908
      %v5133 = vpack.c.b16 %v4917, %v4909
      %v5134 = vpack.c.b16 %v4918, %v4910
      %v5135 = vpack.c.b16 %v4919, %v4911
      %v5136 = vpack.c.b16 %v4928, %v4920
      %v5137 = vpack.c.b16 %v4929, %v4921
      %v5138 = vpack.c.b16 %v4930, %v4922
      %v5139 = vpack.c.b16 %v4931, %v4923
      %v5140 = vpack.c.b16 %v4932, %v4924
      %v5141 = vpack.c.b16 %v4933, %v4925
      %v5142 = vpack.c.b16 %v4934, %v4926
      %v5143 = vpack.c.b16 %v4935, %v4927
      %v5144 = vpack.c.b16 %v4944, %v4936
      %v5145 = vpack.c.b16 %v4945, %v4937
      %v5146 = vpack.c.b16 %v4946, %v4938
      %v5147 = vpack.c.b16 %v4947, %v4939
      %v5148 = vpack.c.b16 %v4948, %v4940
      %v5149 = vpack.c.b16 %v4949, %v4941
      %v5150 = vpack.c.b16 %v4950, %v4942
      %v5151 = vpack.c.b16 %v4951, %v4943
      %v5152 = vpack.c.b16 %v4960, %v4952
      %v5153 = vpack.c.b16 %v4961, %v4953
      %v5154 = vpack.c.b16 %v4962, %v4954
      %v5155 = vpack.c.b16 %v4963, %v4955
      %v5156 = vpack.c.b16 %v4964, %v4956
      %v5157 = vpack.c.b16 %v4965, %v4957
      %v5158 = vpack.c.b16 %v4966, %v4958
      %v5159 = vpack.c.b16 %v4967, %v4959
      %v5160 = vpack.c.b16 %v4976, %v4968
      %v5161 = vpack.c.b16 %v4977, %v4969
      %v5162 = vpack.c.b16 %v4978, %v4970
      %v5163 = vpack.c.b16 %v4979, %v4971
      %v5164 = vpack.c.b16 %v4980, %v4972
      %v5165 = vpack.c.b16 %v4981, %v4973
      %v5166 = vpack.c.b16 %v4982, %v4974
      %v5167 = vpack.c.b16 %v4983, %v4975
      %v5168 = vpack.c.b16 %v4992, %v4984
      %v5169 = vpack.c.b16 %v4993, %v4985
      %v5170 = vpack.c.b16 %v4994, %v4986
      %v5171 = vpack.c.b16 %v4995, %v4987
      %v5172 = vpack.c.b16 %v4996, %v4988
      %v5173 = vpack.c.b16 %v4997, %v4989
      %v5174 = vpack.c.b16 %v4998, %v4990
      %v5175 = vpack.c.b16 %v4999, %v4991
      %v5176 = vpack.c.b16 %v5008, %v5000
      %v5177 = vpack.c.b16 %v5009, %v5001
      %v5178 = vpack.c.b16 %v5010, %v5002
      %v5179 = vpack.c.b16 %v5011, %v5003
      %v5180 = vpack.c.b16 %v5012, %v5004
      %v5181 = vpack.c.b16 %v5013, %v5005
      %v5182 = vpack.c.b16 %v5014, %v5006
      %v5183 = vpack.c.b16 %v5015, %v5007
      %v5184 = vpack.c.b16 %v5024, %v5016
      %v5185 = vpack.c.b16 %v5025, %v5017
      %v5186 = vpack.c.b16 %v5026, %v5018
      %v5187 = vpack.c.b16 %v5027, %v5019
      %v5188 = vpack.c.b16 %v5028, %v5020
      %v5189 = vpack.c.b16 %v5029, %v5021
      %v5190 = vpack.c.b16 %v5030, %v5022
      %v5191 = vpack.c.b16 %v5031, %v5023
      %v5192 = vpack.c.b16 %v5040, %v5032
      %v5193 = vpack.c.b16 %v5041, %v5033
      %v5194 = vpack.c.b16 %v5042, %v5034
      %v5195 = vpack.c.b16 %v5043, %v5035
      %v5196 = vpack.c.b16 %v5044, %v5036
      %v5197 = vpack.c.b16 %v5045, %v5037
      %v5198 = vpack.c.b16 %v5046, %v5038
      %v5199 = vpack.c.b16 %v5047, %v5039
      %v5200 = vpack.c.b16 %v5056, %v5048
      %v5201 = vpack.c.b16 %v5057, %v5049
      %v5202 = vpack.c.b16 %v5058, %v5050
      %v5203 = vpack.c.b16 %v5059, %v5051
      %v5204 = vpack.c.b16 %v5060, %v5052
      %v5205 = vpack.c.b16 %v5061, %v5053
      %v5206 = vpack.c.b16 %v5062, %v5054
      %v5207 = vpack.c.b16 %v5063, %v5055
      %v5208 = vpack.c.b16 %v5072, %v5064
      %v5209 = vpack.c.b16 %v5073, %v5065
      %v5210 = vpack.c.b16 %v5074, %v5066
      %v5211 = vpack.c.b16 %v5075, %v5067
      %v5212 = vpack.c.b16 %v5076, %v5068
      %v5213 = vpack.c.b16 %v5077, %v5069
      %v5214 = vpack.c.b16 %v5078, %v5070
      %v5215 = vpack.c.b16 %v5079, %v5071
      %v5216 = vpack.c.b16 %v5088, %v5080
      %v5217 = vpack.c.b16 %v5089, %v5081
      %v5218 = vpack.c.b16 %v5090, %v5082
      %v5219 = vpack.c.b16 %v5091, %v5083
      %v5220 = vpack.c.b16 %v5092, %v5084
      %v5221 = vpack.c.b16 %v5093, %v5085
      %v5222 = vpack.c.b16 %v5094, %v5086
      %v5223 = vpack.c.b16 %v5095, %v5087
      %5352 = vmatprep.subr.bf16.mxu0 %v5153
      %5353 = vmatpush1.bf16.msra.mxu0 %v5152
      %5354 = vmatprep.subr.bf16.mxu0 %v5145
      %5355 = vmatpush1.bf16.msra.mxu0 %v5144
      %5356 = vmatprep.subr.bf16.mxu0 %v5137
      %5357 = vmatpush1.bf16.msra.mxu0 %v5136
      %5358 = vmatprep.subr.bf16.mxu0 %v5129
      %5359 = vmatpush1.bf16.msra.mxu0 %v5128
      %5360 = vmatprep.subr.bf16.mxu0 %v5121
      %5361 = vmatpush1.bf16.msra.mxu0 %v5120
      %5362 = vmatprep.subr.bf16.mxu0 %v5113
      %5363 = vmatpush1.bf16.msra.mxu0 %v5112
      %5364 = vmatprep.subr.bf16.mxu0 %v5105
      %5365 = vmatpush1.bf16.msra.mxu0 %v5104
      %5366 = vmatprep.subr.bf16.mxu0 %v5097
      %5367 = vmatpush1.bf16.msra.mxu0 %v5096
      %5368 = vmatprep.subr.bf16.mxu0 %v5217
      %5369 = vmatpush2.bf16.msra.mxu0 %v5216
      %5370 = vmatprep.subr.bf16.mxu0 %v5209
      %5371 = vmatpush2.bf16.msra.mxu0 %v5208
      %5372 = vmatprep.subr.bf16.mxu0 %v5201
      %5373 = vmatpush2.bf16.msra.mxu0 %v5200
      %5374 = vmatprep.subr.bf16.mxu0 %v5193
      %5375 = vmatpush2.bf16.msra.mxu0 %v5192
      %5376 = vmatprep.subr.bf16.mxu0 %v5185
      %5377 = vmatpush2.bf16.msra.mxu0 %v5184
      %5378 = vmatprep.subr.bf16.mxu0 %v5177
      %5379 = vmatpush2.bf16.msra.mxu0 %v5176
      %5380 = vmatprep.subr.bf16.mxu0 %v5169
      %5381 = vmatpush2.bf16.msra.mxu0 %v5168
      %5382 = vmatprep.subr.bf16.mxu0 %v5161
      %5383 = vmatpush2.bf16.msra.mxu0 %v5160
      %5384 = vmatprep.mubr.bf16.mxu0 %v4583
      %5385 = vmatmul.mubr.bf16.gmra.mxu0 %v4582
      %v5386 = vpop.f32.mrf.mxu0
      %v5387 = vadd.f32 0.0, %v5386
      %v5388 = vpop.f32.mrf.mxu0
      %v5389 = vadd.f32 0.0, %v5388
      %v5390 = vpop.f32.mrf.mxu0
      %v5391 = vpop.f32.mrf.mxu0
      %5392 = vdwg.mxu0
      %5393 = vmatprep.subr.bf16.mxu0 %v5155
      %5394 = vmatpush1.bf16.msra.mxu0 %v5154
      %5395 = vmatprep.subr.bf16.mxu0 %v5147
      %5396 = vmatpush1.bf16.msra.mxu0 %v5146
      %5397 = vmatprep.subr.bf16.mxu0 %v5139
      %5398 = vmatpush1.bf16.msra.mxu0 %v5138
      %5399 = vmatprep.subr.bf16.mxu0 %v5131
      %5400 = vmatpush1.bf16.msra.mxu0 %v5130
      %5401 = vmatprep.subr.bf16.mxu0 %v5123
      %5402 = vmatpush1.bf16.msra.mxu0 %v5122
      %5403 = vmatprep.subr.bf16.mxu0 %v5115
      %5404 = vmatpush1.bf16.msra.mxu0 %v5114
      %5405 = vmatprep.subr.bf16.mxu0 %v5107
      %5406 = vmatpush1.bf16.msra.mxu0 %v5106
      %5407 = vmatprep.subr.bf16.mxu0 %v5099
      %5408 = vmatpush1.bf16.msra.mxu0 %v5098
      %5409 = vmatprep.subr.bf16.mxu0 %v5219
      %5410 = vmatpush2.bf16.msra.mxu0 %v5218
      %5411 = vmatprep.subr.bf16.mxu0 %v5211
      %5412 = vmatpush2.bf16.msra.mxu0 %v5210
      %5413 = vmatprep.subr.bf16.mxu0 %v5203
      %5414 = vmatpush2.bf16.msra.mxu0 %v5202
      %5415 = vmatprep.subr.bf16.mxu0 %v5195
      %5416 = vmatpush2.bf16.msra.mxu0 %v5194
      %5417 = vmatprep.subr.bf16.mxu0 %v5187
      %5418 = vmatpush2.bf16.msra.mxu0 %v5186
      %5419 = vmatprep.subr.bf16.mxu0 %v5179
      %5420 = vmatpush2.bf16.msra.mxu0 %v5178
      %5421 = vmatprep.subr.bf16.mxu0 %v5171
      %5422 = vmatpush2.bf16.msra.mxu0 %v5170
      %5423 = vmatprep.subr.bf16.mxu0 %v5163
      %5424 = vmatpush2.bf16.msra.mxu0 %v5162
      %5425 = vmatprep.mubr.bf16.mxu0 %v4583
      %5426 = vmatmul.mubr.bf16.gmra.mxu0 %v4582
      %v5427 = vpop.f32.mrf.mxu0
      %v5428 = vadd.f32 0.0, %v5427
      %v5429 = vpop.f32.mrf.mxu0
      %v5430 = vadd.f32 0.0, %v5429
      %v5431 = vpop.f32.mrf.mxu0
      %v5432 = vpop.f32.mrf.mxu0
      %5433 = vdwg.mxu0
      %5434 = vmatprep.subr.bf16.mxu0 %v5157
      %5435 = vmatpush1.bf16.msra.mxu0 %v5156
      %5436 = vmatprep.subr.bf16.mxu0 %v5149
      %5437 = vmatpush1.bf16.msra.mxu0 %v5148
      %5438 = vmatprep.subr.bf16.mxu0 %v5141
      %5439 = vmatpush1.bf16.msra.mxu0 %v5140
      %5440 = vmatprep.subr.bf16.mxu0 %v5133
      %5441 = vmatpush1.bf16.msra.mxu0 %v5132
      %5442 = vmatprep.subr.bf16.mxu0 %v5125
      %5443 = vmatpush1.bf16.msra.mxu0 %v5124
      %5444 = vmatprep.subr.bf16.mxu0 %v5117
      %5445 = vmatpush1.bf16.msra.mxu0 %v5116
      %5446 = vmatprep.subr.bf16.mxu0 %v5109
      %5447 = vmatpush1.bf16.msra.mxu0 %v5108
      %5448 = vmatprep.subr.bf16.mxu0 %v5101
      %5449 = vmatpush1.bf16.msra.mxu0 %v5100
      %5450 = vmatprep.subr.bf16.mxu0 %v5221
      %5451 = vmatpush2.bf16.msra.mxu0 %v5220
      %5452 = vmatprep.subr.bf16.mxu0 %v5213
      %5453 = vmatpush2.bf16.msra.mxu0 %v5212
      %5454 = vmatprep.subr.bf16.mxu0 %v5205
      %5455 = vmatpush2.bf16.msra.mxu0 %v5204
      %5456 = vmatprep.subr.bf16.mxu0 %v5197
      %5457 = vmatpush2.bf16.msra.mxu0 %v5196
      %5458 = vmatprep.subr.bf16.mxu0 %v5189
      %5459 = vmatpush2.bf16.msra.mxu0 %v5188
      %5460 = vmatprep.subr.bf16.mxu0 %v5181
      %5461 = vmatpush2.bf16.msra.mxu0 %v5180
      %5462 = vmatprep.subr.bf16.mxu0 %v5173
      %5463 = vmatpush2.bf16.msra.mxu0 %v5172
      %5464 = vmatprep.subr.bf16.mxu0 %v5165
      %5465 = vmatpush2.bf16.msra.mxu0 %v5164
      %5466 = vmatprep.mubr.bf16.mxu0 %v4583
      %5467 = vmatmul.mubr.bf16.gmra.mxu0 %v4582
      %v5468 = vpop.f32.mrf.mxu0
      %v5469 = vadd.f32 0.0, %v5468
      %v5470 = vpop.f32.mrf.mxu0
      %v5471 = vadd.f32 0.0, %v5470
      %v5472 = vpop.f32.mrf.mxu0
      %v5473 = vpop.f32.mrf.mxu0
      %5474 = vdwg.mxu0
      %5475 = vmatprep.subr.bf16.mxu0 %v5159
      %5476 = vmatpush1.bf16.msra.mxu0 %v5158
      %5477 = vmatprep.subr.bf16.mxu0 %v5151
      %5478 = vmatpush1.bf16.msra.mxu0 %v5150
      %5479 = vmatprep.subr.bf16.mxu0 %v5143
      %5480 = vmatpush1.bf16.msra.mxu0 %v5142
      %5481 = vmatprep.subr.bf16.mxu0 %v5135
      %5482 = vmatpush1.bf16.msra.mxu0 %v5134
      %5483 = vmatprep.subr.bf16.mxu0 %v5127
      %5484 = vmatpush1.bf16.msra.mxu0 %v5126
      %5485 = vmatprep.subr.bf16.mxu0 %v5119
      %5486 = vmatpush1.bf16.msra.mxu0 %v5118
      %5487 = vmatprep.subr.bf16.mxu0 %v5111
      %5488 = vmatpush1.bf16.msra.mxu0 %v5110
      %5489 = vmatprep.subr.bf16.mxu0 %v5103
      %5490 = vmatpush1.bf16.msra.mxu0 %v5102
      %5491 = vmatprep.subr.bf16.mxu0 %v5223
      %5492 = vmatpush2.bf16.msra.mxu0 %v5222
      %5493 = vmatprep.subr.bf16.mxu0 %v5215
      %5494 = vmatpush2.bf16.msra.mxu0 %v5214
      %5495 = vmatprep.subr.bf16.mxu0 %v5207
      %5496 = vmatpush2.bf16.msra.mxu0 %v5206
      %5497 = vmatprep.subr.bf16.mxu0 %v5199
      %5498 = vmatpush2.bf16.msra.mxu0 %v5198
      %5499 = vmatprep.subr.bf16.mxu0 %v5191
      %5500 = vmatpush2.bf16.msra.mxu0 %v5190
      %5501 = vmatprep.subr.bf16.mxu0 %v5183
      %5502 = vmatpush2.bf16.msra.mxu0 %v5182
      %5503 = vmatprep.subr.bf16.mxu0 %v5175
      %5504 = vmatpush2.bf16.msra.mxu0 %v5174
      %5505 = vmatprep.subr.bf16.mxu0 %v5167
      %5506 = vmatpush2.bf16.msra.mxu0 %v5166
      %5507 = vmatprep.mubr.bf16.mxu0 %v4583
      %5508 = vmatmul.mubr.bf16.gmra.mxu0 %v4582
      %v5509 = vpop.f32.mrf.mxu0
      %v5510 = vadd.f32 0.0, %v5509
      %v5511 = vpop.f32.mrf.mxu0
      %v5512 = vadd.f32 0.0, %v5511
      %v5513 = vpop.f32.mrf.mxu0
      %v5514 = vpop.f32.mrf.mxu0
      %5515 = vdwg.mxu0
      %v5516 = vadd.f32 %v4572, %v5387
      %v5517 = vadd.f32 %v4573, %v5389
      %v5518 = vadd.f32 %v4574, %v5428
      %v5519 = vadd.f32 %v4575, %v5430
      %v5520 = vadd.f32 %v4576, %v5469
      %v5521 = vadd.f32 %v4577, %v5471
      %v5522 = vadd.f32 %v4578, %v5510
      %v5523 = vadd.f32 %v4579, %v5512
      %v5524 = vmul.f32 %v5518, 0.5
      %v5525 = vmul.f32 %v5519, 0.5
      %v5526 = vtanh.pop %v5524
      %v5527 = vtanh.pop %v5525
      %v5528 = vmul.f32 %v5526, 0.5
      %v5529 = vmul.f32 %v5527, 0.5
      %v5530 = vadd.f32 %v5528, 0.5
      %v5531 = vadd.f32 %v5529, 0.5
      %v5532 = vld [vmem:[#allocation4] sm:$0xff]
      %v5533 = vld [vmem:[#allocation4 + $0x8] sm:$0xff]
      %v5534 = vmul.f32 %v5530, %v5532
      %v5535 = vmul.f32 %v5531, %v5533
      %v5536 = vmul.f32 %v5516, 0.5
      %v5537 = vmul.f32 %v5517, 0.5
      %v5538 = vtanh.pop %v5536
      %v5539 = vtanh.pop %v5537
      %v5540 = vmul.f32 %v5538, 0.5
      %v5541 = vmul.f32 %v5539, 0.5
      %v5542 = vadd.f32 %v5540, 0.5
      %v5543 = vadd.f32 %v5541, 0.5
      %v5544 = vtanh.pop %v5520
      %v5545 = vtanh.pop %v5521
      %v5546 = vmul.f32 %v5542, %v5544
      %v5547 = vmul.f32 %v5543, %v5545
      %v5548 = vadd.f32 %v5534, %v5546
      %v5549 = vadd.f32 %v5535, %v5547
      %v5550 = vmul.f32 %v5522, 0.5
      %v5551 = vmul.f32 %v5523, 0.5
      %v5552 = vtanh.pop %v5550
      %v5553 = vtanh.pop %v5551
      %v5554 = vmul.f32 %v5552, 0.5
      %v5555 = vmul.f32 %v5553, 0.5
      %v5556 = vadd.f32 %v5554, 0.5
      %v5557 = vadd.f32 %v5555, 0.5
      %v5558 = vtanh.pop %v5548
      %v5559 = vtanh.pop %v5549
      %v5560 = vmul.f32 %v5556, %v5558
      %v5561 = vmul.f32 %v5557, %v5559
      %5562 = vst [vmem:[#allocation4] sm:$0xff] %v5548
      %5563 = vst [vmem:[#allocation4 + $0x8] sm:$0xff] %v5549
      %5564 = vst [vmem:[#allocation3] sm:$0xff] %v5560
      %5565 = vst [vmem:[#allocation3 + $0x8] sm:$0xff] %v5561
    $region104: #{tpu_custom_call.1} parent=1 // loop_footer
      %s4564 = sadd.s32 1, %s4560
    $region105: #{tpu_custom_call.1} parent=1 // loop_footer_branch
      %4559 = sbr.rel target = $region101
    $region106: #{tpu_custom_call.1} parent=1 // loop_exit
      _
    %v5566 = vld [vmem:[#allocation3] sm:$0xff]
    %v5567 = vld [vmem:[#allocation3 + $0x8] sm:$0xff]
    %v5568 = vpack.c.bf16 %v5566, %v5566
    %v5569 = vpack.c.bf16 %v5567, %v5567
    %v5570 = vld [vmem:[#allocation19] sm:$0xff]
    %v5571 = vld [vmem:[#allocation19 + $0x8] sm:$0xff]
    %v5572 = vld [vmem:[#allocation19 + $0x10] sm:$0xff]
    %v5573 = vld [vmem:[#allocation19 + $0x18] sm:$0xff]
    %v5574 = vld [vmem:[#allocation19 + $0x20] sm:$0xff]
    %v5575 = vld [vmem:[#allocation19 + $0x28] sm:$0xff]
    %v5576 = vld [vmem:[#allocation19 + $0x30] sm:$0xff]
    %v5577 = vld [vmem:[#allocation19 + $0x38] sm:$0xff]
    %v5578 = vld [vmem:[#allocation19 + $0x40] sm:$0xff]
    %v5579 = vld [vmem:[#allocation19 + $0x48] sm:$0xff]
    %v5580 = vld [vmem:[#allocation19 + $0x50] sm:$0xff]
    %v5581 = vld [vmem:[#allocation19 + $0x58] sm:$0xff]
    %v5582 = vld [vmem:[#allocation19 + $0x60] sm:$0xff]
    %v5583 = vld [vmem:[#allocation19 + $0x68] sm:$0xff]
    %v5584 = vld [vmem:[#allocation19 + $0x70] sm:$0xff]
    %v5585 = vld [vmem:[#allocation19 + $0x78] sm:$0xff]
    %v5586 = vld [vmem:[#allocation19 + $0x80] sm:$0xff]
    %v5587 = vld [vmem:[#allocation19 + $0x88] sm:$0xff]
    %v5588 = vld [vmem:[#allocation19 + $0x90] sm:$0xff]
    %v5589 = vld [vmem:[#allocation19 + $0x98] sm:$0xff]
    %v5590 = vld [vmem:[#allocation19 + $0xa0] sm:$0xff]
    %v5591 = vld [vmem:[#allocation19 + $0xa8] sm:$0xff]
    %v5592 = vld [vmem:[#allocation19 + $0xb0] sm:$0xff]
    %v5593 = vld [vmem:[#allocation19 + $0xb8] sm:$0xff]
    %v5594 = vld [vmem:[#allocation19 + $0xc0] sm:$0xff]
    %v5595 = vld [vmem:[#allocation19 + $0xc8] sm:$0xff]
    %v5596 = vld [vmem:[#allocation19 + $0xd0] sm:$0xff]
    %v5597 = vld [vmem:[#allocation19 + $0xd8] sm:$0xff]
    %v5598 = vld [vmem:[#allocation19 + $0xe0] sm:$0xff]
    %v5599 = vld [vmem:[#allocation19 + $0xe8] sm:$0xff]
    %v5600 = vld [vmem:[#allocation19 + $0xf0] sm:$0xff]
    %v5601 = vld [vmem:[#allocation19 + $0xf8] sm:$0xff]
    %v5602 = vld [vmem:[%s11] sm:$0x3]
    %v5604 = vlaneseq
    %v5605 = vshrl.u32 %v5604, 7
    %v5606 = vsub.s32 0, %v5605
    %v5607 = vrot.slane %v5602, %v5606
    %v5608 = vlaneseq
    %v5609 = vshrl.u32 %v5608, 7
    %v5610 = vsub.s32 1, %v5609
    %v5611 = vrot.slane %v5602, %v5610
    %v5646 = vunpack.c.l.b16 %v5570
    %v5647 = vunpack.c.h.b16 %v5570
    %v5648 = vunpack.c.l.b16 %v5571
    %v5649 = vunpack.c.h.b16 %v5571
    %v5650 = vunpack.c.l.b16 %v5572
    %v5651 = vunpack.c.h.b16 %v5572
    %v5652 = vunpack.c.l.b16 %v5573
    %v5653 = vunpack.c.h.b16 %v5573
    %v5654 = vunpack.c.l.b16 %v5574
    %v5655 = vunpack.c.h.b16 %v5574
    %v5656 = vunpack.c.l.b16 %v5575
    %v5657 = vunpack.c.h.b16 %v5575
    %v5658 = vunpack.c.l.b16 %v5576
    %v5659 = vunpack.c.h.b16 %v5576
    %v5660 = vunpack.c.l.b16 %v5577
    %v5661 = vunpack.c.h.b16 %v5577
    %v5662 = vunpack.c.l.b16 %v5578
    %v5663 = vunpack.c.h.b16 %v5578
    %v5664 = vunpack.c.l.b16 %v5579
    %v5665 = vunpack.c.h.b16 %v5579
    %v5666 = vunpack.c.l.b16 %v5580
    %v5667 = vunpack.c.h.b16 %v5580
    %v5668 = vunpack.c.l.b16 %v5581
    %v5669 = vunpack.c.h.b16 %v5581
    %v5670 = vunpack.c.l.b16 %v5582
    %v5671 = vunpack.c.h.b16 %v5582
    %v5672 = vunpack.c.l.b16 %v5583
    %v5673 = vunpack.c.h.b16 %v5583
    %v5674 = vunpack.c.l.b16 %v5584
    %v5675 = vunpack.c.h.b16 %v5584
    %v5676 = vunpack.c.l.b16 %v5585
    %v5677 = vunpack.c.h.b16 %v5585
    %v5678 = vunpack.c.l.b16 %v5586
    %v5679 = vunpack.c.h.b16 %v5586
    %v5680 = vunpack.c.l.b16 %v5587
    %v5681 = vunpack.c.h.b16 %v5587
    %v5682 = vunpack.c.l.b16 %v5588
    %v5683 = vunpack.c.h.b16 %v5588
    %v5684 = vunpack.c.l.b16 %v5589
    %v5685 = vunpack.c.h.b16 %v5589
    %v5686 = vunpack.c.l.b16 %v5590
    %v5687 = vunpack.c.h.b16 %v5590
    %v5688 = vunpack.c.l.b16 %v5591
    %v5689 = vunpack.c.h.b16 %v5591
    %v5690 = vunpack.c.l.b16 %v5592
    %v5691 = vunpack.c.h.b16 %v5592
    %v5692 = vunpack.c.l.b16 %v5593
    %v5693 = vunpack.c.h.b16 %v5593
    %v5694 = vunpack.c.l.b16 %v5594
    %v5695 = vunpack.c.h.b16 %v5594
    %v5696 = vunpack.c.l.b16 %v5595
    %v5697 = vunpack.c.h.b16 %v5595
    %v5698 = vunpack.c.l.b16 %v5596
    %v5699 = vunpack.c.h.b16 %v5596
    %v5700 = vunpack.c.l.b16 %v5597
    %v5701 = vunpack.c.h.b16 %v5597
    %v5702 = vunpack.c.l.b16 %v5598
    %v5703 = vunpack.c.h.b16 %v5598
    %v5704 = vunpack.c.l.b16 %v5599
    %v5705 = vunpack.c.h.b16 %v5599
    %v5706 = vunpack.c.l.b16 %v5600
    %v5707 = vunpack.c.h.b16 %v5600
    %v5708 = vunpack.c.l.b16 %v5601
    %v5709 = vunpack.c.h.b16 %v5601
    %v5710 = vpack.c.b16 %v5648, %v5646
    %v5711 = vpack.c.b16 %v5649, %v5647
    %v5712 = vpack.c.b16 %v5652, %v5650
    %v5713 = vpack.c.b16 %v5653, %v5651
    %v5714 = vpack.c.b16 %v5656, %v5654
    %v5715 = vpack.c.b16 %v5657, %v5655
    %v5716 = vpack.c.b16 %v5660, %v5658
    %v5717 = vpack.c.b16 %v5661, %v5659
    %v5718 = vpack.c.b16 %v5664, %v5662
    %v5719 = vpack.c.b16 %v5665, %v5663
    %v5720 = vpack.c.b16 %v5668, %v5666
    %v5721 = vpack.c.b16 %v5669, %v5667
    %v5722 = vpack.c.b16 %v5672, %v5670
    %v5723 = vpack.c.b16 %v5673, %v5671
    %v5724 = vpack.c.b16 %v5676, %v5674
    %v5725 = vpack.c.b16 %v5677, %v5675
    %v5726 = vpack.c.b16 %v5680, %v5678
    %v5727 = vpack.c.b16 %v5681, %v5679
    %v5728 = vpack.c.b16 %v5684, %v5682
    %v5729 = vpack.c.b16 %v5685, %v5683
    %v5730 = vpack.c.b16 %v5688, %v5686
    %v5731 = vpack.c.b16 %v5689, %v5687
    %v5732 = vpack.c.b16 %v5692, %v5690
    %v5733 = vpack.c.b16 %v5693, %v5691
    %v5734 = vpack.c.b16 %v5696, %v5694
    %v5735 = vpack.c.b16 %v5697, %v5695
    %v5736 = vpack.c.b16 %v5700, %v5698
    %v5737 = vpack.c.b16 %v5701, %v5699
    %v5738 = vpack.c.b16 %v5704, %v5702
    %v5739 = vpack.c.b16 %v5705, %v5703
    %v5740 = vpack.c.b16 %v5708, %v5706
    %v5741 = vpack.c.b16 %v5709, %v5707
    %5774 = vmatprep.subr.bf16.mxu0 %v5725
    %5775 = vmatpush1.bf16.msra.mxu0 %v5724
    %5776 = vmatprep.subr.bf16.mxu0 %v5723
    %5777 = vmatpush1.bf16.msra.mxu0 %v5722
    %5778 = vmatprep.subr.bf16.mxu0 %v5721
    %5779 = vmatpush1.bf16.msra.mxu0 %v5720
    %5780 = vmatprep.subr.bf16.mxu0 %v5719
    %5781 = vmatpush1.bf16.msra.mxu0 %v5718
    %5782 = vmatprep.subr.bf16.mxu0 %v5717
    %5783 = vmatpush1.bf16.msra.mxu0 %v5716
    %5784 = vmatprep.subr.bf16.mxu0 %v5715
    %5785 = vmatpush1.bf16.msra.mxu0 %v5714
    %5786 = vmatprep.subr.bf16.mxu0 %v5713
    %5787 = vmatpush1.bf16.msra.mxu0 %v5712
    %5788 = vmatprep.subr.bf16.mxu0 %v5711
    %5789 = vmatpush1.bf16.msra.mxu0 %v5710
    %5790 = vmatprep.subr.bf16.mxu0 %v5741
    %5791 = vmatpush2.bf16.msra.mxu0 %v5740
    %5792 = vmatprep.subr.bf16.mxu0 %v5739
    %5793 = vmatpush2.bf16.msra.mxu0 %v5738
    %5794 = vmatprep.subr.bf16.mxu0 %v5737
    %5795 = vmatpush2.bf16.msra.mxu0 %v5736
    %5796 = vmatprep.subr.bf16.mxu0 %v5735
    %5797 = vmatpush2.bf16.msra.mxu0 %v5734
    %5798 = vmatprep.subr.bf16.mxu0 %v5733
    %5799 = vmatpush2.bf16.msra.mxu0 %v5732
    %5800 = vmatprep.subr.bf16.mxu0 %v5731
    %5801 = vmatpush2.bf16.msra.mxu0 %v5730
    %5802 = vmatprep.subr.bf16.mxu0 %v5729
    %5803 = vmatpush2.bf16.msra.mxu0 %v5728
    %5804 = vmatprep.subr.bf16.mxu0 %v5727
    %5805 = vmatpush2.bf16.msra.mxu0 %v5726
    %5806 = vmatprep.mubr.bf16.mxu0 %v5569
    %5807 = vmatmul.mubr.bf16.gmra.mxu0 %v5568
    %v5808 = vpop.f32.mrf.mxu0
    %v5809 = vadd.f32 %v5607, %v5808
    %v5810 = vpop.f32.mrf.mxu0
    %v5811 = vadd.f32 %v5611, %v5810
    %v5812 = vpop.f32.mrf.mxu0
    %v5813 = vpop.f32.mrf.mxu0
    %5814 = vdwg.mxu0
    %v5815 = vmax.f32 %v5809, 0.0
    %v5816 = vmax.f32 %v5811, 0.0
    %v5817 = vmul.f32 %v5815, %v5815
    %v5818 = vmul.f32 %v5816, %v5816
    %v5819 = vadd.f32 %v5817, %v5818
    %5820 = vadd.xlane.f32.xlu0 %v5819
    %v5821 = vpop.xlane.xlu0 %5820
    %v5822 = vadd.f32 %v5821, 1e-12
    %v5823 = vrsqrt.pop %v5822
    %v5824 = vmul.f32 %v5815, %v5823
    %v5825 = vmul.f32 %v5816, %v5823
    %5826 = vst [vmem:[#allocation20] sm:$0xff] %v5824
    %5827 = vst [vmem:[#allocation20 + $0x8] sm:$0xff] %v5825
    // Predicated region
    $region107: #{tpu_custom_call.1} parent=1 // pred_check
      _
    $region108: #{tpu_custom_call.1} parent=1 // pred_check_branch
      %5829 = sbr.rel (0) target = $region110
    $region109: #{tpu_custom_call.1} parent=1 // pred_region
      %s5831 = ssub.s32 256, 256
      %5832 = vsyncadd [#allocation7], %s5831
      %s5834 = sshll.u32 [#allocation20], 4
      %s5835 = int_to_ptr.vmem [resolvable:$true] %s5834
      %5837 = dma.vmem_to_hbm [thread:$0]  %s5835, 256, %s12, [#allocation7]
    $region110: #{tpu_custom_call.1} parent=1 // pred_fallthru
      _
    // Predicated region
    $region111: #{tpu_custom_call.1} parent=1 // pred_check
      _
    $region112: #{tpu_custom_call.1} parent=1 // pred_check_branch
      %5839 = sbr.rel (0) target = $region114
    $region113: #{tpu_custom_call.1} parent=1 // pred_region
      %5840 = dma.done [#allocation7], 256
    $region114: #{tpu_custom_call.1} parent=1 // pred_fallthru
      _
    %5841 = vsyncpa [#allocation6], 1
    %5842 = vsyncpa [#allocation9], 1
    %5843 = vsyncpa [#allocation12], 1
    %5844 = vsyncpa [#allocation15], 1
    %5845 = vsyncpa [#allocation18], 1
    %5846 = vsyncpa [#allocation7], 1

</llo_original>
